<compile_context>
chip_gen: v7x
topology: tpu7x:2x2x1
jax: 0.10.0
libtpu: 0.0.40
codegen_flags: <defaults>
</compile_context>

<pallas_src>
import jax
import jax.numpy as jnp
from jax import lax
from jax.experimental import pallas as pl
from jax.experimental.pallas import tpu as pltpu

FEATURE_DEPTH = 2048
HIDDEN_DIMS = [512, 128]
NUM_CLASSES = 1
BN_EPS = 1e-5
OUT_LANES = 128  # lane-dense packed output: lane 0 = logits, 1 = prob, 2 = hat


def mitosis_head_kernel(f_ref, w1_ref, b1_ref, w2_ref, b2_ref, w3_ref, b3_ref, out_ref):
    # f_ref: (tb, 2048) f32 pooled features, fully lane-dense.
    feats = f_ref[...]

    # Block 1: folded Linear(2048->512)+BN, ReLU. bf16 into the MXU, f32 accumulate.
    h = jnp.dot(feats.astype(jnp.bfloat16), w1_ref[...],
                preferred_element_type=jnp.float32) + b1_ref[...]
    h = jnp.maximum(h, 0.0)

    # Block 2: folded Linear(512->128)+BN, ReLU.
    h = jnp.dot(h.astype(jnp.bfloat16), w2_ref[...],
                preferred_element_type=jnp.float32) + b2_ref[...]
    h = jnp.maximum(h, 0.0)

    # Final Linear(128->1) as VPU multiply + lane reduce (avoids an N=1 MXU matmul).
    logits = jnp.sum(h * w3_ref[...], axis=-1, keepdims=True) + b3_ref[...]     # (tb, 1)

    # Numerically stable sigmoid.
    e = jnp.exp(-jnp.abs(logits))
    prob = jnp.where(logits >= 0.0, 1.0 / (1.0 + e), e / (1.0 + e))
    hat = jnp.where(prob > 0.5, 1.0, 0.0)

    # Lane-dense packed output: one unmasked (tb, 128) store.
    lane = lax.broadcasted_iota(jnp.int32, out_ref.shape, 1)
    out_ref[...] = jnp.where(lane == 0, logits,
                             jnp.where(lane == 1, prob,
                                       jnp.where(lane == 2, hat, 0.0)))


def init_params(key):
    """Deterministic synthetic parameters (PyTorch Linear weight is (out,in); stored here as (in,out))."""
    ks = jax.random.split(key, 8)
    d0, d1, d2 = FEATURE_DEPTH, HIDDEN_DIMS[0], HIDDEN_DIMS[1]

    def lin(k, din, dout):
        kw, kb = jax.random.split(k)
        scale = 1.0 / jnp.sqrt(din)
        w = jax.random.uniform(kw, (din, dout), jnp.float32, -scale, scale)
        b = jax.random.uniform(kb, (1, dout), jnp.float32, -scale, scale)
        return w, b

    def bn(k, dim):
        kg, kb, km, kv = jax.random.split(k, 4)
        gamma = 1.0 + 0.1 * jax.random.normal(kg, (1, dim), jnp.float32)
        beta = 0.1 * jax.random.normal(kb, (1, dim), jnp.float32)
        mean = 0.1 * jax.random.normal(km, (1, dim), jnp.float32)
        var = jnp.abs(1.0 + 0.1 * jax.random.normal(kv, (1, dim), jnp.float32))
        return gamma, beta, mean, var

    w1, b1 = lin(ks[0], d0, d1)
    g1, be1, m1, v1 = bn(ks[1], d1)
    w2, b2 = lin(ks[2], d1, d2)
    g2, be2, m2, v2 = bn(ks[3], d2)
    w3, b3 = lin(ks[4], d2, NUM_CLASSES)
    return (w1, b1, g1, be1, m1, v1,
            w2, b2, g2, be2, m2, v2,
            w3, b3)


def fold_params(params):
    """Fold eval-mode BatchNorm into the preceding Linear (f32 fold, then cast weights to bf16)."""
    (w1, b1, g1, be1, m1, v1,
     w2, b2, g2, be2, m2, v2,
     w3, b3) = params
    s1 = g1 * lax.rsqrt(v1 + BN_EPS)                      # (1, 512)
    w1f = (w1 * s1).astype(jnp.bfloat16)                  # (2048, 512)
    b1f = ((b1 - m1) * s1 + be1).astype(jnp.float32)      # (1, 512)
    s2 = g2 * lax.rsqrt(v2 + BN_EPS)                      # (1, 128)
    w2f = (w2 * s2).astype(jnp.bfloat16)                  # (512, 128)
    b2f = ((b2 - m2) * s2 + be2).astype(jnp.float32)      # (1, 128)
    w3r = jnp.transpose(w3).astype(jnp.float32)           # (1, 128) row for VPU mul + lane reduce
    b3f = b3.astype(jnp.float32)                          # (1, 1)
    return w1f, b1f, w2f, b2f, w3r, b3f


def _vmem_budget_bytes():
    """Per-generation scoped-VMEM budget: ~3/4 of physical VMEM (128 MiB v5e/v6e,
    64 MiB per TensorCore on v7x); conservative 32 MiB if the hardware query fails."""
    try:
        cap = int(pltpu.get_tpu_info().vmem_capacity_bytes)
        return max(32 * 1024 * 1024, min((cap * 3) // 4, 100 * 1024 * 1024))
    except Exception:
        return 32 * 1024 * 1024


def _pick_batch_block(B, vmem_budget_bytes, resident_bytes):
    """Largest batch tile whose double-buffered activations fit the VMEM budget.
    Rows are lane-dense: 2048 f32 in + 128 f32 out, both double-buffered."""
    per_row = 2 * (FEATURE_DEPTH * 4) + 2 * (OUT_LANES * 4)
    # 2x resident: also covers the fallback where weights stay default double-buffered.
    avail = vmem_budget_bytes - 2 * resident_bytes - (2 << 20)
    tb = avail // per_row
    tb = min(tb, 512)          # 256-512 rows fill the MXU M dim and amortize per-step cost
    if tb >= B:
        return B
    tb = (tb // 8) * 8         # second-to-last block dim must be a multiple of 8
    if tb < 8:                 # no silent budget overrun (old max(8, ...) bug)
        raise ValueError("VMEM budget too small for an 8-row batch tile")
    return tb


def _resident_spec(shape):
    """Grid-invariant block: full array, constant index map, single-buffered."""
    index_map = lambda i: (0,) * len(shape)
    try:
        return pl.BlockSpec(shape, index_map, pipeline_mode=pl.Buffered(1))
    except Exception:   # older jax without pipeline_mode / Buffered: default buffering
        return pl.BlockSpec(shape, index_map)


def _batch_axis_semantics(num_blocks):
    """CORE_PARALLEL on multi-TensorCore chips (v7x) so both TCs get grid steps;
    plain "parallel" on 1-TC chips (v5e/v6e) where it is a no-op anyway."""
    if num_blocks >= 2:
        try:
            if "v7" in jax.devices()[0].device_kind.lower():
                return (pltpu.CORE_PARALLEL,)
        except Exception:
            pass
    return ("parallel",)


def mitosis_forward(x, params, batch_block=None):
    """x: (B, 2048, H, W) encoder feature map (f32 or bf16) or pre-pooled (B, 2048)."""
    if x.ndim == 4:
        B, C, H, W = x.shape
        assert C == FEATURE_DEPTH
        # Global average pool as a tiny contiguous XLA reduce with f32 accumulation.
        # For H*W < 128 this beats an in-kernel pool: a (tb, C, H*W) block would map the
        # 16-element spatial axis onto the 128-lane axis (7/8 padding, 1 MiB VMEM per
        # batch row); pooling here keeps the kernel input lane-dense at only ~2/(H*W)
        # extra HBM traffic.
        feats = jnp.mean(x, axis=(2, 3), dtype=jnp.float32)
    else:
        B, C = x.shape
        assert C == FEATURE_DEPTH
        feats = x.astype(jnp.float32)

    w1f, b1f, w2f, b2f, w3r, b3f = fold_params(params)
    d0, d1, d2 = FEATURE_DEPTH, HIDDEN_DIMS[0], HIDDEN_DIMS[1]
    resident_bytes = (d0 * d1) * 2 + (d1 * d2) * 2 + (d1 + 2 * d2 + 1) * 4

    vmem_budget = _vmem_budget_bytes()
    tb = batch_block if batch_block is not None else _pick_batch_block(B, vmem_budget, resident_bytes)
    num_blocks = pl.cdiv(B, tb)

    out = pl.pallas_call(
        mitosis_head_kernel,
        out_shape=jax.ShapeDtypeStruct((B, OUT_LANES), jnp.float32),
        grid=(num_blocks,),
        in_specs=[
            pl.BlockSpec((tb, d0), lambda i: (i, 0)),     # batch-tiled features (double-buffered)
            _resident_spec((d0, d1)),                     # w1 (bf16, BN folded)
            _resident_spec((1, d1)),                      # b1
            _resident_spec((d1, d2)),                     # w2 (bf16, BN folded)
            _resident_spec((1, d2)),                      # b2
            _resident_spec((1, d2)),                      # w3 row
            _resident_spec((1, 1)),                       # b3
        ],
        out_specs=pl.BlockSpec((tb, OUT_LANES), lambda i: (i, 0)),
        compiler_params=pltpu.CompilerParams(
            dimension_semantics=_batch_axis_semantics(num_blocks),
            vmem_limit_bytes=vmem_budget,
        ),
    )(feats, w1f, b1f, w2f, b2f, w3r, b3f)

    logits = out[:, 0]
    prob = out[:, 1]
    hat = out[:, 2]
    return logits, prob, hat


def reference_forward(x_nchw, params):
    (w1, b1, g1, be1, m1, v1,
     w2, b2, g2, be2, m2, v2,
     w3, b3) = params
    f = jnp.mean(x_nchw, axis=(2, 3))
    h = f @ w1 + b1
    h = (h - m1) / jnp.sqrt(v1 + BN_EPS) * g1 + be1
    h = jnp.maximum(h, 0.0)
    h = h @ w2 + b2
    h = (h - m2) / jnp.sqrt(v2 + BN_EPS) * g2 + be2
    h = jnp.maximum(h, 0.0)
    logits = (h @ w3 + b3)[:, 0]
    prob = jax.nn.sigmoid(logits)
    hat = (prob > 0.5).astype(jnp.float32)
    return logits, prob, hat


if __name__ == "__main__":
    key = jax.random.PRNGKey(0)
    k_x, k_p = jax.random.split(key)

    B, H, W = 2, 4, 4
    x = jax.random.normal(k_x, (B, FEATURE_DEPTH, H, W), jnp.float32)
    params = init_params(k_p)

    logits, prob, hat = mitosis_forward(x, params)
    jax.block_until_ready((logits, prob, hat))

    ref_logits, ref_prob, ref_hat = reference_forward(x, params)
    assert logits.shape == (B,) and prob.shape == (B,) and hat.shape == (B,)
    # bf16 MXU inputs (f32 accumulate) vs f32 reference -> loosened tolerances.
    assert jnp.allclose(logits, ref_logits, atol=2e-2, rtol=2e-2)
    assert jnp.allclose(prob, ref_prob, atol=1e-2, rtol=1e-2)
    # Y_hat must match unless the reference prob is essentially on the 0.5 threshold.
    assert bool(jnp.all((hat == ref_hat) | (jnp.abs(ref_prob - 0.5) < 5e-3)))

    print("KERNEL_OK")
</pallas_src>

<mosaic_0001>
module attributes {stable_mosaic.version = 11 : i64} {
  func.func @mitosis_head_kernel(%arg0: i32, %arg1: memref<2x2048xf32, #tpu.memory_space<vmem>>, %arg2: memref<2048x512xbf16, #tpu.memory_space<vmem>>, %arg3: memref<1x512xf32, #tpu.memory_space<vmem>>, %arg4: memref<512x128xbf16, #tpu.memory_space<vmem>>, %arg5: memref<1x128xf32, #tpu.memory_space<vmem>>, %arg6: memref<1x128xf32, #tpu.memory_space<vmem>>, %arg7: memref<1x1xf32, #tpu.memory_space<vmem>>, %arg8: memref<2x128xf32, #tpu.memory_space<vmem>>) attributes {dimension_semantics = [#tpu.dimension_semantics<parallel>], iteration_bounds = array<i64: 1>, scalar_prefetch = 0 : i64, scratch_operands = 0 : i64, tpu.core_type = #tpu.core_type<tc>, window_params = [{transform_indices = @transform_0, window_bounds = array<i64: 2, 2048>}, {pipeline_mode = #tpu.pipeline_mode<synchronous>, transform_indices = @transform_1, window_bounds = array<i64: 2048, 512>}, {pipeline_mode = #tpu.pipeline_mode<synchronous>, transform_indices = @transform_2, window_bounds = array<i64: 1, 512>}, {pipeline_mode = #tpu.pipeline_mode<synchronous>, transform_indices = @transform_3, window_bounds = array<i64: 512, 128>}, {pipeline_mode = #tpu.pipeline_mode<synchronous>, transform_indices = @transform_4, window_bounds = array<i64: 1, 128>}, {pipeline_mode = #tpu.pipeline_mode<synchronous>, transform_indices = @transform_5, window_bounds = array<i64: 1, 128>}, {pipeline_mode = #tpu.pipeline_mode<synchronous>, transform_indices = @transform_6, window_bounds = array<i64: 1, 1>}, {transform_indices = @transform_7, window_bounds = array<i64: 2, 128>}]} {
    %c0 = arith.constant 0 : index
    %c0_0 = arith.constant 0 : index
    %0 = vector.load %arg1[%c0, %c0_0] : memref<2x2048xf32, #tpu.memory_space<vmem>>, vector<2x2048xf32>
    %1 = arith.truncf %0 : vector<2x2048xf32> to vector<2x2048xbf16>
    %c0_1 = arith.constant 0 : index
    %c0_2 = arith.constant 0 : index
    %2 = vector.load %arg2[%c0_1, %c0_2] : memref<2048x512xbf16, #tpu.memory_space<vmem>>, vector<2048x512xbf16>
    %cst = arith.constant dense<0.000000e+00> : vector<2x512xf32>
    %3 = tpu.matmul %1, %2, %cst {dimension_numbers = #tpu.dot_dimension_numbers<[1], [0], [0], [1], [0, 0, 1, 1], [], []>} : vector<2x2048xbf16>, vector<2048x512xbf16>, vector<2x512xf32> -> vector<2x512xf32>
    %c0_3 = arith.constant 0 : index
    %c0_4 = arith.constant 0 : index
    %4 = vector.load %arg3[%c0_3, %c0_4] : memref<1x512xf32, #tpu.memory_space<vmem>>, vector<1x512xf32>
    %5 = vector.broadcast %4 : vector<1x512xf32> to vector<2x512xf32>
    %6 = arith.addf %3, %5 : vector<2x512xf32>
    %cst_5 = arith.constant 0.000000e+00 : f32
    %7 = vector.broadcast %cst_5 : f32 to vector<2x512xf32>
    %8 = arith.maximumf %6, %7 : vector<2x512xf32>
    %9 = arith.truncf %8 : vector<2x512xf32> to vector<2x512xbf16>
    %c0_6 = arith.constant 0 : index
    %c0_7 = arith.constant 0 : index
    %10 = vector.load %arg4[%c0_6, %c0_7] : memref<512x128xbf16, #tpu.memory_space<vmem>>, vector<512x128xbf16>
    %cst_8 = arith.constant dense<0.000000e+00> : vector<2x128xf32>
    %11 = tpu.matmul %9, %10, %cst_8 {dimension_numbers = #tpu.dot_dimension_numbers<[1], [0], [0], [1], [0, 0, 1, 1], [], []>} : vector<2x512xbf16>, vector<512x128xbf16>, vector<2x128xf32> -> vector<2x128xf32>
    %c0_9 = arith.constant 0 : index
    %c0_10 = arith.constant 0 : index
    %12 = vector.load %arg5[%c0_9, %c0_10] : memref<1x128xf32, #tpu.memory_space<vmem>>, vector<1x128xf32>
    %13 = vector.broadcast %12 : vector<1x128xf32> to vector<2x128xf32>
    %14 = arith.addf %11, %13 : vector<2x128xf32>
    %cst_11 = arith.constant 0.000000e+00 : f32
    %15 = vector.broadcast %cst_11 : f32 to vector<2x128xf32>
    %16 = arith.maximumf %14, %15 : vector<2x128xf32>
    %c0_12 = arith.constant 0 : index
    %c0_13 = arith.constant 0 : index
    %17 = vector.load %arg6[%c0_12, %c0_13] : memref<1x128xf32, #tpu.memory_space<vmem>>, vector<1x128xf32>
    %18 = vector.broadcast %17 : vector<1x128xf32> to vector<2x128xf32>
    %19 = arith.mulf %16, %18 : vector<2x128xf32>
    %cst_14 = arith.constant dense<0.000000e+00> : vector<2xf32>
    %20 = vector.multi_reduction <add>, %19, %cst_14 [1] : vector<2x128xf32> to vector<2xf32>
    %21 = vector.shape_cast %20 : vector<2xf32> to vector<2x1xf32>
    %c0_15 = arith.constant 0 : index
    %c0_16 = arith.constant 0 : index
    %22 = vector.load %arg7[%c0_15, %c0_16] : memref<1x1xf32, #tpu.memory_space<vmem>>, vector<1x1xf32>
    %23 = vector.broadcast %22 : vector<1x1xf32> to vector<2x1xf32>
    %24 = arith.addf %21, %23 : vector<2x1xf32>
    %25 = math.absf %24 : vector<2x1xf32>
    %cst_17 = arith.constant 0.000000e+00 : f32
    %26 = vector.broadcast %cst_17 : f32 to vector<2x1xf32>
    %27 = arith.subf %26, %25 : vector<2x1xf32>
    %28 = math.exp %27 : vector<2x1xf32>
    %cst_18 = arith.constant 0.000000e+00 : f32
    %29 = vector.broadcast %cst_18 : f32 to vector<2x1xf32>
    %30 = arith.cmpf oge, %24, %29 : vector<2x1xf32>
    %cst_19 = arith.constant 1.000000e+00 : f32
    %31 = vector.broadcast %cst_19 : f32 to vector<2x1xf32>
    %32 = arith.addf %31, %28 : vector<2x1xf32>
    %cst_20 = arith.constant 1.000000e+00 : f32
    %33 = vector.broadcast %cst_20 : f32 to vector<2x1xf32>
    %34 = arith.divf %33, %32 : vector<2x1xf32>
    %cst_21 = arith.constant 1.000000e+00 : f32
    %35 = vector.broadcast %cst_21 : f32 to vector<2x1xf32>
    %36 = arith.addf %35, %28 : vector<2x1xf32>
    %37 = arith.divf %28, %36 : vector<2x1xf32>
    %38 = arith.select %30, %34, %37 : vector<2x1xi1>, vector<2x1xf32>
    %cst_22 = arith.constant 5.000000e-01 : f32
    %39 = vector.broadcast %cst_22 : f32 to vector<2x1xf32>
    %40 = arith.cmpf ogt, %38, %39 : vector<2x1xf32>
    %cst_23 = arith.constant 1.000000e+00 : f32
    %cst_24 = arith.constant 0.000000e+00 : f32
    %41 = vector.broadcast %cst_23 : f32 to vector<2x1xf32>
    %42 = vector.broadcast %cst_24 : f32 to vector<2x1xf32>
    %43 = arith.select %40, %41, %42 : vector<2x1xi1>, vector<2x1xf32>
    %44 = tpu.iota {dimensions = array<i32: 1>} : vector<2x128xi32>
    %c0_i32 = arith.constant 0 : i32
    %45 = vector.broadcast %c0_i32 : i32 to vector<2x128xi32>
    %46 = arith.cmpi eq, %44, %45 : vector<2x128xi32>
    %c1_i32 = arith.constant 1 : i32
    %47 = vector.broadcast %c1_i32 : i32 to vector<2x128xi32>
    %48 = arith.cmpi eq, %44, %47 : vector<2x128xi32>
    %c2_i32 = arith.constant 2 : i32
    %49 = vector.broadcast %c2_i32 : i32 to vector<2x128xi32>
    %50 = arith.cmpi eq, %44, %49 : vector<2x128xi32>
    %cst_25 = arith.constant 0.000000e+00 : f32
    %51 = vector.shape_cast %43 : vector<2x1xf32> to vector<2x1xf32>
    %52 = vector.broadcast %51 : vector<2x1xf32> to vector<2x128xf32>
    %53 = vector.broadcast %cst_25 : f32 to vector<2x128xf32>
    %54 = arith.select %50, %52, %53 : vector<2x128xi1>, vector<2x128xf32>
    %55 = vector.shape_cast %38 : vector<2x1xf32> to vector<2x1xf32>
    %56 = vector.broadcast %55 : vector<2x1xf32> to vector<2x128xf32>
    %57 = arith.select %48, %56, %54 : vector<2x128xi1>, vector<2x128xf32>
    %58 = vector.shape_cast %24 : vector<2x1xf32> to vector<2x1xf32>
    %59 = vector.broadcast %58 : vector<2x1xf32> to vector<2x128xf32>
    %60 = arith.select %46, %59, %57 : vector<2x128xi1>, vector<2x128xf32>
    %c0_26 = arith.constant 0 : index
    %c0_27 = arith.constant 0 : index
    %61 = vector.load %arg8[%c0_26, %c0_27] : memref<2x128xf32, #tpu.memory_space<vmem>>, vector<2x128xf32>
    tpu.vector_store %arg8[%c0_26, %c0_27], %60 {strides = array<i32>} : memref<2x128xf32, #tpu.memory_space<vmem>>, vector<2x128xf32>,
    return
  }
  func.func @transform_0(%arg0: i32) -> (i32, i32) {
    %c0_i32 = arith.constant 0 : i32
    %c0_i32_0 = arith.constant 0 : i32
    return %arg0, %c0_i32 : i32, i32
  }
  func.func @transform_1(%arg0: i32) -> (i32, i32) {
    %c0_i32 = arith.constant 0 : i32
    %c0_i32_0 = arith.constant 0 : i32
    %c0_i32_1 = arith.constant 0 : i32
    return %c0_i32, %c0_i32_0 : i32, i32
  }
  func.func @transform_2(%arg0: i32) -> (i32, i32) {
    %c0_i32 = arith.constant 0 : i32
    %c0_i32_0 = arith.constant 0 : i32
    %c0_i32_1 = arith.constant 0 : i32
    return %c0_i32, %c0_i32_0 : i32, i32
  }
  func.func @transform_3(%arg0: i32) -> (i32, i32) {
    %c0_i32 = arith.constant 0 : i32
    %c0_i32_0 = arith.constant 0 : i32
    %c0_i32_1 = arith.constant 0 : i32
    return %c0_i32, %c0_i32_0 : i32, i32
  }
  func.func @transform_4(%arg0: i32) -> (i32, i32) {
    %c0_i32 = arith.constant 0 : i32
    %c0_i32_0 = arith.constant 0 : i32
    %c0_i32_1 = arith.constant 0 : i32
    return %c0_i32, %c0_i32_0 : i32, i32
  }
  func.func @transform_5(%arg0: i32) -> (i32, i32) {
    %c0_i32 = arith.constant 0 : i32
    %c0_i32_0 = arith.constant 0 : i32
    %c0_i32_1 = arith.constant 0 : i32
    return %c0_i32, %c0_i32_0 : i32, i32
  }
  func.func @transform_6(%arg0: i32) -> (i32, i32) {
    %c0_i32 = arith.constant 0 : i32
    %c0_i32_0 = arith.constant 0 : i32
    %c0_i32_1 = arith.constant 0 : i32
    return %c0_i32, %c0_i32_0 : i32, i32
  }
  func.func @transform_7(%arg0: i32) -> (i32, i32) {
    %c0_i32 = arith.constant 0 : i32
    %c0_i32_0 = arith.constant 0 : i32
    return %arg0, %c0_i32 : i32, i32
  }
}

</mosaic_0001>

<llo_original>
// kernel: tpu_custom_call.1
$region0: #{tpu_custom_call.1}
  #allocation0 [shape = 'u32[]', space=smem, size = 0x4, offset = 0x4, fixed_abs, tag = 'smem constant byte address 0x4 - core index']
  #allocation1 [shape = 'u32[144,128]{1,0:T(1,128)}', space=vmem, size = 0x12000, scoped, tag = 'internal scratch']
  #allocation2 [shape = 'f32[1,1]{1,0:T(1,128)S(1)}', space=vmem, size = 0x200, scoped, tag = 'scoped memory for tpu_custom_call.1']
  %s0 = inlined_call_operand.hbm [shape: f32[2,2048], index: 0, kind: input, shape index: {}]
  %s1 = inlined_call_operand.hbm [shape: bf16[2048,512], index: 1, kind: input, shape index: {}]
  %s2 = inlined_call_operand.hbm [shape: f32[1,512], index: 2, kind: input, shape index: {}]
  %s3 = inlined_call_operand.hbm [shape: bf16[512,128], index: 3, kind: input, shape index: {}]
  %s4 = inlined_call_operand.hbm [shape: f32[1,128], index: 4, kind: input, shape index: {}]
  %s5 = inlined_call_operand.hbm [shape: f32[1,128], index: 5, kind: input, shape index: {}]
  %s6 = inlined_call_operand.<no memory space> [shape: f32[1,1], index: 6, kind: input, shape index: {}]
  %s7 = inlined_call_operand.hbm [shape: f32[2,128], index: 7, kind: output, shape index: {}]
  %s8 = sld [smem:[#allocation0]]
  $region62: #{tpu_custom_call.1} parent=0
    _
  %s10 = ssub.s32 1, %s8
  %s11 = scalar_select 0, %s10, %s8
  %v12 = vstv %s6
  %13 = vst [vmem:[#allocation2] sm:$0x1] %v12
  $region1: #{tpu_custom_call.1} parent=0
    #allocation3 [shape = 'u8[16384]{0}', space=vmem, size = 0x4000, scoped, tag = 'input window, operand 0, single buffered']
    #allocation4 [shape = 's32[1]{0}', space=sflag, size = 0x4, scoped, tag = 'scoped memory for tpu_custom_call.1']
    #allocation5 [shape = 's32[1]{0}', space=sflag, size = 0x4, scoped, tag = 'scoped memory for tpu_custom_call.1']
    #allocation6 [shape = 'u8[2097152]{0}', space=vmem, size = 0x200000, scoped, tag = 'input window, operand 1, single buffered']
    #allocation7 [shape = 's32[1]{0}', space=sflag, size = 0x4, scoped, tag = 'scoped memory for tpu_custom_call.1']
    #allocation8 [shape = 'u8[2048]{0}', space=vmem, size = 0x800, scoped, tag = 'input window, operand 2, single buffered']
    #allocation9 [shape = 'u8[131072]{0}', space=vmem, size = 0x20000, scoped, tag = 'input window, operand 3, single buffered']
    #allocation10 [shape = 's32[1]{0}', space=sflag, size = 0x4, scoped, tag = 'scoped memory for tpu_custom_call.1']
    #allocation11 [shape = 'u8[512]{0}', space=vmem, size = 0x400, scoped, tag = 'input window, operand 4, single buffered']
    #allocation12 [shape = 'u8[512]{0}', space=vmem, size = 0x400, scoped, tag = 'input window, operand 5, single buffered']
    #allocation13 [shape = 's32[1]{0}', space=sflag, size = 0x4, scoped, tag = 'scoped memory for tpu_custom_call.1']
    #allocation14 [shape = 'u8[1024]{0}', space=vmem, size = 0x400, scoped, tag = 'output window, operand 0, single buffered']
    %14 = vsyncpa [#allocation4], 0
    %15 = vsyncpa [#allocation7], 0
    %16 = vsyncpa [#allocation10], 0
    %17 = vsyncpa [#allocation13], 0
    %18 = vsyncpa [#allocation5], 0
    // Predicated region
    $region2: #{tpu_custom_call.1} parent=1 // pred_check
      _
    $region3: #{tpu_custom_call.1} parent=1 // pred_check_branch
      %20 = sbr.rel (0) target = $region5
    $region4: #{tpu_custom_call.1} parent=1 // pred_region
      %s22 = ssub.s32 512, 512
      %23 = vsyncadd [#allocation4], %s22
      %s25 = sshll.u32 [#allocation3], 4
      %s26 = int_to_ptr.vmem [resolvable:$true] %s25
      %28 = dma.hbm_to_vmem [thread:$0]  %s0, 512, %s26, [#allocation4]
    $region5: #{tpu_custom_call.1} parent=1 // pred_fallthru
      _
    // Predicated region
    $region6: #{tpu_custom_call.1} parent=1 // pred_check
      _
    $region7: #{tpu_custom_call.1} parent=1 // pred_check_branch
      %30 = sbr.rel (0) target = $region9
    $region8: #{tpu_custom_call.1} parent=1 // pred_region
      %s32 = ssub.s32 65536, 65536
      %33 = vsyncadd [#allocation7], %s32
      %s34 = sshll.u32 [#allocation6], 4
      %s35 = int_to_ptr.vmem [resolvable:$true] %s34
      %40 = dma.hbm_to_vmem [thread:$0]  %s1, 65536, %s35, [#allocation7], 256, 256, 16
    $region9: #{tpu_custom_call.1} parent=1 // pred_fallthru
      _
    // Predicated region
    $region10: #{tpu_custom_call.1} parent=1 // pred_check
      _
    $region11: #{tpu_custom_call.1} parent=1 // pred_check_branch
      %42 = sbr.rel (0) target = $region13
    $region12: #{tpu_custom_call.1} parent=1 // pred_region
      %s44 = ssub.s32 64, 64
      %45 = vsyncadd [#allocation7], %s44
      %s47 = sshll.u32 [#allocation8], 4
      %s48 = int_to_ptr.vmem [resolvable:$true] %s47
      %50 = dma.hbm_to_vmem [thread:$0]  %s2, 64, %s48, [#allocation7]
    $region13: #{tpu_custom_call.1} parent=1 // pred_fallthru
      _
    // Predicated region
    $region14: #{tpu_custom_call.1} parent=1 // pred_check
      _
    $region15: #{tpu_custom_call.1} parent=1 // pred_check_branch
      %52 = sbr.rel (0) target = $region17
    $region16: #{tpu_custom_call.1} parent=1 // pred_region
      %s54 = ssub.s32 4096, 4096
      %55 = vsyncadd [#allocation10], %s54
      %s56 = sshll.u32 [#allocation9], 4
      %s57 = int_to_ptr.vmem [resolvable:$true] %s56
      %62 = dma.hbm_to_vmem [thread:$0]  %s3, 4096, %s57, [#allocation10], 64, 64, 4
    $region17: #{tpu_custom_call.1} parent=1 // pred_fallthru
      _
    // Predicated region
    $region18: #{tpu_custom_call.1} parent=1 // pred_check
      _
    $region19: #{tpu_custom_call.1} parent=1 // pred_check_branch
      %64 = sbr.rel (0) target = $region21
    $region20: #{tpu_custom_call.1} parent=1 // pred_region
      %s66 = ssub.s32 16, 16
      %67 = vsyncadd [#allocation10], %s66
      %s69 = sshll.u32 [#allocation11], 4
      %s70 = int_to_ptr.vmem [resolvable:$true] %s69
      %72 = dma.hbm_to_vmem [thread:$0]  %s4, 16, %s70, [#allocation10]
    $region21: #{tpu_custom_call.1} parent=1 // pred_fallthru
      _
    // Predicated region
    $region22: #{tpu_custom_call.1} parent=1 // pred_check
      _
    $region23: #{tpu_custom_call.1} parent=1 // pred_check_branch
      %74 = sbr.rel (0) target = $region25
    $region24: #{tpu_custom_call.1} parent=1 // pred_region
      %s76 = ssub.s32 16, 16
      %77 = vsyncadd [#allocation13], %s76
      %s79 = sshll.u32 [#allocation12], 4
      %s80 = int_to_ptr.vmem [resolvable:$true] %s79
      %82 = dma.hbm_to_vmem [thread:$0]  %s5, 16, %s80, [#allocation13]
    $region25: #{tpu_custom_call.1} parent=1 // pred_fallthru
      _
    // Predicated region
    $region26: #{tpu_custom_call.1} parent=1 // pred_check
      _
    $region27: #{tpu_custom_call.1} parent=1 // pred_check_branch
      %84 = sbr.rel (0) target = $region29
    $region28: #{tpu_custom_call.1} parent=1 // pred_region
      _
    $region29: #{tpu_custom_call.1} parent=1 // pred_fallthru
      _
    // Predicated region
    $region30: #{tpu_custom_call.1} parent=1 // pred_check
      _
    $region31: #{tpu_custom_call.1} parent=1 // pred_check_branch
      %86 = sbr.rel (0) target = $region33
    $region32: #{tpu_custom_call.1} parent=1 // pred_region
      %87 = dma.done [#allocation4], 512
    $region33: #{tpu_custom_call.1} parent=1 // pred_fallthru
      _
    // Predicated region
    $region34: #{tpu_custom_call.1} parent=1 // pred_check
      _
    $region35: #{tpu_custom_call.1} parent=1 // pred_check_branch
      %89 = sbr.rel (0) target = $region37
    $region36: #{tpu_custom_call.1} parent=1 // pred_region
      %90 = dma.done [#allocation7], 65536
    $region37: #{tpu_custom_call.1} parent=1 // pred_fallthru
      _
    // Predicated region
    $region38: #{tpu_custom_call.1} parent=1 // pred_check
      _
    $region39: #{tpu_custom_call.1} parent=1 // pred_check_branch
      %92 = sbr.rel (0) target = $region41
    $region40: #{tpu_custom_call.1} parent=1 // pred_region
      %93 = dma.done [#allocation7], 64
    $region41: #{tpu_custom_call.1} parent=1 // pred_fallthru
      _
    // Predicated region
    $region42: #{tpu_custom_call.1} parent=1 // pred_check
      _
    $region43: #{tpu_custom_call.1} parent=1 // pred_check_branch
      %95 = sbr.rel (0) target = $region45
    $region44: #{tpu_custom_call.1} parent=1 // pred_region
      %96 = dma.done [#allocation10], 4096
    $region45: #{tpu_custom_call.1} parent=1 // pred_fallthru
      _
    // Predicated region
    $region46: #{tpu_custom_call.1} parent=1 // pred_check
      _
    $region47: #{tpu_custom_call.1} parent=1 // pred_check_branch
      %98 = sbr.rel (0) target = $region49
    $region48: #{tpu_custom_call.1} parent=1 // pred_region
      %99 = dma.done [#allocation10], 16
    $region49: #{tpu_custom_call.1} parent=1 // pred_fallthru
      _
    // Predicated region
    $region50: #{tpu_custom_call.1} parent=1 // pred_check
      _
    $region51: #{tpu_custom_call.1} parent=1 // pred_check_branch
      %101 = sbr.rel (0) target = $region53
    $region52: #{tpu_custom_call.1} parent=1 // pred_region
      %102 = dma.done [#allocation13], 16
    $region53: #{tpu_custom_call.1} parent=1 // pred_fallthru
      _
    %v104 = vld [vmem:[#allocation3] sm:$0xff]
    %v105 = vld [vmem:[#allocation3 + $0x8] sm:$0xff]
    %v106 = vld [vmem:[#allocation3 + $0x10] sm:$0xff]
    %v107 = vld [vmem:[#allocation3 + $0x18] sm:$0xff]
    %v112 = vcombine.high %v104, %v104
    %v114 = vunpack.c.l.s4 1983009808
    %v115 = vunpack.c.0.s8 %v114
    %v116 = vlaneseq
    %v117 = vshrl.u32 %v116, 7
    %v118 = vsub.s32 %v115, %v117
    %v119 = vrot.slane %v104, %v118
    %v121 = vunpack.c.l.s4 1983009808
    %v122 = vunpack.c.0.s8 %v121
    %v123 = vlaneseq
    %v124 = vshrl.u32 %v123, 7
    %v125 = vsub.s32 %v122, %v124
    %v126 = vrot.slane %v112, %v125
    %v127 = vcombine.high %v119, %v119
    %v128 = vcombine.high %v126, %v126
    %v129 = vcombine.high %v105, %v105
    %v131 = vunpack.c.l.s4 1983009808
    %v132 = vunpack.c.0.s8 %v131
    %v133 = vlaneseq
    %v134 = vshrl.u32 %v133, 7
    %v135 = vsub.s32 %v132, %v134
    %v136 = vrot.slane %v105, %v135
    %v138 = vunpack.c.l.s4 1983009808
    %v139 = vunpack.c.0.s8 %v138
    %v140 = vlaneseq
    %v141 = vshrl.u32 %v140, 7
    %v142 = vsub.s32 %v139, %v141
    %v143 = vrot.slane %v129, %v142
    %v144 = vcombine.high %v136, %v136
    %v145 = vcombine.high %v143, %v143
    %v146 = vcombine.high %v106, %v106
    %v148 = vunpack.c.l.s4 1983009808
    %v149 = vunpack.c.0.s8 %v148
    %v150 = vlaneseq
    %v151 = vshrl.u32 %v150, 7
    %v152 = vsub.s32 %v149, %v151
    %v153 = vrot.slane %v106, %v152
    %v155 = vunpack.c.l.s4 1983009808
    %v156 = vunpack.c.0.s8 %v155
    %v157 = vlaneseq
    %v158 = vshrl.u32 %v157, 7
    %v159 = vsub.s32 %v156, %v158
    %v160 = vrot.slane %v146, %v159
    %v161 = vcombine.high %v153, %v153
    %v162 = vcombine.high %v160, %v160
    %v163 = vcombine.high %v107, %v107
    %v165 = vunpack.c.l.s4 1983009808
    %v166 = vunpack.c.0.s8 %v165
    %v167 = vlaneseq
    %v168 = vshrl.u32 %v167, 7
    %v169 = vsub.s32 %v166, %v168
    %v170 = vrot.slane %v107, %v169
    %v172 = vunpack.c.l.s4 1983009808
    %v173 = vunpack.c.0.s8 %v172
    %v174 = vlaneseq
    %v175 = vshrl.u32 %v174, 7
    %v176 = vsub.s32 %v173, %v175
    %v177 = vrot.slane %v163, %v176
    %v178 = vcombine.high %v170, %v170
    %v179 = vcombine.high %v177, %v177
    %v196 = vpack.c.bf16 %v119, %v119
    %v197 = vpack.c.bf16 %v127, %v127
    %v198 = vpack.c.bf16 %v126, %v126
    %v199 = vpack.c.bf16 %v128, %v128
    %v200 = vpack.c.bf16 %v136, %v136
    %v201 = vpack.c.bf16 %v144, %v144
    %v202 = vpack.c.bf16 %v143, %v143
    %v203 = vpack.c.bf16 %v145, %v145
    %v204 = vpack.c.bf16 %v153, %v153
    %v205 = vpack.c.bf16 %v161, %v161
    %v206 = vpack.c.bf16 %v160, %v160
    %v207 = vpack.c.bf16 %v162, %v162
    %v208 = vpack.c.bf16 %v170, %v170
    %v209 = vpack.c.bf16 %v178, %v178
    %v210 = vpack.c.bf16 %v177, %v177
    %v211 = vpack.c.bf16 %v179, %v179
    %v212 = vld [vmem:[#allocation6] sm:$0xff]
    %v213 = vld [vmem:[#allocation6 + $0x8] sm:$0xff]
    %v214 = vld [vmem:[#allocation6 + $0x10] sm:$0xff]
    %v215 = vld [vmem:[#allocation6 + $0x18] sm:$0xff]
    %v216 = vld [vmem:[#allocation6 + $0x20] sm:$0xff]
    %v217 = vld [vmem:[#allocation6 + $0x28] sm:$0xff]
    %v218 = vld [vmem:[#allocation6 + $0x30] sm:$0xff]
    %v219 = vld [vmem:[#allocation6 + $0x38] sm:$0xff]
    %v220 = vld [vmem:[#allocation6 + $0x40] sm:$0xff]
    %v221 = vld [vmem:[#allocation6 + $0x48] sm:$0xff]
    %v222 = vld [vmem:[#allocation6 + $0x50] sm:$0xff]
    %v223 = vld [vmem:[#allocation6 + $0x58] sm:$0xff]
    %v224 = vld [vmem:[#allocation6 + $0x60] sm:$0xff]
    %v225 = vld [vmem:[#allocation6 + $0x68] sm:$0xff]
    %v226 = vld [vmem:[#allocation6 + $0x70] sm:$0xff]
    %v227 = vld [vmem:[#allocation6 + $0x78] sm:$0xff]
    %v228 = vld [vmem:[#allocation6 + $0x80] sm:$0xff]
    %v229 = vld [vmem:[#allocation6 + $0x88] sm:$0xff]
    %v230 = vld [vmem:[#allocation6 + $0x90] sm:$0xff]
    %v231 = vld [vmem:[#allocation6 + $0x98] sm:$0xff]
    %v232 = vld [vmem:[#allocation6 + $0xa0] sm:$0xff]
    %v233 = vld [vmem:[#allocation6 + $0xa8] sm:$0xff]
    %v234 = vld [vmem:[#allocation6 + $0xb0] sm:$0xff]
    %v235 = vld [vmem:[#allocation6 + $0xb8] sm:$0xff]
    %v236 = vld [vmem:[#allocation6 + $0xc0] sm:$0xff]
    %v237 = vld [vmem:[#allocation6 + $0xc8] sm:$0xff]
    %v238 = vld [vmem:[#allocation6 + $0xd0] sm:$0xff]
    %v239 = vld [vmem:[#allocation6 + $0xd8] sm:$0xff]
    %v240 = vld [vmem:[#allocation6 + $0xe0] sm:$0xff]
    %v241 = vld [vmem:[#allocation6 + $0xe8] sm:$0xff]
    %v242 = vld [vmem:[#allocation6 + $0xf0] sm:$0xff]
    %v243 = vld [vmem:[#allocation6 + $0xf8] sm:$0xff]
    %v244 = vld [vmem:[#allocation6 + $0x100] sm:$0xff]
    %v245 = vld [vmem:[#allocation6 + $0x108] sm:$0xff]
    %v246 = vld [vmem:[#allocation6 + $0x110] sm:$0xff]
    %v247 = vld [vmem:[#allocation6 + $0x118] sm:$0xff]
    %v248 = vld [vmem:[#allocation6 + $0x120] sm:$0xff]
    %v249 = vld [vmem:[#allocation6 + $0x128] sm:$0xff]
    %v250 = vld [vmem:[#allocation6 + $0x130] sm:$0xff]
    %v251 = vld [vmem:[#allocation6 + $0x138] sm:$0xff]
    %v252 = vld [vmem:[#allocation6 + $0x140] sm:$0xff]
    %v253 = vld [vmem:[#allocation6 + $0x148] sm:$0xff]
    %v254 = vld [vmem:[#allocation6 + $0x150] sm:$0xff]
    %v255 = vld [vmem:[#allocation6 + $0x158] sm:$0xff]
    %v256 = vld [vmem:[#allocation6 + $0x160] sm:$0xff]
    %v257 = vld [vmem:[#allocation6 + $0x168] sm:$0xff]
    %v258 = vld [vmem:[#allocation6 + $0x170] sm:$0xff]
    %v259 = vld [vmem:[#allocation6 + $0x178] sm:$0xff]
    %v260 = vld [vmem:[#allocation6 + $0x180] sm:$0xff]
    %v261 = vld [vmem:[#allocation6 + $0x188] sm:$0xff]
    %v262 = vld [vmem:[#allocation6 + $0x190] sm:$0xff]
    %v263 = vld [vmem:[#allocation6 + $0x198] sm:$0xff]
    %v264 = vld [vmem:[#allocation6 + $0x1a0] sm:$0xff]
    %v265 = vld [vmem:[#allocation6 + $0x1a8] sm:$0xff]
    %v266 = vld [vmem:[#allocation6 + $0x1b0] sm:$0xff]
    %v267 = vld [vmem:[#allocation6 + $0x1b8] sm:$0xff]
    %v268 = vld [vmem:[#allocation6 + $0x1c0] sm:$0xff]
    %v269 = vld [vmem:[#allocation6 + $0x1c8] sm:$0xff]
    %v270 = vld [vmem:[#allocation6 + $0x1d0] sm:$0xff]
    %v271 = vld [vmem:[#allocation6 + $0x1d8] sm:$0xff]
    %v272 = vld [vmem:[#allocation6 + $0x1e0] sm:$0xff]
    %v273 = vld [vmem:[#allocation6 + $0x1e8] sm:$0xff]
    %v274 = vld [vmem:[#allocation6 + $0x1f0] sm:$0xff]
    %v275 = vld [vmem:[#allocation6 + $0x1f8] sm:$0xff]
    %v276 = vld [vmem:[#allocation6 + $0x200] sm:$0xff]
    %v277 = vld [vmem:[#allocation6 + $0x208] sm:$0xff]
    %v278 = vld [vmem:[#allocation6 + $0x210] sm:$0xff]
    %v279 = vld [vmem:[#allocation6 + $0x218] sm:$0xff]
    %v280 = vld [vmem:[#allocation6 + $0x220] sm:$0xff]
    %v281 = vld [vmem:[#allocation6 + $0x228] sm:$0xff]
    %v282 = vld [vmem:[#allocation6 + $0x230] sm:$0xff]
    %v283 = vld [vmem:[#allocation6 + $0x238] sm:$0xff]
    %v284 = vld [vmem:[#allocation6 + $0x240] sm:$0xff]
    %v285 = vld [vmem:[#allocation6 + $0x248] sm:$0xff]
    %v286 = vld [vmem:[#allocation6 + $0x250] sm:$0xff]
    %v287 = vld [vmem:[#allocation6 + $0x258] sm:$0xff]
    %v288 = vld [vmem:[#allocation6 + $0x260] sm:$0xff]
    %v289 = vld [vmem:[#allocation6 + $0x268] sm:$0xff]
    %v290 = vld [vmem:[#allocation6 + $0x270] sm:$0xff]
    %v291 = vld [vmem:[#allocation6 + $0x278] sm:$0xff]
    %v292 = vld [vmem:[#allocation6 + $0x280] sm:$0xff]
    %v293 = vld [vmem:[#allocation6 + $0x288] sm:$0xff]
    %v294 = vld [vmem:[#allocation6 + $0x290] sm:$0xff]
    %v295 = vld [vmem:[#allocation6 + $0x298] sm:$0xff]
    %v296 = vld [vmem:[#allocation6 + $0x2a0] sm:$0xff]
    %v297 = vld [vmem:[#allocation6 + $0x2a8] sm:$0xff]
    %v298 = vld [vmem:[#allocation6 + $0x2b0] sm:$0xff]
    %v299 = vld [vmem:[#allocation6 + $0x2b8] sm:$0xff]
    %v300 = vld [vmem:[#allocation6 + $0x2c0] sm:$0xff]
    %v301 = vld [vmem:[#allocation6 + $0x2c8] sm:$0xff]
    %v302 = vld [vmem:[#allocation6 + $0x2d0] sm:$0xff]
    %v303 = vld [vmem:[#allocation6 + $0x2d8] sm:$0xff]
    %v304 = vld [vmem:[#allocation6 + $0x2e0] sm:$0xff]
    %v305 = vld [vmem:[#allocation6 + $0x2e8] sm:$0xff]
    %v306 = vld [vmem:[#allocation6 + $0x2f0] sm:$0xff]
    %v307 = vld [vmem:[#allocation6 + $0x2f8] sm:$0xff]
    %v308 = vld [vmem:[#allocation6 + $0x300] sm:$0xff]
    %v309 = vld [vmem:[#allocation6 + $0x308] sm:$0xff]
    %v310 = vld [vmem:[#allocation6 + $0x310] sm:$0xff]
    %v311 = vld [vmem:[#allocation6 + $0x318] sm:$0xff]
    %v312 = vld [vmem:[#allocation6 + $0x320] sm:$0xff]
    %v313 = vld [vmem:[#allocation6 + $0x328] sm:$0xff]
    %v314 = vld [vmem:[#allocation6 + $0x330] sm:$0xff]
    %v315 = vld [vmem:[#allocation6 + $0x338] sm:$0xff]
    %v316 = vld [vmem:[#allocation6 + $0x340] sm:$0xff]
    %v317 = vld [vmem:[#allocation6 + $0x348] sm:$0xff]
    %v318 = vld [vmem:[#allocation6 + $0x350] sm:$0xff]
    %v319 = vld [vmem:[#allocation6 + $0x358] sm:$0xff]
    %v320 = vld [vmem:[#allocation6 + $0x360] sm:$0xff]
    %v321 = vld [vmem:[#allocation6 + $0x368] sm:$0xff]
    %v322 = vld [vmem:[#allocation6 + $0x370] sm:$0xff]
    %v323 = vld [vmem:[#allocation6 + $0x378] sm:$0xff]
    %v324 = vld [vmem:[#allocation6 + $0x380] sm:$0xff]
    %v325 = vld [vmem:[#allocation6 + $0x388] sm:$0xff]
    %v326 = vld [vmem:[#allocation6 + $0x390] sm:$0xff]
    %v327 = vld [vmem:[#allocation6 + $0x398] sm:$0xff]
    %v328 = vld [vmem:[#allocation6 + $0x3a0] sm:$0xff]
    %v329 = vld [vmem:[#allocation6 + $0x3a8] sm:$0xff]
    %v330 = vld [vmem:[#allocation6 + $0x3b0] sm:$0xff]
    %v331 = vld [vmem:[#allocation6 + $0x3b8] sm:$0xff]
    %v332 = vld [vmem:[#allocation6 + $0x3c0] sm:$0xff]
    %v333 = vld [vmem:[#allocation6 + $0x3c8] sm:$0xff]
    %v334 = vld [vmem:[#allocation6 + $0x3d0] sm:$0xff]
    %v335 = vld [vmem:[#allocation6 + $0x3d8] sm:$0xff]
    %v336 = vld [vmem:[#allocation6 + $0x3e0] sm:$0xff]
    %v337 = vld [vmem:[#allocation6 + $0x3e8] sm:$0xff]
    %v338 = vld [vmem:[#allocation6 + $0x3f0] sm:$0xff]
    %v339 = vld [vmem:[#allocation6 + $0x3f8] sm:$0xff]
    %v340 = vld [vmem:[#allocation6 + $0x400] sm:$0xff]
    %v341 = vld [vmem:[#allocation6 + $0x408] sm:$0xff]
    %v342 = vld [vmem:[#allocation6 + $0x410] sm:$0xff]
    %v343 = vld [vmem:[#allocation6 + $0x418] sm:$0xff]
    %v344 = vld [vmem:[#allocation6 + $0x420] sm:$0xff]
    %v345 = vld [vmem:[#allocation6 + $0x428] sm:$0xff]
    %v346 = vld [vmem:[#allocation6 + $0x430] sm:$0xff]
    %v347 = vld [vmem:[#allocation6 + $0x438] sm:$0xff]
    %v348 = vld [vmem:[#allocation6 + $0x440] sm:$0xff]
    %v349 = vld [vmem:[#allocation6 + $0x448] sm:$0xff]
    %v350 = vld [vmem:[#allocation6 + $0x450] sm:$0xff]
    %v351 = vld [vmem:[#allocation6 + $0x458] sm:$0xff]
    %v352 = vld [vmem:[#allocation6 + $0x460] sm:$0xff]
    %v353 = vld [vmem:[#allocation6 + $0x468] sm:$0xff]
    %v354 = vld [vmem:[#allocation6 + $0x470] sm:$0xff]
    %v355 = vld [vmem:[#allocation6 + $0x478] sm:$0xff]
    %v356 = vld [vmem:[#allocation6 + $0x480] sm:$0xff]
    %v357 = vld [vmem:[#allocation6 + $0x488] sm:$0xff]
    %v358 = vld [vmem:[#allocation6 + $0x490] sm:$0xff]
    %v359 = vld [vmem:[#allocation6 + $0x498] sm:$0xff]
    %v360 = vld [vmem:[#allocation6 + $0x4a0] sm:$0xff]
    %v361 = vld [vmem:[#allocation6 + $0x4a8] sm:$0xff]
    %v362 = vld [vmem:[#allocation6 + $0x4b0] sm:$0xff]
    %v363 = vld [vmem:[#allocation6 + $0x4b8] sm:$0xff]
    %v364 = vld [vmem:[#allocation6 + $0x4c0] sm:$0xff]
    %v365 = vld [vmem:[#allocation6 + $0x4c8] sm:$0xff]
    %v366 = vld [vmem:[#allocation6 + $0x4d0] sm:$0xff]
    %v367 = vld [vmem:[#allocation6 + $0x4d8] sm:$0xff]
    %v368 = vld [vmem:[#allocation6 + $0x4e0] sm:$0xff]
    %v369 = vld [vmem:[#allocation6 + $0x4e8] sm:$0xff]
    %v370 = vld [vmem:[#allocation6 + $0x4f0] sm:$0xff]
    %v371 = vld [vmem:[#allocation6 + $0x4f8] sm:$0xff]
    %v372 = vld [vmem:[#allocation6 + $0x500] sm:$0xff]
    %v373 = vld [vmem:[#allocation6 + $0x508] sm:$0xff]
    %v374 = vld [vmem:[#allocation6 + $0x510] sm:$0xff]
    %v375 = vld [vmem:[#allocation6 + $0x518] sm:$0xff]
    %v376 = vld [vmem:[#allocation6 + $0x520] sm:$0xff]
    %v377 = vld [vmem:[#allocation6 + $0x528] sm:$0xff]
    %v378 = vld [vmem:[#allocation6 + $0x530] sm:$0xff]
    %v379 = vld [vmem:[#allocation6 + $0x538] sm:$0xff]
    %v380 = vld [vmem:[#allocation6 + $0x540] sm:$0xff]
    %v381 = vld [vmem:[#allocation6 + $0x548] sm:$0xff]
    %v382 = vld [vmem:[#allocation6 + $0x550] sm:$0xff]
    %v383 = vld [vmem:[#allocation6 + $0x558] sm:$0xff]
    %v384 = vld [vmem:[#allocation6 + $0x560] sm:$0xff]
    %v385 = vld [vmem:[#allocation6 + $0x568] sm:$0xff]
    %v386 = vld [vmem:[#allocation6 + $0x570] sm:$0xff]
    %v387 = vld [vmem:[#allocation6 + $0x578] sm:$0xff]
    %v388 = vld [vmem:[#allocation6 + $0x580] sm:$0xff]
    %v389 = vld [vmem:[#allocation6 + $0x588] sm:$0xff]
    %v390 = vld [vmem:[#allocation6 + $0x590] sm:$0xff]
    %v391 = vld [vmem:[#allocation6 + $0x598] sm:$0xff]
    %v392 = vld [vmem:[#allocation6 + $0x5a0] sm:$0xff]
    %v393 = vld [vmem:[#allocation6 + $0x5a8] sm:$0xff]
    %v394 = vld [vmem:[#allocation6 + $0x5b0] sm:$0xff]
    %v395 = vld [vmem:[#allocation6 + $0x5b8] sm:$0xff]
    %v396 = vld [vmem:[#allocation6 + $0x5c0] sm:$0xff]
    %v397 = vld [vmem:[#allocation6 + $0x5c8] sm:$0xff]
    %v398 = vld [vmem:[#allocation6 + $0x5d0] sm:$0xff]
    %v399 = vld [vmem:[#allocation6 + $0x5d8] sm:$0xff]
    %v400 = vld [vmem:[#allocation6 + $0x5e0] sm:$0xff]
    %v401 = vld [vmem:[#allocation6 + $0x5e8] sm:$0xff]
    %v402 = vld [vmem:[#allocation6 + $0x5f0] sm:$0xff]
    %v403 = vld [vmem:[#allocation6 + $0x5f8] sm:$0xff]
    %v404 = vld [vmem:[#allocation6 + $0x600] sm:$0xff]
    %v405 = vld [vmem:[#allocation6 + $0x608] sm:$0xff]
    %v406 = vld [vmem:[#allocation6 + $0x610] sm:$0xff]
    %v407 = vld [vmem:[#allocation6 + $0x618] sm:$0xff]
    %v408 = vld [vmem:[#allocation6 + $0x620] sm:$0xff]
    %v409 = vld [vmem:[#allocation6 + $0x628] sm:$0xff]
    %v410 = vld [vmem:[#allocation6 + $0x630] sm:$0xff]
    %v411 = vld [vmem:[#allocation6 + $0x638] sm:$0xff]
    %v412 = vld [vmem:[#allocation6 + $0x640] sm:$0xff]
    %v413 = vld [vmem:[#allocation6 + $0x648] sm:$0xff]
    %v414 = vld [vmem:[#allocation6 + $0x650] sm:$0xff]
    %v415 = vld [vmem:[#allocation6 + $0x658] sm:$0xff]
    %v416 = vld [vmem:[#allocation6 + $0x660] sm:$0xff]
    %v417 = vld [vmem:[#allocation6 + $0x668] sm:$0xff]
    %v418 = vld [vmem:[#allocation6 + $0x670] sm:$0xff]
    %v419 = vld [vmem:[#allocation6 + $0x678] sm:$0xff]
    %v420 = vld [vmem:[#allocation6 + $0x680] sm:$0xff]
    %v421 = vld [vmem:[#allocation6 + $0x688] sm:$0xff]
    %v422 = vld [vmem:[#allocation6 + $0x690] sm:$0xff]
    %v423 = vld [vmem:[#allocation6 + $0x698] sm:$0xff]
    %v424 = vld [vmem:[#allocation6 + $0x6a0] sm:$0xff]
    %v425 = vld [vmem:[#allocation6 + $0x6a8] sm:$0xff]
    %v426 = vld [vmem:[#allocation6 + $0x6b0] sm:$0xff]
    %v427 = vld [vmem:[#allocation6 + $0x6b8] sm:$0xff]
    %v428 = vld [vmem:[#allocation6 + $0x6c0] sm:$0xff]
    %v429 = vld [vmem:[#allocation6 + $0x6c8] sm:$0xff]
    %v430 = vld [vmem:[#allocation6 + $0x6d0] sm:$0xff]
    %v431 = vld [vmem:[#allocation6 + $0x6d8] sm:$0xff]
    %v432 = vld [vmem:[#allocation6 + $0x6e0] sm:$0xff]
    %v433 = vld [vmem:[#allocation6 + $0x6e8] sm:$0xff]
    %v434 = vld [vmem:[#allocation6 + $0x6f0] sm:$0xff]
    %v435 = vld [vmem:[#allocation6 + $0x6f8] sm:$0xff]
    %v436 = vld [vmem:[#allocation6 + $0x700] sm:$0xff]
    %v437 = vld [vmem:[#allocation6 + $0x708] sm:$0xff]
    %v438 = vld [vmem:[#allocation6 + $0x710] sm:$0xff]
    %v439 = vld [vmem:[#allocation6 + $0x718] sm:$0xff]
    %v440 = vld [vmem:[#allocation6 + $0x720] sm:$0xff]
    %v441 = vld [vmem:[#allocation6 + $0x728] sm:$0xff]
    %v442 = vld [vmem:[#allocation6 + $0x730] sm:$0xff]
    %v443 = vld [vmem:[#allocation6 + $0x738] sm:$0xff]
    %v444 = vld [vmem:[#allocation6 + $0x740] sm:$0xff]
    %v445 = vld [vmem:[#allocation6 + $0x748] sm:$0xff]
    %v446 = vld [vmem:[#allocation6 + $0x750] sm:$0xff]
    %v447 = vld [vmem:[#allocation6 + $0x758] sm:$0xff]
    %v448 = vld [vmem:[#allocation6 + $0x760] sm:$0xff]
    %v449 = vld [vmem:[#allocation6 + $0x768] sm:$0xff]
    %v450 = vld [vmem:[#allocation6 + $0x770] sm:$0xff]
    %v451 = vld [vmem:[#allocation6 + $0x778] sm:$0xff]
    %v452 = vld [vmem:[#allocation6 + $0x780] sm:$0xff]
    %v453 = vld [vmem:[#allocation6 + $0x788] sm:$0xff]
    %v454 = vld [vmem:[#allocation6 + $0x790] sm:$0xff]
    %v455 = vld [vmem:[#allocation6 + $0x798] sm:$0xff]
    %v456 = vld [vmem:[#allocation6 + $0x7a0] sm:$0xff]
    %v457 = vld [vmem:[#allocation6 + $0x7a8] sm:$0xff]
    %v458 = vld [vmem:[#allocation6 + $0x7b0] sm:$0xff]
    %v459 = vld [vmem:[#allocation6 + $0x7b8] sm:$0xff]
    %v460 = vld [vmem:[#allocation6 + $0x7c0] sm:$0xff]
    %v461 = vld [vmem:[#allocation6 + $0x7c8] sm:$0xff]
    %v462 = vld [vmem:[#allocation6 + $0x7d0] sm:$0xff]
    %v463 = vld [vmem:[#allocation6 + $0x7d8] sm:$0xff]
    %v464 = vld [vmem:[#allocation6 + $0x7e0] sm:$0xff]
    %v465 = vld [vmem:[#allocation6 + $0x7e8] sm:$0xff]
    %v466 = vld [vmem:[#allocation6 + $0x7f0] sm:$0xff]
    %v467 = vld [vmem:[#allocation6 + $0x7f8] sm:$0xff]
    %v468 = vld [vmem:[#allocation6 + $0x800] sm:$0xff]
    %v469 = vld [vmem:[#allocation6 + $0x808] sm:$0xff]
    %v470 = vld [vmem:[#allocation6 + $0x810] sm:$0xff]
    %v471 = vld [vmem:[#allocation6 + $0x818] sm:$0xff]
    %v472 = vld [vmem:[#allocation6 + $0x820] sm:$0xff]
    %v473 = vld [vmem:[#allocation6 + $0x828] sm:$0xff]
    %v474 = vld [vmem:[#allocation6 + $0x830] sm:$0xff]
    %v475 = vld [vmem:[#allocation6 + $0x838] sm:$0xff]
    %v476 = vld [vmem:[#allocation6 + $0x840] sm:$0xff]
    %v477 = vld [vmem:[#allocation6 + $0x848] sm:$0xff]
    %v478 = vld [vmem:[#allocation6 + $0x850] sm:$0xff]
    %v479 = vld [vmem:[#allocation6 + $0x858] sm:$0xff]
    %v480 = vld [vmem:[#allocation6 + $0x860] sm:$0xff]
    %v481 = vld [vmem:[#allocation6 + $0x868] sm:$0xff]
    %v482 = vld [vmem:[#allocation6 + $0x870] sm:$0xff]
    %v483 = vld [vmem:[#allocation6 + $0x878] sm:$0xff]
    %v484 = vld [vmem:[#allocation6 + $0x880] sm:$0xff]
    %v485 = vld [vmem:[#allocation6 + $0x888] sm:$0xff]
    %v486 = vld [vmem:[#allocation6 + $0x890] sm:$0xff]
    %v487 = vld [vmem:[#allocation6 + $0x898] sm:$0xff]
    %v488 = vld [vmem:[#allocation6 + $0x8a0] sm:$0xff]
    %v489 = vld [vmem:[#allocation6 + $0x8a8] sm:$0xff]
    %v490 = vld [vmem:[#allocation6 + $0x8b0] sm:$0xff]
    %v491 = vld [vmem:[#allocation6 + $0x8b8] sm:$0xff]
    %v492 = vld [vmem:[#allocation6 + $0x8c0] sm:$0xff]
    %v493 = vld [vmem:[#allocation6 + $0x8c8] sm:$0xff]
    %v494 = vld [vmem:[#allocation6 + $0x8d0] sm:$0xff]
    %v495 = vld [vmem:[#allocation6 + $0x8d8] sm:$0xff]
    %v496 = vld [vmem:[#allocation6 + $0x8e0] sm:$0xff]
    %v497 = vld [vmem:[#allocation6 + $0x8e8] sm:$0xff]
    %v498 = vld [vmem:[#allocation6 + $0x8f0] sm:$0xff]
    %v499 = vld [vmem:[#allocation6 + $0x8f8] sm:$0xff]
    %v500 = vld [vmem:[#allocation6 + $0x900] sm:$0xff]
    %v501 = vld [vmem:[#allocation6 + $0x908] sm:$0xff]
    %v502 = vld [vmem:[#allocation6 + $0x910] sm:$0xff]
    %v503 = vld [vmem:[#allocation6 + $0x918] sm:$0xff]
    %v504 = vld [vmem:[#allocation6 + $0x920] sm:$0xff]
    %v505 = vld [vmem:[#allocation6 + $0x928] sm:$0xff]
    %v506 = vld [vmem:[#allocation6 + $0x930] sm:$0xff]
    %v507 = vld [vmem:[#allocation6 + $0x938] sm:$0xff]
    %v508 = vld [vmem:[#allocation6 + $0x940] sm:$0xff]
    %v509 = vld [vmem:[#allocation6 + $0x948] sm:$0xff]
    %v510 = vld [vmem:[#allocation6 + $0x950] sm:$0xff]
    %v511 = vld [vmem:[#allocation6 + $0x958] sm:$0xff]
    %v512 = vld [vmem:[#allocation6 + $0x960] sm:$0xff]
    %v513 = vld [vmem:[#allocation6 + $0x968] sm:$0xff]
    %v514 = vld [vmem:[#allocation6 + $0x970] sm:$0xff]
    %v515 = vld [vmem:[#allocation6 + $0x978] sm:$0xff]
    %v516 = vld [vmem:[#allocation6 + $0x980] sm:$0xff]
    %v517 = vld [vmem:[#allocation6 + $0x988] sm:$0xff]
    %v518 = vld [vmem:[#allocation6 + $0x990] sm:$0xff]
    %v519 = vld [vmem:[#allocation6 + $0x998] sm:$0xff]
    %v520 = vld [vmem:[#allocation6 + $0x9a0] sm:$0xff]
    %v521 = vld [vmem:[#allocation6 + $0x9a8] sm:$0xff]
    %v522 = vld [vmem:[#allocation6 + $0x9b0] sm:$0xff]
    %v523 = vld [vmem:[#allocation6 + $0x9b8] sm:$0xff]
    %v524 = vld [vmem:[#allocation6 + $0x9c0] sm:$0xff]
    %v525 = vld [vmem:[#allocation6 + $0x9c8] sm:$0xff]
    %v526 = vld [vmem:[#allocation6 + $0x9d0] sm:$0xff]
    %v527 = vld [vmem:[#allocation6 + $0x9d8] sm:$0xff]
    %v528 = vld [vmem:[#allocation6 + $0x9e0] sm:$0xff]
    %v529 = vld [vmem:[#allocation6 + $0x9e8] sm:$0xff]
    %v530 = vld [vmem:[#allocation6 + $0x9f0] sm:$0xff]
    %v531 = vld [vmem:[#allocation6 + $0x9f8] sm:$0xff]
    %v532 = vld [vmem:[#allocation6 + $0xa00] sm:$0xff]
    %v533 = vld [vmem:[#allocation6 + $0xa08] sm:$0xff]
    %v534 = vld [vmem:[#allocation6 + $0xa10] sm:$0xff]
    %v535 = vld [vmem:[#allocation6 + $0xa18] sm:$0xff]
    %v536 = vld [vmem:[#allocation6 + $0xa20] sm:$0xff]
    %v537 = vld [vmem:[#allocation6 + $0xa28] sm:$0xff]
    %v538 = vld [vmem:[#allocation6 + $0xa30] sm:$0xff]
    %v539 = vld [vmem:[#allocation6 + $0xa38] sm:$0xff]
    %v540 = vld [vmem:[#allocation6 + $0xa40] sm:$0xff]
    %v541 = vld [vmem:[#allocation6 + $0xa48] sm:$0xff]
    %v542 = vld [vmem:[#allocation6 + $0xa50] sm:$0xff]
    %v543 = vld [vmem:[#allocation6 + $0xa58] sm:$0xff]
    %v544 = vld [vmem:[#allocation6 + $0xa60] sm:$0xff]
    %v545 = vld [vmem:[#allocation6 + $0xa68] sm:$0xff]
    %v546 = vld [vmem:[#allocation6 + $0xa70] sm:$0xff]
    %v547 = vld [vmem:[#allocation6 + $0xa78] sm:$0xff]
    %v548 = vld [vmem:[#allocation6 + $0xa80] sm:$0xff]
    %v549 = vld [vmem:[#allocation6 + $0xa88] sm:$0xff]
    %v550 = vld [vmem:[#allocation6 + $0xa90] sm:$0xff]
    %v551 = vld [vmem:[#allocation6 + $0xa98] sm:$0xff]
    %v552 = vld [vmem:[#allocation6 + $0xaa0] sm:$0xff]
    %v553 = vld [vmem:[#allocation6 + $0xaa8] sm:$0xff]
    %v554 = vld [vmem:[#allocation6 + $0xab0] sm:$0xff]
    %v555 = vld [vmem:[#allocation6 + $0xab8] sm:$0xff]
    %v556 = vld [vmem:[#allocation6 + $0xac0] sm:$0xff]
    %v557 = vld [vmem:[#allocation6 + $0xac8] sm:$0xff]
    %v558 = vld [vmem:[#allocation6 + $0xad0] sm:$0xff]
    %v559 = vld [vmem:[#allocation6 + $0xad8] sm:$0xff]
    %v560 = vld [vmem:[#allocation6 + $0xae0] sm:$0xff]
    %v561 = vld [vmem:[#allocation6 + $0xae8] sm:$0xff]
    %v562 = vld [vmem:[#allocation6 + $0xaf0] sm:$0xff]
    %v563 = vld [vmem:[#allocation6 + $0xaf8] sm:$0xff]
    %v564 = vld [vmem:[#allocation6 + $0xb00] sm:$0xff]
    %v565 = vld [vmem:[#allocation6 + $0xb08] sm:$0xff]
    %v566 = vld [vmem:[#allocation6 + $0xb10] sm:$0xff]
    %v567 = vld [vmem:[#allocation6 + $0xb18] sm:$0xff]
    %v568 = vld [vmem:[#allocation6 + $0xb20] sm:$0xff]
    %v569 = vld [vmem:[#allocation6 + $0xb28] sm:$0xff]
    %v570 = vld [vmem:[#allocation6 + $0xb30] sm:$0xff]
    %v571 = vld [vmem:[#allocation6 + $0xb38] sm:$0xff]
    %v572 = vld [vmem:[#allocation6 + $0xb40] sm:$0xff]
    %v573 = vld [vmem:[#allocation6 + $0xb48] sm:$0xff]
    %v574 = vld [vmem:[#allocation6 + $0xb50] sm:$0xff]
    %v575 = vld [vmem:[#allocation6 + $0xb58] sm:$0xff]
    %v576 = vld [vmem:[#allocation6 + $0xb60] sm:$0xff]
    %v577 = vld [vmem:[#allocation6 + $0xb68] sm:$0xff]
    %v578 = vld [vmem:[#allocation6 + $0xb70] sm:$0xff]
    %v579 = vld [vmem:[#allocation6 + $0xb78] sm:$0xff]
    %v580 = vld [vmem:[#allocation6 + $0xb80] sm:$0xff]
    %v581 = vld [vmem:[#allocation6 + $0xb88] sm:$0xff]
    %v582 = vld [vmem:[#allocation6 + $0xb90] sm:$0xff]
    %v583 = vld [vmem:[#allocation6 + $0xb98] sm:$0xff]
    %v584 = vld [vmem:[#allocation6 + $0xba0] sm:$0xff]
    %v585 = vld [vmem:[#allocation6 + $0xba8] sm:$0xff]
    %v586 = vld [vmem:[#allocation6 + $0xbb0] sm:$0xff]
    %v587 = vld [vmem:[#allocation6 + $0xbb8] sm:$0xff]
    %v588 = vld [vmem:[#allocation6 + $0xbc0] sm:$0xff]
    %v589 = vld [vmem:[#allocation6 + $0xbc8] sm:$0xff]
    %v590 = vld [vmem:[#allocation6 + $0xbd0] sm:$0xff]
    %v591 = vld [vmem:[#allocation6 + $0xbd8] sm:$0xff]
    %v592 = vld [vmem:[#allocation6 + $0xbe0] sm:$0xff]
    %v593 = vld [vmem:[#allocation6 + $0xbe8] sm:$0xff]
    %v594 = vld [vmem:[#allocation6 + $0xbf0] sm:$0xff]
    %v595 = vld [vmem:[#allocation6 + $0xbf8] sm:$0xff]
    %v596 = vld [vmem:[#allocation6 + $0xc00] sm:$0xff]
    %v597 = vld [vmem:[#allocation6 + $0xc08] sm:$0xff]
    %v598 = vld [vmem:[#allocation6 + $0xc10] sm:$0xff]
    %v599 = vld [vmem:[#allocation6 + $0xc18] sm:$0xff]
    %v600 = vld [vmem:[#allocation6 + $0xc20] sm:$0xff]
    %v601 = vld [vmem:[#allocation6 + $0xc28] sm:$0xff]
    %v602 = vld [vmem:[#allocation6 + $0xc30] sm:$0xff]
    %v603 = vld [vmem:[#allocation6 + $0xc38] sm:$0xff]
    %v604 = vld [vmem:[#allocation6 + $0xc40] sm:$0xff]
    %v605 = vld [vmem:[#allocation6 + $0xc48] sm:$0xff]
    %v606 = vld [vmem:[#allocation6 + $0xc50] sm:$0xff]
    %v607 = vld [vmem:[#allocation6 + $0xc58] sm:$0xff]
    %v608 = vld [vmem:[#allocation6 + $0xc60] sm:$0xff]
    %v609 = vld [vmem:[#allocation6 + $0xc68] sm:$0xff]
    %v610 = vld [vmem:[#allocation6 + $0xc70] sm:$0xff]
    %v611 = vld [vmem:[#allocation6 + $0xc78] sm:$0xff]
    %v612 = vld [vmem:[#allocation6 + $0xc80] sm:$0xff]
    %v613 = vld [vmem:[#allocation6 + $0xc88] sm:$0xff]
    %v614 = vld [vmem:[#allocation6 + $0xc90] sm:$0xff]
    %v615 = vld [vmem:[#allocation6 + $0xc98] sm:$0xff]
    %v616 = vld [vmem:[#allocation6 + $0xca0] sm:$0xff]
    %v617 = vld [vmem:[#allocation6 + $0xca8] sm:$0xff]
    %v618 = vld [vmem:[#allocation6 + $0xcb0] sm:$0xff]
    %v619 = vld [vmem:[#allocation6 + $0xcb8] sm:$0xff]
    %v620 = vld [vmem:[#allocation6 + $0xcc0] sm:$0xff]
    %v621 = vld [vmem:[#allocation6 + $0xcc8] sm:$0xff]
    %v622 = vld [vmem:[#allocation6 + $0xcd0] sm:$0xff]
    %v623 = vld [vmem:[#allocation6 + $0xcd8] sm:$0xff]
    %v624 = vld [vmem:[#allocation6 + $0xce0] sm:$0xff]
    %v625 = vld [vmem:[#allocation6 + $0xce8] sm:$0xff]
    %v626 = vld [vmem:[#allocation6 + $0xcf0] sm:$0xff]
    %v627 = vld [vmem:[#allocation6 + $0xcf8] sm:$0xff]
    %v628 = vld [vmem:[#allocation6 + $0xd00] sm:$0xff]
    %v629 = vld [vmem:[#allocation6 + $0xd08] sm:$0xff]
    %v630 = vld [vmem:[#allocation6 + $0xd10] sm:$0xff]
    %v631 = vld [vmem:[#allocation6 + $0xd18] sm:$0xff]
    %v632 = vld [vmem:[#allocation6 + $0xd20] sm:$0xff]
    %v633 = vld [vmem:[#allocation6 + $0xd28] sm:$0xff]
    %v634 = vld [vmem:[#allocation6 + $0xd30] sm:$0xff]
    %v635 = vld [vmem:[#allocation6 + $0xd38] sm:$0xff]
    %v636 = vld [vmem:[#allocation6 + $0xd40] sm:$0xff]
    %v637 = vld [vmem:[#allocation6 + $0xd48] sm:$0xff]
    %v638 = vld [vmem:[#allocation6 + $0xd50] sm:$0xff]
    %v639 = vld [vmem:[#allocation6 + $0xd58] sm:$0xff]
    %v640 = vld [vmem:[#allocation6 + $0xd60] sm:$0xff]
    %v641 = vld [vmem:[#allocation6 + $0xd68] sm:$0xff]
    %v642 = vld [vmem:[#allocation6 + $0xd70] sm:$0xff]
    %v643 = vld [vmem:[#allocation6 + $0xd78] sm:$0xff]
    %v644 = vld [vmem:[#allocation6 + $0xd80] sm:$0xff]
    %v645 = vld [vmem:[#allocation6 + $0xd88] sm:$0xff]
    %v646 = vld [vmem:[#allocation6 + $0xd90] sm:$0xff]
    %v647 = vld [vmem:[#allocation6 + $0xd98] sm:$0xff]
    %v648 = vld [vmem:[#allocation6 + $0xda0] sm:$0xff]
    %v649 = vld [vmem:[#allocation6 + $0xda8] sm:$0xff]
    %v650 = vld [vmem:[#allocation6 + $0xdb0] sm:$0xff]
    %v651 = vld [vmem:[#allocation6 + $0xdb8] sm:$0xff]
    %v652 = vld [vmem:[#allocation6 + $0xdc0] sm:$0xff]
    %v653 = vld [vmem:[#allocation6 + $0xdc8] sm:$0xff]
    %v654 = vld [vmem:[#allocation6 + $0xdd0] sm:$0xff]
    %v655 = vld [vmem:[#allocation6 + $0xdd8] sm:$0xff]
    %v656 = vld [vmem:[#allocation6 + $0xde0] sm:$0xff]
    %v657 = vld [vmem:[#allocation6 + $0xde8] sm:$0xff]
    %v658 = vld [vmem:[#allocation6 + $0xdf0] sm:$0xff]
    %v659 = vld [vmem:[#allocation6 + $0xdf8] sm:$0xff]
    %v660 = vld [vmem:[#allocation6 + $0xe00] sm:$0xff]
    %v661 = vld [vmem:[#allocation6 + $0xe08] sm:$0xff]
    %v662 = vld [vmem:[#allocation6 + $0xe10] sm:$0xff]
    %v663 = vld [vmem:[#allocation6 + $0xe18] sm:$0xff]
    %v664 = vld [vmem:[#allocation6 + $0xe20] sm:$0xff]
    %v665 = vld [vmem:[#allocation6 + $0xe28] sm:$0xff]
    %v666 = vld [vmem:[#allocation6 + $0xe30] sm:$0xff]
    %v667 = vld [vmem:[#allocation6 + $0xe38] sm:$0xff]
    %v668 = vld [vmem:[#allocation6 + $0xe40] sm:$0xff]
    %v669 = vld [vmem:[#allocation6 + $0xe48] sm:$0xff]
    %v670 = vld [vmem:[#allocation6 + $0xe50] sm:$0xff]
    %v671 = vld [vmem:[#allocation6 + $0xe58] sm:$0xff]
    %v672 = vld [vmem:[#allocation6 + $0xe60] sm:$0xff]
    %v673 = vld [vmem:[#allocation6 + $0xe68] sm:$0xff]
    %v674 = vld [vmem:[#allocation6 + $0xe70] sm:$0xff]
    %v675 = vld [vmem:[#allocation6 + $0xe78] sm:$0xff]
    %v676 = vld [vmem:[#allocation6 + $0xe80] sm:$0xff]
    %v677 = vld [vmem:[#allocation6 + $0xe88] sm:$0xff]
    %v678 = vld [vmem:[#allocation6 + $0xe90] sm:$0xff]
    %v679 = vld [vmem:[#allocation6 + $0xe98] sm:$0xff]
    %v680 = vld [vmem:[#allocation6 + $0xea0] sm:$0xff]
    %v681 = vld [vmem:[#allocation6 + $0xea8] sm:$0xff]
    %v682 = vld [vmem:[#allocation6 + $0xeb0] sm:$0xff]
    %v683 = vld [vmem:[#allocation6 + $0xeb8] sm:$0xff]
    %v684 = vld [vmem:[#allocation6 + $0xec0] sm:$0xff]
    %v685 = vld [vmem:[#allocation6 + $0xec8] sm:$0xff]
    %v686 = vld [vmem:[#allocation6 + $0xed0] sm:$0xff]
    %v687 = vld [vmem:[#allocation6 + $0xed8] sm:$0xff]
    %v688 = vld [vmem:[#allocation6 + $0xee0] sm:$0xff]
    %v689 = vld [vmem:[#allocation6 + $0xee8] sm:$0xff]
    %v690 = vld [vmem:[#allocation6 + $0xef0] sm:$0xff]
    %v691 = vld [vmem:[#allocation6 + $0xef8] sm:$0xff]
    %v692 = vld [vmem:[#allocation6 + $0xf00] sm:$0xff]
    %v693 = vld [vmem:[#allocation6 + $0xf08] sm:$0xff]
    %v694 = vld [vmem:[#allocation6 + $0xf10] sm:$0xff]
    %v695 = vld [vmem:[#allocation6 + $0xf18] sm:$0xff]
    %v696 = vld [vmem:[#allocation6 + $0xf20] sm:$0xff]
    %v697 = vld [vmem:[#allocation6 + $0xf28] sm:$0xff]
    %v698 = vld [vmem:[#allocation6 + $0xf30] sm:$0xff]
    %v699 = vld [vmem:[#allocation6 + $0xf38] sm:$0xff]
    %v700 = vld [vmem:[#allocation6 + $0xf40] sm:$0xff]
    %v701 = vld [vmem:[#allocation6 + $0xf48] sm:$0xff]
    %v702 = vld [vmem:[#allocation6 + $0xf50] sm:$0xff]
    %v703 = vld [vmem:[#allocation6 + $0xf58] sm:$0xff]
    %v704 = vld [vmem:[#allocation6 + $0xf60] sm:$0xff]
    %v705 = vld [vmem:[#allocation6 + $0xf68] sm:$0xff]
    %v706 = vld [vmem:[#allocation6 + $0xf70] sm:$0xff]
    %v707 = vld [vmem:[#allocation6 + $0xf78] sm:$0xff]
    %v708 = vld [vmem:[#allocation6 + $0xf80] sm:$0xff]
    %v709 = vld [vmem:[#allocation6 + $0xf88] sm:$0xff]
    %v710 = vld [vmem:[#allocation6 + $0xf90] sm:$0xff]
    %v711 = vld [vmem:[#allocation6 + $0xf98] sm:$0xff]
    %v712 = vld [vmem:[#allocation6 + $0xfa0] sm:$0xff]
    %v713 = vld [vmem:[#allocation6 + $0xfa8] sm:$0xff]
    %v714 = vld [vmem:[#allocation6 + $0xfb0] sm:$0xff]
    %v715 = vld [vmem:[#allocation6 + $0xfb8] sm:$0xff]
    %v716 = vld [vmem:[#allocation6 + $0xfc0] sm:$0xff]
    %v717 = vld [vmem:[#allocation6 + $0xfc8] sm:$0xff]
    %v718 = vld [vmem:[#allocation6 + $0xfd0] sm:$0xff]
    %v719 = vld [vmem:[#allocation6 + $0xfd8] sm:$0xff]
    %v720 = vld [vmem:[#allocation6 + $0xfe0] sm:$0xff]
    %v721 = vld [vmem:[#allocation6 + $0xfe8] sm:$0xff]
    %v722 = vld [vmem:[#allocation6 + $0xff0] sm:$0xff]
    %v723 = vld [vmem:[#allocation6 + $0xff8] sm:$0xff]
    %v724 = vld [vmem:[#allocation8] sm:$0xf]
    %v726 = vlaneseq
    %v727 = vshrl.u32 %v726, 7
    %v728 = vsub.s32 0, %v727
    %v729 = vrot.slane %v724, %v728
    %v730 = vlaneseq
    %v731 = vshrl.u32 %v730, 7
    %v732 = vsub.s32 1, %v731
    %v733 = vrot.slane %v724, %v732
    %v734 = vlaneseq
    %v735 = vshrl.u32 %v734, 7
    %v736 = vsub.s32 2, %v735
    %v737 = vrot.slane %v724, %v736
    %v738 = vlaneseq
    %v739 = vshrl.u32 %v738, 7
    %v740 = vsub.s32 3, %v739
    %v741 = vrot.slane %v724, %v740
    %v1258 = vunpack.c.l.b16 %v212
    %v1259 = vunpack.c.h.b16 %v212
    %v1260 = vunpack.c.l.b16 %v213
    %v1261 = vunpack.c.h.b16 %v213
    %v1262 = vunpack.c.l.b16 %v214
    %v1263 = vunpack.c.h.b16 %v214
    %v1264 = vunpack.c.l.b16 %v215
    %v1265 = vunpack.c.h.b16 %v215
    %v1266 = vunpack.c.l.b16 %v216
    %v1267 = vunpack.c.h.b16 %v216
    %v1268 = vunpack.c.l.b16 %v217
    %v1269 = vunpack.c.h.b16 %v217
    %v1270 = vunpack.c.l.b16 %v218
    %v1271 = vunpack.c.h.b16 %v218
    %v1272 = vunpack.c.l.b16 %v219
    %v1273 = vunpack.c.h.b16 %v219
    %v1274 = vunpack.c.l.b16 %v220
    %v1275 = vunpack.c.h.b16 %v220
    %v1276 = vunpack.c.l.b16 %v221
    %v1277 = vunpack.c.h.b16 %v221
    %v1278 = vunpack.c.l.b16 %v222
    %v1279 = vunpack.c.h.b16 %v222
    %v1280 = vunpack.c.l.b16 %v223
    %v1281 = vunpack.c.h.b16 %v223
    %v1282 = vunpack.c.l.b16 %v224
    %v1283 = vunpack.c.h.b16 %v224
    %v1284 = vunpack.c.l.b16 %v225
    %v1285 = vunpack.c.h.b16 %v225
    %v1286 = vunpack.c.l.b16 %v226
    %v1287 = vunpack.c.h.b16 %v226
    %v1288 = vunpack.c.l.b16 %v227
    %v1289 = vunpack.c.h.b16 %v227
    %v1290 = vunpack.c.l.b16 %v228
    %v1291 = vunpack.c.h.b16 %v228
    %v1292 = vunpack.c.l.b16 %v229
    %v1293 = vunpack.c.h.b16 %v229
    %v1294 = vunpack.c.l.b16 %v230
    %v1295 = vunpack.c.h.b16 %v230
    %v1296 = vunpack.c.l.b16 %v231
    %v1297 = vunpack.c.h.b16 %v231
    %v1298 = vunpack.c.l.b16 %v232
    %v1299 = vunpack.c.h.b16 %v232
    %v1300 = vunpack.c.l.b16 %v233
    %v1301 = vunpack.c.h.b16 %v233
    %v1302 = vunpack.c.l.b16 %v234
    %v1303 = vunpack.c.h.b16 %v234
    %v1304 = vunpack.c.l.b16 %v235
    %v1305 = vunpack.c.h.b16 %v235
    %v1306 = vunpack.c.l.b16 %v236
    %v1307 = vunpack.c.h.b16 %v236
    %v1308 = vunpack.c.l.b16 %v237
    %v1309 = vunpack.c.h.b16 %v237
    %v1310 = vunpack.c.l.b16 %v238
    %v1311 = vunpack.c.h.b16 %v238
    %v1312 = vunpack.c.l.b16 %v239
    %v1313 = vunpack.c.h.b16 %v239
    %v1314 = vunpack.c.l.b16 %v240
    %v1315 = vunpack.c.h.b16 %v240
    %v1316 = vunpack.c.l.b16 %v241
    %v1317 = vunpack.c.h.b16 %v241
    %v1318 = vunpack.c.l.b16 %v242
    %v1319 = vunpack.c.h.b16 %v242
    %v1320 = vunpack.c.l.b16 %v243
    %v1321 = vunpack.c.h.b16 %v243
    %v1322 = vunpack.c.l.b16 %v244
    %v1323 = vunpack.c.h.b16 %v244
    %v1324 = vunpack.c.l.b16 %v245
    %v1325 = vunpack.c.h.b16 %v245
    %v1326 = vunpack.c.l.b16 %v246
    %v1327 = vunpack.c.h.b16 %v246
    %v1328 = vunpack.c.l.b16 %v247
    %v1329 = vunpack.c.h.b16 %v247
    %v1330 = vunpack.c.l.b16 %v248
    %v1331 = vunpack.c.h.b16 %v248
    %v1332 = vunpack.c.l.b16 %v249
    %v1333 = vunpack.c.h.b16 %v249
    %v1334 = vunpack.c.l.b16 %v250
    %v1335 = vunpack.c.h.b16 %v250
    %v1336 = vunpack.c.l.b16 %v251
    %v1337 = vunpack.c.h.b16 %v251
    %v1338 = vunpack.c.l.b16 %v252
    %v1339 = vunpack.c.h.b16 %v252
    %v1340 = vunpack.c.l.b16 %v253
    %v1341 = vunpack.c.h.b16 %v253
    %v1342 = vunpack.c.l.b16 %v254
    %v1343 = vunpack.c.h.b16 %v254
    %v1344 = vunpack.c.l.b16 %v255
    %v1345 = vunpack.c.h.b16 %v255
    %v1346 = vunpack.c.l.b16 %v256
    %v1347 = vunpack.c.h.b16 %v256
    %v1348 = vunpack.c.l.b16 %v257
    %v1349 = vunpack.c.h.b16 %v257
    %v1350 = vunpack.c.l.b16 %v258
    %v1351 = vunpack.c.h.b16 %v258
    %v1352 = vunpack.c.l.b16 %v259
    %v1353 = vunpack.c.h.b16 %v259
    %v1354 = vunpack.c.l.b16 %v260
    %v1355 = vunpack.c.h.b16 %v260
    %v1356 = vunpack.c.l.b16 %v261
    %v1357 = vunpack.c.h.b16 %v261
    %v1358 = vunpack.c.l.b16 %v262
    %v1359 = vunpack.c.h.b16 %v262
    %v1360 = vunpack.c.l.b16 %v263
    %v1361 = vunpack.c.h.b16 %v263
    %v1362 = vunpack.c.l.b16 %v264
    %v1363 = vunpack.c.h.b16 %v264
    %v1364 = vunpack.c.l.b16 %v265
    %v1365 = vunpack.c.h.b16 %v265
    %v1366 = vunpack.c.l.b16 %v266
    %v1367 = vunpack.c.h.b16 %v266
    %v1368 = vunpack.c.l.b16 %v267
    %v1369 = vunpack.c.h.b16 %v267
    %v1370 = vunpack.c.l.b16 %v268
    %v1371 = vunpack.c.h.b16 %v268
    %v1372 = vunpack.c.l.b16 %v269
    %v1373 = vunpack.c.h.b16 %v269
    %v1374 = vunpack.c.l.b16 %v270
    %v1375 = vunpack.c.h.b16 %v270
    %v1376 = vunpack.c.l.b16 %v271
    %v1377 = vunpack.c.h.b16 %v271
    %v1378 = vunpack.c.l.b16 %v272
    %v1379 = vunpack.c.h.b16 %v272
    %v1380 = vunpack.c.l.b16 %v273
    %v1381 = vunpack.c.h.b16 %v273
    %v1382 = vunpack.c.l.b16 %v274
    %v1383 = vunpack.c.h.b16 %v274
    %v1384 = vunpack.c.l.b16 %v275
    %v1385 = vunpack.c.h.b16 %v275
    %v1386 = vunpack.c.l.b16 %v276
    %v1387 = vunpack.c.h.b16 %v276
    %v1388 = vunpack.c.l.b16 %v277
    %v1389 = vunpack.c.h.b16 %v277
    %v1390 = vunpack.c.l.b16 %v278
    %v1391 = vunpack.c.h.b16 %v278
    %v1392 = vunpack.c.l.b16 %v279
    %v1393 = vunpack.c.h.b16 %v279
    %v1394 = vunpack.c.l.b16 %v280
    %v1395 = vunpack.c.h.b16 %v280
    %v1396 = vunpack.c.l.b16 %v281
    %v1397 = vunpack.c.h.b16 %v281
    %v1398 = vunpack.c.l.b16 %v282
    %v1399 = vunpack.c.h.b16 %v282
    %v1400 = vunpack.c.l.b16 %v283
    %v1401 = vunpack.c.h.b16 %v283
    %v1402 = vunpack.c.l.b16 %v284
    %v1403 = vunpack.c.h.b16 %v284
    %v1404 = vunpack.c.l.b16 %v285
    %v1405 = vunpack.c.h.b16 %v285
    %v1406 = vunpack.c.l.b16 %v286
    %v1407 = vunpack.c.h.b16 %v286
    %v1408 = vunpack.c.l.b16 %v287
    %v1409 = vunpack.c.h.b16 %v287
    %v1410 = vunpack.c.l.b16 %v288
    %v1411 = vunpack.c.h.b16 %v288
    %v1412 = vunpack.c.l.b16 %v289
    %v1413 = vunpack.c.h.b16 %v289
    %v1414 = vunpack.c.l.b16 %v290
    %v1415 = vunpack.c.h.b16 %v290
    %v1416 = vunpack.c.l.b16 %v291
    %v1417 = vunpack.c.h.b16 %v291
    %v1418 = vunpack.c.l.b16 %v292
    %v1419 = vunpack.c.h.b16 %v292
    %v1420 = vunpack.c.l.b16 %v293
    %v1421 = vunpack.c.h.b16 %v293
    %v1422 = vunpack.c.l.b16 %v294
    %v1423 = vunpack.c.h.b16 %v294
    %v1424 = vunpack.c.l.b16 %v295
    %v1425 = vunpack.c.h.b16 %v295
    %v1426 = vunpack.c.l.b16 %v296
    %v1427 = vunpack.c.h.b16 %v296
    %v1428 = vunpack.c.l.b16 %v297
    %v1429 = vunpack.c.h.b16 %v297
    %v1430 = vunpack.c.l.b16 %v298
    %v1431 = vunpack.c.h.b16 %v298
    %v1432 = vunpack.c.l.b16 %v299
    %v1433 = vunpack.c.h.b16 %v299
    %v1434 = vunpack.c.l.b16 %v300
    %v1435 = vunpack.c.h.b16 %v300
    %v1436 = vunpack.c.l.b16 %v301
    %v1437 = vunpack.c.h.b16 %v301
    %v1438 = vunpack.c.l.b16 %v302
    %v1439 = vunpack.c.h.b16 %v302
    %v1440 = vunpack.c.l.b16 %v303
    %v1441 = vunpack.c.h.b16 %v303
    %v1442 = vunpack.c.l.b16 %v304
    %v1443 = vunpack.c.h.b16 %v304
    %v1444 = vunpack.c.l.b16 %v305
    %v1445 = vunpack.c.h.b16 %v305
    %v1446 = vunpack.c.l.b16 %v306
    %v1447 = vunpack.c.h.b16 %v306
    %v1448 = vunpack.c.l.b16 %v307
    %v1449 = vunpack.c.h.b16 %v307
    %v1450 = vunpack.c.l.b16 %v308
    %v1451 = vunpack.c.h.b16 %v308
    %v1452 = vunpack.c.l.b16 %v309
    %v1453 = vunpack.c.h.b16 %v309
    %v1454 = vunpack.c.l.b16 %v310
    %v1455 = vunpack.c.h.b16 %v310
    %v1456 = vunpack.c.l.b16 %v311
    %v1457 = vunpack.c.h.b16 %v311
    %v1458 = vunpack.c.l.b16 %v312
    %v1459 = vunpack.c.h.b16 %v312
    %v1460 = vunpack.c.l.b16 %v313
    %v1461 = vunpack.c.h.b16 %v313
    %v1462 = vunpack.c.l.b16 %v314
    %v1463 = vunpack.c.h.b16 %v314
    %v1464 = vunpack.c.l.b16 %v315
    %v1465 = vunpack.c.h.b16 %v315
    %v1466 = vunpack.c.l.b16 %v316
    %v1467 = vunpack.c.h.b16 %v316
    %v1468 = vunpack.c.l.b16 %v317
    %v1469 = vunpack.c.h.b16 %v317
    %v1470 = vunpack.c.l.b16 %v318
    %v1471 = vunpack.c.h.b16 %v318
    %v1472 = vunpack.c.l.b16 %v319
    %v1473 = vunpack.c.h.b16 %v319
    %v1474 = vunpack.c.l.b16 %v320
    %v1475 = vunpack.c.h.b16 %v320
    %v1476 = vunpack.c.l.b16 %v321
    %v1477 = vunpack.c.h.b16 %v321
    %v1478 = vunpack.c.l.b16 %v322
    %v1479 = vunpack.c.h.b16 %v322
    %v1480 = vunpack.c.l.b16 %v323
    %v1481 = vunpack.c.h.b16 %v323
    %v1482 = vunpack.c.l.b16 %v324
    %v1483 = vunpack.c.h.b16 %v324
    %v1484 = vunpack.c.l.b16 %v325
    %v1485 = vunpack.c.h.b16 %v325
    %v1486 = vunpack.c.l.b16 %v326
    %v1487 = vunpack.c.h.b16 %v326
    %v1488 = vunpack.c.l.b16 %v327
    %v1489 = vunpack.c.h.b16 %v327
    %v1490 = vunpack.c.l.b16 %v328
    %v1491 = vunpack.c.h.b16 %v328
    %v1492 = vunpack.c.l.b16 %v329
    %v1493 = vunpack.c.h.b16 %v329
    %v1494 = vunpack.c.l.b16 %v330
    %v1495 = vunpack.c.h.b16 %v330
    %v1496 = vunpack.c.l.b16 %v331
    %v1497 = vunpack.c.h.b16 %v331
    %v1498 = vunpack.c.l.b16 %v332
    %v1499 = vunpack.c.h.b16 %v332
    %v1500 = vunpack.c.l.b16 %v333
    %v1501 = vunpack.c.h.b16 %v333
    %v1502 = vunpack.c.l.b16 %v334
    %v1503 = vunpack.c.h.b16 %v334
    %v1504 = vunpack.c.l.b16 %v335
    %v1505 = vunpack.c.h.b16 %v335
    %v1506 = vunpack.c.l.b16 %v336
    %v1507 = vunpack.c.h.b16 %v336
    %v1508 = vunpack.c.l.b16 %v337
    %v1509 = vunpack.c.h.b16 %v337
    %v1510 = vunpack.c.l.b16 %v338
    %v1511 = vunpack.c.h.b16 %v338
    %v1512 = vunpack.c.l.b16 %v339
    %v1513 = vunpack.c.h.b16 %v339
    %v1514 = vunpack.c.l.b16 %v340
    %v1515 = vunpack.c.h.b16 %v340
    %v1516 = vunpack.c.l.b16 %v341
    %v1517 = vunpack.c.h.b16 %v341
    %v1518 = vunpack.c.l.b16 %v342
    %v1519 = vunpack.c.h.b16 %v342
    %v1520 = vunpack.c.l.b16 %v343
    %v1521 = vunpack.c.h.b16 %v343
    %v1522 = vunpack.c.l.b16 %v344
    %v1523 = vunpack.c.h.b16 %v344
    %v1524 = vunpack.c.l.b16 %v345
    %v1525 = vunpack.c.h.b16 %v345
    %v1526 = vunpack.c.l.b16 %v346
    %v1527 = vunpack.c.h.b16 %v346
    %v1528 = vunpack.c.l.b16 %v347
    %v1529 = vunpack.c.h.b16 %v347
    %v1530 = vunpack.c.l.b16 %v348
    %v1531 = vunpack.c.h.b16 %v348
    %v1532 = vunpack.c.l.b16 %v349
    %v1533 = vunpack.c.h.b16 %v349
    %v1534 = vunpack.c.l.b16 %v350
    %v1535 = vunpack.c.h.b16 %v350
    %v1536 = vunpack.c.l.b16 %v351
    %v1537 = vunpack.c.h.b16 %v351
    %v1538 = vunpack.c.l.b16 %v352
    %v1539 = vunpack.c.h.b16 %v352
    %v1540 = vunpack.c.l.b16 %v353
    %v1541 = vunpack.c.h.b16 %v353
    %v1542 = vunpack.c.l.b16 %v354
    %v1543 = vunpack.c.h.b16 %v354
    %v1544 = vunpack.c.l.b16 %v355
    %v1545 = vunpack.c.h.b16 %v355
    %v1546 = vunpack.c.l.b16 %v356
    %v1547 = vunpack.c.h.b16 %v356
    %v1548 = vunpack.c.l.b16 %v357
    %v1549 = vunpack.c.h.b16 %v357
    %v1550 = vunpack.c.l.b16 %v358
    %v1551 = vunpack.c.h.b16 %v358
    %v1552 = vunpack.c.l.b16 %v359
    %v1553 = vunpack.c.h.b16 %v359
    %v1554 = vunpack.c.l.b16 %v360
    %v1555 = vunpack.c.h.b16 %v360
    %v1556 = vunpack.c.l.b16 %v361
    %v1557 = vunpack.c.h.b16 %v361
    %v1558 = vunpack.c.l.b16 %v362
    %v1559 = vunpack.c.h.b16 %v362
    %v1560 = vunpack.c.l.b16 %v363
    %v1561 = vunpack.c.h.b16 %v363
    %v1562 = vunpack.c.l.b16 %v364
    %v1563 = vunpack.c.h.b16 %v364
    %v1564 = vunpack.c.l.b16 %v365
    %v1565 = vunpack.c.h.b16 %v365
    %v1566 = vunpack.c.l.b16 %v366
    %v1567 = vunpack.c.h.b16 %v366
    %v1568 = vunpack.c.l.b16 %v367
    %v1569 = vunpack.c.h.b16 %v367
    %v1570 = vunpack.c.l.b16 %v368
    %v1571 = vunpack.c.h.b16 %v368
    %v1572 = vunpack.c.l.b16 %v369
    %v1573 = vunpack.c.h.b16 %v369
    %v1574 = vunpack.c.l.b16 %v370
    %v1575 = vunpack.c.h.b16 %v370
    %v1576 = vunpack.c.l.b16 %v371
    %v1577 = vunpack.c.h.b16 %v371
    %v1578 = vunpack.c.l.b16 %v372
    %v1579 = vunpack.c.h.b16 %v372
    %v1580 = vunpack.c.l.b16 %v373
    %v1581 = vunpack.c.h.b16 %v373
    %v1582 = vunpack.c.l.b16 %v374
    %v1583 = vunpack.c.h.b16 %v374
    %v1584 = vunpack.c.l.b16 %v375
    %v1585 = vunpack.c.h.b16 %v375
    %v1586 = vunpack.c.l.b16 %v376
    %v1587 = vunpack.c.h.b16 %v376
    %v1588 = vunpack.c.l.b16 %v377
    %v1589 = vunpack.c.h.b16 %v377
    %v1590 = vunpack.c.l.b16 %v378
    %v1591 = vunpack.c.h.b16 %v378
    %v1592 = vunpack.c.l.b16 %v379
    %v1593 = vunpack.c.h.b16 %v379
    %v1594 = vunpack.c.l.b16 %v380
    %v1595 = vunpack.c.h.b16 %v380
    %v1596 = vunpack.c.l.b16 %v381
    %v1597 = vunpack.c.h.b16 %v381
    %v1598 = vunpack.c.l.b16 %v382
    %v1599 = vunpack.c.h.b16 %v382
    %v1600 = vunpack.c.l.b16 %v383
    %v1601 = vunpack.c.h.b16 %v383
    %v1602 = vunpack.c.l.b16 %v384
    %v1603 = vunpack.c.h.b16 %v384
    %v1604 = vunpack.c.l.b16 %v385
    %v1605 = vunpack.c.h.b16 %v385
    %v1606 = vunpack.c.l.b16 %v386
    %v1607 = vunpack.c.h.b16 %v386
    %v1608 = vunpack.c.l.b16 %v387
    %v1609 = vunpack.c.h.b16 %v387
    %v1610 = vunpack.c.l.b16 %v388
    %v1611 = vunpack.c.h.b16 %v388
    %v1612 = vunpack.c.l.b16 %v389
    %v1613 = vunpack.c.h.b16 %v389
    %v1614 = vunpack.c.l.b16 %v390
    %v1615 = vunpack.c.h.b16 %v390
    %v1616 = vunpack.c.l.b16 %v391
    %v1617 = vunpack.c.h.b16 %v391
    %v1618 = vunpack.c.l.b16 %v392
    %v1619 = vunpack.c.h.b16 %v392
    %v1620 = vunpack.c.l.b16 %v393
    %v1621 = vunpack.c.h.b16 %v393
    %v1622 = vunpack.c.l.b16 %v394
    %v1623 = vunpack.c.h.b16 %v394
    %v1624 = vunpack.c.l.b16 %v395
    %v1625 = vunpack.c.h.b16 %v395
    %v1626 = vunpack.c.l.b16 %v396
    %v1627 = vunpack.c.h.b16 %v396
    %v1628 = vunpack.c.l.b16 %v397
    %v1629 = vunpack.c.h.b16 %v397
    %v1630 = vunpack.c.l.b16 %v398
    %v1631 = vunpack.c.h.b16 %v398
    %v1632 = vunpack.c.l.b16 %v399
    %v1633 = vunpack.c.h.b16 %v399
    %v1634 = vunpack.c.l.b16 %v400
    %v1635 = vunpack.c.h.b16 %v400
    %v1636 = vunpack.c.l.b16 %v401
    %v1637 = vunpack.c.h.b16 %v401
    %v1638 = vunpack.c.l.b16 %v402
    %v1639 = vunpack.c.h.b16 %v402
    %v1640 = vunpack.c.l.b16 %v403
    %v1641 = vunpack.c.h.b16 %v403
    %v1642 = vunpack.c.l.b16 %v404
    %v1643 = vunpack.c.h.b16 %v404
    %v1644 = vunpack.c.l.b16 %v405
    %v1645 = vunpack.c.h.b16 %v405
    %v1646 = vunpack.c.l.b16 %v406
    %v1647 = vunpack.c.h.b16 %v406
    %v1648 = vunpack.c.l.b16 %v407
    %v1649 = vunpack.c.h.b16 %v407
    %v1650 = vunpack.c.l.b16 %v408
    %v1651 = vunpack.c.h.b16 %v408
    %v1652 = vunpack.c.l.b16 %v409
    %v1653 = vunpack.c.h.b16 %v409
    %v1654 = vunpack.c.l.b16 %v410
    %v1655 = vunpack.c.h.b16 %v410
    %v1656 = vunpack.c.l.b16 %v411
    %v1657 = vunpack.c.h.b16 %v411
    %v1658 = vunpack.c.l.b16 %v412
    %v1659 = vunpack.c.h.b16 %v412
    %v1660 = vunpack.c.l.b16 %v413
    %v1661 = vunpack.c.h.b16 %v413
    %v1662 = vunpack.c.l.b16 %v414
    %v1663 = vunpack.c.h.b16 %v414
    %v1664 = vunpack.c.l.b16 %v415
    %v1665 = vunpack.c.h.b16 %v415
    %v1666 = vunpack.c.l.b16 %v416
    %v1667 = vunpack.c.h.b16 %v416
    %v1668 = vunpack.c.l.b16 %v417
    %v1669 = vunpack.c.h.b16 %v417
    %v1670 = vunpack.c.l.b16 %v418
    %v1671 = vunpack.c.h.b16 %v418
    %v1672 = vunpack.c.l.b16 %v419
    %v1673 = vunpack.c.h.b16 %v419
    %v1674 = vunpack.c.l.b16 %v420
    %v1675 = vunpack.c.h.b16 %v420
    %v1676 = vunpack.c.l.b16 %v421
    %v1677 = vunpack.c.h.b16 %v421
    %v1678 = vunpack.c.l.b16 %v422
    %v1679 = vunpack.c.h.b16 %v422
    %v1680 = vunpack.c.l.b16 %v423
    %v1681 = vunpack.c.h.b16 %v423
    %v1682 = vunpack.c.l.b16 %v424
    %v1683 = vunpack.c.h.b16 %v424
    %v1684 = vunpack.c.l.b16 %v425
    %v1685 = vunpack.c.h.b16 %v425
    %v1686 = vunpack.c.l.b16 %v426
    %v1687 = vunpack.c.h.b16 %v426
    %v1688 = vunpack.c.l.b16 %v427
    %v1689 = vunpack.c.h.b16 %v427
    %v1690 = vunpack.c.l.b16 %v428
    %v1691 = vunpack.c.h.b16 %v428
    %v1692 = vunpack.c.l.b16 %v429
    %v1693 = vunpack.c.h.b16 %v429
    %v1694 = vunpack.c.l.b16 %v430
    %v1695 = vunpack.c.h.b16 %v430
    %v1696 = vunpack.c.l.b16 %v431
    %v1697 = vunpack.c.h.b16 %v431
    %v1698 = vunpack.c.l.b16 %v432
    %v1699 = vunpack.c.h.b16 %v432
    %v1700 = vunpack.c.l.b16 %v433
    %v1701 = vunpack.c.h.b16 %v433
    %v1702 = vunpack.c.l.b16 %v434
    %v1703 = vunpack.c.h.b16 %v434
    %v1704 = vunpack.c.l.b16 %v435
    %v1705 = vunpack.c.h.b16 %v435
    %v1706 = vunpack.c.l.b16 %v436
    %v1707 = vunpack.c.h.b16 %v436
    %v1708 = vunpack.c.l.b16 %v437
    %v1709 = vunpack.c.h.b16 %v437
    %v1710 = vunpack.c.l.b16 %v438
    %v1711 = vunpack.c.h.b16 %v438
    %v1712 = vunpack.c.l.b16 %v439
    %v1713 = vunpack.c.h.b16 %v439
    %v1714 = vunpack.c.l.b16 %v440
    %v1715 = vunpack.c.h.b16 %v440
    %v1716 = vunpack.c.l.b16 %v441
    %v1717 = vunpack.c.h.b16 %v441
    %v1718 = vunpack.c.l.b16 %v442
    %v1719 = vunpack.c.h.b16 %v442
    %v1720 = vunpack.c.l.b16 %v443
    %v1721 = vunpack.c.h.b16 %v443
    %v1722 = vunpack.c.l.b16 %v444
    %v1723 = vunpack.c.h.b16 %v444
    %v1724 = vunpack.c.l.b16 %v445
    %v1725 = vunpack.c.h.b16 %v445
    %v1726 = vunpack.c.l.b16 %v446
    %v1727 = vunpack.c.h.b16 %v446
    %v1728 = vunpack.c.l.b16 %v447
    %v1729 = vunpack.c.h.b16 %v447
    %v1730 = vunpack.c.l.b16 %v448
    %v1731 = vunpack.c.h.b16 %v448
    %v1732 = vunpack.c.l.b16 %v449
    %v1733 = vunpack.c.h.b16 %v449
    %v1734 = vunpack.c.l.b16 %v450
    %v1735 = vunpack.c.h.b16 %v450
    %v1736 = vunpack.c.l.b16 %v451
    %v1737 = vunpack.c.h.b16 %v451
    %v1738 = vunpack.c.l.b16 %v452
    %v1739 = vunpack.c.h.b16 %v452
    %v1740 = vunpack.c.l.b16 %v453
    %v1741 = vunpack.c.h.b16 %v453
    %v1742 = vunpack.c.l.b16 %v454
    %v1743 = vunpack.c.h.b16 %v454
    %v1744 = vunpack.c.l.b16 %v455
    %v1745 = vunpack.c.h.b16 %v455
    %v1746 = vunpack.c.l.b16 %v456
    %v1747 = vunpack.c.h.b16 %v456
    %v1748 = vunpack.c.l.b16 %v457
    %v1749 = vunpack.c.h.b16 %v457
    %v1750 = vunpack.c.l.b16 %v458
    %v1751 = vunpack.c.h.b16 %v458
    %v1752 = vunpack.c.l.b16 %v459
    %v1753 = vunpack.c.h.b16 %v459
    %v1754 = vunpack.c.l.b16 %v460
    %v1755 = vunpack.c.h.b16 %v460
    %v1756 = vunpack.c.l.b16 %v461
    %v1757 = vunpack.c.h.b16 %v461
    %v1758 = vunpack.c.l.b16 %v462
    %v1759 = vunpack.c.h.b16 %v462
    %v1760 = vunpack.c.l.b16 %v463
    %v1761 = vunpack.c.h.b16 %v463
    %v1762 = vunpack.c.l.b16 %v464
    %v1763 = vunpack.c.h.b16 %v464
    %v1764 = vunpack.c.l.b16 %v465
    %v1765 = vunpack.c.h.b16 %v465
    %v1766 = vunpack.c.l.b16 %v466
    %v1767 = vunpack.c.h.b16 %v466
    %v1768 = vunpack.c.l.b16 %v467
    %v1769 = vunpack.c.h.b16 %v467
    %v1770 = vunpack.c.l.b16 %v468
    %v1771 = vunpack.c.h.b16 %v468
    %v1772 = vunpack.c.l.b16 %v469
    %v1773 = vunpack.c.h.b16 %v469
    %v1774 = vunpack.c.l.b16 %v470
    %v1775 = vunpack.c.h.b16 %v470
    %v1776 = vunpack.c.l.b16 %v471
    %v1777 = vunpack.c.h.b16 %v471
    %v1778 = vunpack.c.l.b16 %v472
    %v1779 = vunpack.c.h.b16 %v472
    %v1780 = vunpack.c.l.b16 %v473
    %v1781 = vunpack.c.h.b16 %v473
    %v1782 = vunpack.c.l.b16 %v474
    %v1783 = vunpack.c.h.b16 %v474
    %v1784 = vunpack.c.l.b16 %v475
    %v1785 = vunpack.c.h.b16 %v475
    %v1786 = vunpack.c.l.b16 %v476
    %v1787 = vunpack.c.h.b16 %v476
    %v1788 = vunpack.c.l.b16 %v477
    %v1789 = vunpack.c.h.b16 %v477
    %v1790 = vunpack.c.l.b16 %v478
    %v1791 = vunpack.c.h.b16 %v478
    %v1792 = vunpack.c.l.b16 %v479
    %v1793 = vunpack.c.h.b16 %v479
    %v1794 = vunpack.c.l.b16 %v480
    %v1795 = vunpack.c.h.b16 %v480
    %v1796 = vunpack.c.l.b16 %v481
    %v1797 = vunpack.c.h.b16 %v481
    %v1798 = vunpack.c.l.b16 %v482
    %v1799 = vunpack.c.h.b16 %v482
    %v1800 = vunpack.c.l.b16 %v483
    %v1801 = vunpack.c.h.b16 %v483
    %v1802 = vunpack.c.l.b16 %v484
    %v1803 = vunpack.c.h.b16 %v484
    %v1804 = vunpack.c.l.b16 %v485
    %v1805 = vunpack.c.h.b16 %v485
    %v1806 = vunpack.c.l.b16 %v486
    %v1807 = vunpack.c.h.b16 %v486
    %v1808 = vunpack.c.l.b16 %v487
    %v1809 = vunpack.c.h.b16 %v487
    %v1810 = vunpack.c.l.b16 %v488
    %v1811 = vunpack.c.h.b16 %v488
    %v1812 = vunpack.c.l.b16 %v489
    %v1813 = vunpack.c.h.b16 %v489
    %v1814 = vunpack.c.l.b16 %v490
    %v1815 = vunpack.c.h.b16 %v490
    %v1816 = vunpack.c.l.b16 %v491
    %v1817 = vunpack.c.h.b16 %v491
    %v1818 = vunpack.c.l.b16 %v492
    %v1819 = vunpack.c.h.b16 %v492
    %v1820 = vunpack.c.l.b16 %v493
    %v1821 = vunpack.c.h.b16 %v493
    %v1822 = vunpack.c.l.b16 %v494
    %v1823 = vunpack.c.h.b16 %v494
    %v1824 = vunpack.c.l.b16 %v495
    %v1825 = vunpack.c.h.b16 %v495
    %v1826 = vunpack.c.l.b16 %v496
    %v1827 = vunpack.c.h.b16 %v496
    %v1828 = vunpack.c.l.b16 %v497
    %v1829 = vunpack.c.h.b16 %v497
    %v1830 = vunpack.c.l.b16 %v498
    %v1831 = vunpack.c.h.b16 %v498
    %v1832 = vunpack.c.l.b16 %v499
    %v1833 = vunpack.c.h.b16 %v499
    %v1834 = vunpack.c.l.b16 %v500
    %v1835 = vunpack.c.h.b16 %v500
    %v1836 = vunpack.c.l.b16 %v501
    %v1837 = vunpack.c.h.b16 %v501
    %v1838 = vunpack.c.l.b16 %v502
    %v1839 = vunpack.c.h.b16 %v502
    %v1840 = vunpack.c.l.b16 %v503
    %v1841 = vunpack.c.h.b16 %v503
    %v1842 = vunpack.c.l.b16 %v504
    %v1843 = vunpack.c.h.b16 %v504
    %v1844 = vunpack.c.l.b16 %v505
    %v1845 = vunpack.c.h.b16 %v505
    %v1846 = vunpack.c.l.b16 %v506
    %v1847 = vunpack.c.h.b16 %v506
    %v1848 = vunpack.c.l.b16 %v507
    %v1849 = vunpack.c.h.b16 %v507
    %v1850 = vunpack.c.l.b16 %v508
    %v1851 = vunpack.c.h.b16 %v508
    %v1852 = vunpack.c.l.b16 %v509
    %v1853 = vunpack.c.h.b16 %v509
    %v1854 = vunpack.c.l.b16 %v510
    %v1855 = vunpack.c.h.b16 %v510
    %v1856 = vunpack.c.l.b16 %v511
    %v1857 = vunpack.c.h.b16 %v511
    %v1858 = vunpack.c.l.b16 %v512
    %v1859 = vunpack.c.h.b16 %v512
    %v1860 = vunpack.c.l.b16 %v513
    %v1861 = vunpack.c.h.b16 %v513
    %v1862 = vunpack.c.l.b16 %v514
    %v1863 = vunpack.c.h.b16 %v514
    %v1864 = vunpack.c.l.b16 %v515
    %v1865 = vunpack.c.h.b16 %v515
    %v1866 = vunpack.c.l.b16 %v516
    %v1867 = vunpack.c.h.b16 %v516
    %v1868 = vunpack.c.l.b16 %v517
    %v1869 = vunpack.c.h.b16 %v517
    %v1870 = vunpack.c.l.b16 %v518
    %v1871 = vunpack.c.h.b16 %v518
    %v1872 = vunpack.c.l.b16 %v519
    %v1873 = vunpack.c.h.b16 %v519
    %v1874 = vunpack.c.l.b16 %v520
    %v1875 = vunpack.c.h.b16 %v520
    %v1876 = vunpack.c.l.b16 %v521
    %v1877 = vunpack.c.h.b16 %v521
    %v1878 = vunpack.c.l.b16 %v522
    %v1879 = vunpack.c.h.b16 %v522
    %v1880 = vunpack.c.l.b16 %v523
    %v1881 = vunpack.c.h.b16 %v523
    %v1882 = vunpack.c.l.b16 %v524
    %v1883 = vunpack.c.h.b16 %v524
    %v1884 = vunpack.c.l.b16 %v525
    %v1885 = vunpack.c.h.b16 %v525
    %v1886 = vunpack.c.l.b16 %v526
    %v1887 = vunpack.c.h.b16 %v526
    %v1888 = vunpack.c.l.b16 %v527
    %v1889 = vunpack.c.h.b16 %v527
    %v1890 = vunpack.c.l.b16 %v528
    %v1891 = vunpack.c.h.b16 %v528
    %v1892 = vunpack.c.l.b16 %v529
    %v1893 = vunpack.c.h.b16 %v529
    %v1894 = vunpack.c.l.b16 %v530
    %v1895 = vunpack.c.h.b16 %v530
    %v1896 = vunpack.c.l.b16 %v531
    %v1897 = vunpack.c.h.b16 %v531
    %v1898 = vunpack.c.l.b16 %v532
    %v1899 = vunpack.c.h.b16 %v532
    %v1900 = vunpack.c.l.b16 %v533
    %v1901 = vunpack.c.h.b16 %v533
    %v1902 = vunpack.c.l.b16 %v534
    %v1903 = vunpack.c.h.b16 %v534
    %v1904 = vunpack.c.l.b16 %v535
    %v1905 = vunpack.c.h.b16 %v535
    %v1906 = vunpack.c.l.b16 %v536
    %v1907 = vunpack.c.h.b16 %v536
    %v1908 = vunpack.c.l.b16 %v537
    %v1909 = vunpack.c.h.b16 %v537
    %v1910 = vunpack.c.l.b16 %v538
    %v1911 = vunpack.c.h.b16 %v538
    %v1912 = vunpack.c.l.b16 %v539
    %v1913 = vunpack.c.h.b16 %v539
    %v1914 = vunpack.c.l.b16 %v540
    %v1915 = vunpack.c.h.b16 %v540
    %v1916 = vunpack.c.l.b16 %v541
    %v1917 = vunpack.c.h.b16 %v541
    %v1918 = vunpack.c.l.b16 %v542
    %v1919 = vunpack.c.h.b16 %v542
    %v1920 = vunpack.c.l.b16 %v543
    %v1921 = vunpack.c.h.b16 %v543
    %v1922 = vunpack.c.l.b16 %v544
    %v1923 = vunpack.c.h.b16 %v544
    %v1924 = vunpack.c.l.b16 %v545
    %v1925 = vunpack.c.h.b16 %v545
    %v1926 = vunpack.c.l.b16 %v546
    %v1927 = vunpack.c.h.b16 %v546
    %v1928 = vunpack.c.l.b16 %v547
    %v1929 = vunpack.c.h.b16 %v547
    %v1930 = vunpack.c.l.b16 %v548
    %v1931 = vunpack.c.h.b16 %v548
    %v1932 = vunpack.c.l.b16 %v549
    %v1933 = vunpack.c.h.b16 %v549
    %v1934 = vunpack.c.l.b16 %v550
    %v1935 = vunpack.c.h.b16 %v550
    %v1936 = vunpack.c.l.b16 %v551
    %v1937 = vunpack.c.h.b16 %v551
    %v1938 = vunpack.c.l.b16 %v552
    %v1939 = vunpack.c.h.b16 %v552
    %v1940 = vunpack.c.l.b16 %v553
    %v1941 = vunpack.c.h.b16 %v553
    %v1942 = vunpack.c.l.b16 %v554
    %v1943 = vunpack.c.h.b16 %v554
    %v1944 = vunpack.c.l.b16 %v555
    %v1945 = vunpack.c.h.b16 %v555
    %v1946 = vunpack.c.l.b16 %v556
    %v1947 = vunpack.c.h.b16 %v556
    %v1948 = vunpack.c.l.b16 %v557
    %v1949 = vunpack.c.h.b16 %v557
    %v1950 = vunpack.c.l.b16 %v558
    %v1951 = vunpack.c.h.b16 %v558
    %v1952 = vunpack.c.l.b16 %v559
    %v1953 = vunpack.c.h.b16 %v559
    %v1954 = vunpack.c.l.b16 %v560
    %v1955 = vunpack.c.h.b16 %v560
    %v1956 = vunpack.c.l.b16 %v561
    %v1957 = vunpack.c.h.b16 %v561
    %v1958 = vunpack.c.l.b16 %v562
    %v1959 = vunpack.c.h.b16 %v562
    %v1960 = vunpack.c.l.b16 %v563
    %v1961 = vunpack.c.h.b16 %v563
    %v1962 = vunpack.c.l.b16 %v564
    %v1963 = vunpack.c.h.b16 %v564
    %v1964 = vunpack.c.l.b16 %v565
    %v1965 = vunpack.c.h.b16 %v565
    %v1966 = vunpack.c.l.b16 %v566
    %v1967 = vunpack.c.h.b16 %v566
    %v1968 = vunpack.c.l.b16 %v567
    %v1969 = vunpack.c.h.b16 %v567
    %v1970 = vunpack.c.l.b16 %v568
    %v1971 = vunpack.c.h.b16 %v568
    %v1972 = vunpack.c.l.b16 %v569
    %v1973 = vunpack.c.h.b16 %v569
    %v1974 = vunpack.c.l.b16 %v570
    %v1975 = vunpack.c.h.b16 %v570
    %v1976 = vunpack.c.l.b16 %v571
    %v1977 = vunpack.c.h.b16 %v571
    %v1978 = vunpack.c.l.b16 %v572
    %v1979 = vunpack.c.h.b16 %v572
    %v1980 = vunpack.c.l.b16 %v573
    %v1981 = vunpack.c.h.b16 %v573
    %v1982 = vunpack.c.l.b16 %v574
    %v1983 = vunpack.c.h.b16 %v574
    %v1984 = vunpack.c.l.b16 %v575
    %v1985 = vunpack.c.h.b16 %v575
    %v1986 = vunpack.c.l.b16 %v576
    %v1987 = vunpack.c.h.b16 %v576
    %v1988 = vunpack.c.l.b16 %v577
    %v1989 = vunpack.c.h.b16 %v577
    %v1990 = vunpack.c.l.b16 %v578
    %v1991 = vunpack.c.h.b16 %v578
    %v1992 = vunpack.c.l.b16 %v579
    %v1993 = vunpack.c.h.b16 %v579
    %v1994 = vunpack.c.l.b16 %v580
    %v1995 = vunpack.c.h.b16 %v580
    %v1996 = vunpack.c.l.b16 %v581
    %v1997 = vunpack.c.h.b16 %v581
    %v1998 = vunpack.c.l.b16 %v582
    %v1999 = vunpack.c.h.b16 %v582
    %v2000 = vunpack.c.l.b16 %v583
    %v2001 = vunpack.c.h.b16 %v583
    %v2002 = vunpack.c.l.b16 %v584
    %v2003 = vunpack.c.h.b16 %v584
    %v2004 = vunpack.c.l.b16 %v585
    %v2005 = vunpack.c.h.b16 %v585
    %v2006 = vunpack.c.l.b16 %v586
    %v2007 = vunpack.c.h.b16 %v586
    %v2008 = vunpack.c.l.b16 %v587
    %v2009 = vunpack.c.h.b16 %v587
    %v2010 = vunpack.c.l.b16 %v588
    %v2011 = vunpack.c.h.b16 %v588
    %v2012 = vunpack.c.l.b16 %v589
    %v2013 = vunpack.c.h.b16 %v589
    %v2014 = vunpack.c.l.b16 %v590
    %v2015 = vunpack.c.h.b16 %v590
    %v2016 = vunpack.c.l.b16 %v591
    %v2017 = vunpack.c.h.b16 %v591
    %v2018 = vunpack.c.l.b16 %v592
    %v2019 = vunpack.c.h.b16 %v592
    %v2020 = vunpack.c.l.b16 %v593
    %v2021 = vunpack.c.h.b16 %v593
    %v2022 = vunpack.c.l.b16 %v594
    %v2023 = vunpack.c.h.b16 %v594
    %v2024 = vunpack.c.l.b16 %v595
    %v2025 = vunpack.c.h.b16 %v595
    %v2026 = vunpack.c.l.b16 %v596
    %v2027 = vunpack.c.h.b16 %v596
    %v2028 = vunpack.c.l.b16 %v597
    %v2029 = vunpack.c.h.b16 %v597
    %v2030 = vunpack.c.l.b16 %v598
    %v2031 = vunpack.c.h.b16 %v598
    %v2032 = vunpack.c.l.b16 %v599
    %v2033 = vunpack.c.h.b16 %v599
    %v2034 = vunpack.c.l.b16 %v600
    %v2035 = vunpack.c.h.b16 %v600
    %v2036 = vunpack.c.l.b16 %v601
    %v2037 = vunpack.c.h.b16 %v601
    %v2038 = vunpack.c.l.b16 %v602
    %v2039 = vunpack.c.h.b16 %v602
    %v2040 = vunpack.c.l.b16 %v603
    %v2041 = vunpack.c.h.b16 %v603
    %v2042 = vunpack.c.l.b16 %v604
    %v2043 = vunpack.c.h.b16 %v604
    %v2044 = vunpack.c.l.b16 %v605
    %v2045 = vunpack.c.h.b16 %v605
    %v2046 = vunpack.c.l.b16 %v606
    %v2047 = vunpack.c.h.b16 %v606
    %v2048 = vunpack.c.l.b16 %v607
    %v2049 = vunpack.c.h.b16 %v607
    %v2050 = vunpack.c.l.b16 %v608
    %v2051 = vunpack.c.h.b16 %v608
    %v2052 = vunpack.c.l.b16 %v609
    %v2053 = vunpack.c.h.b16 %v609
    %v2054 = vunpack.c.l.b16 %v610
    %v2055 = vunpack.c.h.b16 %v610
    %v2056 = vunpack.c.l.b16 %v611
    %v2057 = vunpack.c.h.b16 %v611
    %v2058 = vunpack.c.l.b16 %v612
    %v2059 = vunpack.c.h.b16 %v612
    %v2060 = vunpack.c.l.b16 %v613
    %v2061 = vunpack.c.h.b16 %v613
    %v2062 = vunpack.c.l.b16 %v614
    %v2063 = vunpack.c.h.b16 %v614
    %v2064 = vunpack.c.l.b16 %v615
    %v2065 = vunpack.c.h.b16 %v615
    %v2066 = vunpack.c.l.b16 %v616
    %v2067 = vunpack.c.h.b16 %v616
    %v2068 = vunpack.c.l.b16 %v617
    %v2069 = vunpack.c.h.b16 %v617
    %v2070 = vunpack.c.l.b16 %v618
    %v2071 = vunpack.c.h.b16 %v618
    %v2072 = vunpack.c.l.b16 %v619
    %v2073 = vunpack.c.h.b16 %v619
    %v2074 = vunpack.c.l.b16 %v620
    %v2075 = vunpack.c.h.b16 %v620
    %v2076 = vunpack.c.l.b16 %v621
    %v2077 = vunpack.c.h.b16 %v621
    %v2078 = vunpack.c.l.b16 %v622
    %v2079 = vunpack.c.h.b16 %v622
    %v2080 = vunpack.c.l.b16 %v623
    %v2081 = vunpack.c.h.b16 %v623
    %v2082 = vunpack.c.l.b16 %v624
    %v2083 = vunpack.c.h.b16 %v624
    %v2084 = vunpack.c.l.b16 %v625
    %v2085 = vunpack.c.h.b16 %v625
    %v2086 = vunpack.c.l.b16 %v626
    %v2087 = vunpack.c.h.b16 %v626
    %v2088 = vunpack.c.l.b16 %v627
    %v2089 = vunpack.c.h.b16 %v627
    %v2090 = vunpack.c.l.b16 %v628
    %v2091 = vunpack.c.h.b16 %v628
    %v2092 = vunpack.c.l.b16 %v629
    %v2093 = vunpack.c.h.b16 %v629
    %v2094 = vunpack.c.l.b16 %v630
    %v2095 = vunpack.c.h.b16 %v630
    %v2096 = vunpack.c.l.b16 %v631
    %v2097 = vunpack.c.h.b16 %v631
    %v2098 = vunpack.c.l.b16 %v632
    %v2099 = vunpack.c.h.b16 %v632
    %v2100 = vunpack.c.l.b16 %v633
    %v2101 = vunpack.c.h.b16 %v633
    %v2102 = vunpack.c.l.b16 %v634
    %v2103 = vunpack.c.h.b16 %v634
    %v2104 = vunpack.c.l.b16 %v635
    %v2105 = vunpack.c.h.b16 %v635
    %v2106 = vunpack.c.l.b16 %v636
    %v2107 = vunpack.c.h.b16 %v636
    %v2108 = vunpack.c.l.b16 %v637
    %v2109 = vunpack.c.h.b16 %v637
    %v2110 = vunpack.c.l.b16 %v638
    %v2111 = vunpack.c.h.b16 %v638
    %v2112 = vunpack.c.l.b16 %v639
    %v2113 = vunpack.c.h.b16 %v639
    %v2114 = vunpack.c.l.b16 %v640
    %v2115 = vunpack.c.h.b16 %v640
    %v2116 = vunpack.c.l.b16 %v641
    %v2117 = vunpack.c.h.b16 %v641
    %v2118 = vunpack.c.l.b16 %v642
    %v2119 = vunpack.c.h.b16 %v642
    %v2120 = vunpack.c.l.b16 %v643
    %v2121 = vunpack.c.h.b16 %v643
    %v2122 = vunpack.c.l.b16 %v644
    %v2123 = vunpack.c.h.b16 %v644
    %v2124 = vunpack.c.l.b16 %v645
    %v2125 = vunpack.c.h.b16 %v645
    %v2126 = vunpack.c.l.b16 %v646
    %v2127 = vunpack.c.h.b16 %v646
    %v2128 = vunpack.c.l.b16 %v647
    %v2129 = vunpack.c.h.b16 %v647
    %v2130 = vunpack.c.l.b16 %v648
    %v2131 = vunpack.c.h.b16 %v648
    %v2132 = vunpack.c.l.b16 %v649
    %v2133 = vunpack.c.h.b16 %v649
    %v2134 = vunpack.c.l.b16 %v650
    %v2135 = vunpack.c.h.b16 %v650
    %v2136 = vunpack.c.l.b16 %v651
    %v2137 = vunpack.c.h.b16 %v651
    %v2138 = vunpack.c.l.b16 %v652
    %v2139 = vunpack.c.h.b16 %v652
    %v2140 = vunpack.c.l.b16 %v653
    %v2141 = vunpack.c.h.b16 %v653
    %v2142 = vunpack.c.l.b16 %v654
    %v2143 = vunpack.c.h.b16 %v654
    %v2144 = vunpack.c.l.b16 %v655
    %v2145 = vunpack.c.h.b16 %v655
    %v2146 = vunpack.c.l.b16 %v656
    %v2147 = vunpack.c.h.b16 %v656
    %v2148 = vunpack.c.l.b16 %v657
    %v2149 = vunpack.c.h.b16 %v657
    %v2150 = vunpack.c.l.b16 %v658
    %v2151 = vunpack.c.h.b16 %v658
    %v2152 = vunpack.c.l.b16 %v659
    %v2153 = vunpack.c.h.b16 %v659
    %v2154 = vunpack.c.l.b16 %v660
    %v2155 = vunpack.c.h.b16 %v660
    %v2156 = vunpack.c.l.b16 %v661
    %v2157 = vunpack.c.h.b16 %v661
    %v2158 = vunpack.c.l.b16 %v662
    %v2159 = vunpack.c.h.b16 %v662
    %v2160 = vunpack.c.l.b16 %v663
    %v2161 = vunpack.c.h.b16 %v663
    %v2162 = vunpack.c.l.b16 %v664
    %v2163 = vunpack.c.h.b16 %v664
    %v2164 = vunpack.c.l.b16 %v665
    %v2165 = vunpack.c.h.b16 %v665
    %v2166 = vunpack.c.l.b16 %v666
    %v2167 = vunpack.c.h.b16 %v666
    %v2168 = vunpack.c.l.b16 %v667
    %v2169 = vunpack.c.h.b16 %v667
    %v2170 = vunpack.c.l.b16 %v668
    %v2171 = vunpack.c.h.b16 %v668
    %v2172 = vunpack.c.l.b16 %v669
    %v2173 = vunpack.c.h.b16 %v669
    %v2174 = vunpack.c.l.b16 %v670
    %v2175 = vunpack.c.h.b16 %v670
    %v2176 = vunpack.c.l.b16 %v671
    %v2177 = vunpack.c.h.b16 %v671
    %v2178 = vunpack.c.l.b16 %v672
    %v2179 = vunpack.c.h.b16 %v672
    %v2180 = vunpack.c.l.b16 %v673
    %v2181 = vunpack.c.h.b16 %v673
    %v2182 = vunpack.c.l.b16 %v674
    %v2183 = vunpack.c.h.b16 %v674
    %v2184 = vunpack.c.l.b16 %v675
    %v2185 = vunpack.c.h.b16 %v675
    %v2186 = vunpack.c.l.b16 %v676
    %v2187 = vunpack.c.h.b16 %v676
    %v2188 = vunpack.c.l.b16 %v677
    %v2189 = vunpack.c.h.b16 %v677
    %v2190 = vunpack.c.l.b16 %v678
    %v2191 = vunpack.c.h.b16 %v678
    %v2192 = vunpack.c.l.b16 %v679
    %v2193 = vunpack.c.h.b16 %v679
    %v2194 = vunpack.c.l.b16 %v680
    %v2195 = vunpack.c.h.b16 %v680
    %v2196 = vunpack.c.l.b16 %v681
    %v2197 = vunpack.c.h.b16 %v681
    %v2198 = vunpack.c.l.b16 %v682
    %v2199 = vunpack.c.h.b16 %v682
    %v2200 = vunpack.c.l.b16 %v683
    %v2201 = vunpack.c.h.b16 %v683
    %v2202 = vunpack.c.l.b16 %v684
    %v2203 = vunpack.c.h.b16 %v684
    %v2204 = vunpack.c.l.b16 %v685
    %v2205 = vunpack.c.h.b16 %v685
    %v2206 = vunpack.c.l.b16 %v686
    %v2207 = vunpack.c.h.b16 %v686
    %v2208 = vunpack.c.l.b16 %v687
    %v2209 = vunpack.c.h.b16 %v687
    %v2210 = vunpack.c.l.b16 %v688
    %v2211 = vunpack.c.h.b16 %v688
    %v2212 = vunpack.c.l.b16 %v689
    %v2213 = vunpack.c.h.b16 %v689
    %v2214 = vunpack.c.l.b16 %v690
    %v2215 = vunpack.c.h.b16 %v690
    %v2216 = vunpack.c.l.b16 %v691
    %v2217 = vunpack.c.h.b16 %v691
    %v2218 = vunpack.c.l.b16 %v692
    %v2219 = vunpack.c.h.b16 %v692
    %v2220 = vunpack.c.l.b16 %v693
    %v2221 = vunpack.c.h.b16 %v693
    %v2222 = vunpack.c.l.b16 %v694
    %v2223 = vunpack.c.h.b16 %v694
    %v2224 = vunpack.c.l.b16 %v695
    %v2225 = vunpack.c.h.b16 %v695
    %v2226 = vunpack.c.l.b16 %v696
    %v2227 = vunpack.c.h.b16 %v696
    %v2228 = vunpack.c.l.b16 %v697
    %v2229 = vunpack.c.h.b16 %v697
    %v2230 = vunpack.c.l.b16 %v698
    %v2231 = vunpack.c.h.b16 %v698
    %v2232 = vunpack.c.l.b16 %v699
    %v2233 = vunpack.c.h.b16 %v699
    %v2234 = vunpack.c.l.b16 %v700
    %v2235 = vunpack.c.h.b16 %v700
    %v2236 = vunpack.c.l.b16 %v701
    %v2237 = vunpack.c.h.b16 %v701
    %v2238 = vunpack.c.l.b16 %v702
    %v2239 = vunpack.c.h.b16 %v702
    %v2240 = vunpack.c.l.b16 %v703
    %v2241 = vunpack.c.h.b16 %v703
    %v2242 = vunpack.c.l.b16 %v704
    %v2243 = vunpack.c.h.b16 %v704
    %v2244 = vunpack.c.l.b16 %v705
    %v2245 = vunpack.c.h.b16 %v705
    %v2246 = vunpack.c.l.b16 %v706
    %v2247 = vunpack.c.h.b16 %v706
    %v2248 = vunpack.c.l.b16 %v707
    %v2249 = vunpack.c.h.b16 %v707
    %v2250 = vunpack.c.l.b16 %v708
    %v2251 = vunpack.c.h.b16 %v708
    %v2252 = vunpack.c.l.b16 %v709
    %v2253 = vunpack.c.h.b16 %v709
    %v2254 = vunpack.c.l.b16 %v710
    %v2255 = vunpack.c.h.b16 %v710
    %v2256 = vunpack.c.l.b16 %v711
    %v2257 = vunpack.c.h.b16 %v711
    %v2258 = vunpack.c.l.b16 %v712
    %v2259 = vunpack.c.h.b16 %v712
    %v2260 = vunpack.c.l.b16 %v713
    %v2261 = vunpack.c.h.b16 %v713
    %v2262 = vunpack.c.l.b16 %v714
    %v2263 = vunpack.c.h.b16 %v714
    %v2264 = vunpack.c.l.b16 %v715
    %v2265 = vunpack.c.h.b16 %v715
    %v2266 = vunpack.c.l.b16 %v716
    %v2267 = vunpack.c.h.b16 %v716
    %v2268 = vunpack.c.l.b16 %v717
    %v2269 = vunpack.c.h.b16 %v717
    %v2270 = vunpack.c.l.b16 %v718
    %v2271 = vunpack.c.h.b16 %v718
    %v2272 = vunpack.c.l.b16 %v719
    %v2273 = vunpack.c.h.b16 %v719
    %v2274 = vunpack.c.l.b16 %v720
    %v2275 = vunpack.c.h.b16 %v720
    %v2276 = vunpack.c.l.b16 %v721
    %v2277 = vunpack.c.h.b16 %v721
    %v2278 = vunpack.c.l.b16 %v722
    %v2279 = vunpack.c.h.b16 %v722
    %v2280 = vunpack.c.l.b16 %v723
    %v2281 = vunpack.c.h.b16 %v723
    %v2282 = vpack.c.b16 %v1262, %v1258
    %v2283 = vpack.c.b16 %v1263, %v1259
    %v2284 = vpack.c.b16 %v1264, %v1260
    %v2285 = vpack.c.b16 %v1265, %v1261
    %v2286 = vpack.c.b16 %v1270, %v1266
    %v2287 = vpack.c.b16 %v1271, %v1267
    %v2288 = vpack.c.b16 %v1272, %v1268
    %v2289 = vpack.c.b16 %v1273, %v1269
    %v2290 = vpack.c.b16 %v1278, %v1274
    %v2291 = vpack.c.b16 %v1279, %v1275
    %v2292 = vpack.c.b16 %v1280, %v1276
    %v2293 = vpack.c.b16 %v1281, %v1277
    %v2294 = vpack.c.b16 %v1286, %v1282
    %v2295 = vpack.c.b16 %v1287, %v1283
    %v2296 = vpack.c.b16 %v1288, %v1284
    %v2297 = vpack.c.b16 %v1289, %v1285
    %v2298 = vpack.c.b16 %v1294, %v1290
    %v2299 = vpack.c.b16 %v1295, %v1291
    %v2300 = vpack.c.b16 %v1296, %v1292
    %v2301 = vpack.c.b16 %v1297, %v1293
    %v2302 = vpack.c.b16 %v1302, %v1298
    %v2303 = vpack.c.b16 %v1303, %v1299
    %v2304 = vpack.c.b16 %v1304, %v1300
    %v2305 = vpack.c.b16 %v1305, %v1301
    %v2306 = vpack.c.b16 %v1310, %v1306
    %v2307 = vpack.c.b16 %v1311, %v1307
    %v2308 = vpack.c.b16 %v1312, %v1308
    %v2309 = vpack.c.b16 %v1313, %v1309
    %v2310 = vpack.c.b16 %v1318, %v1314
    %v2311 = vpack.c.b16 %v1319, %v1315
    %v2312 = vpack.c.b16 %v1320, %v1316
    %v2313 = vpack.c.b16 %v1321, %v1317
    %v2314 = vpack.c.b16 %v1326, %v1322
    %v2315 = vpack.c.b16 %v1327, %v1323
    %v2316 = vpack.c.b16 %v1328, %v1324
    %v2317 = vpack.c.b16 %v1329, %v1325
    %v2318 = vpack.c.b16 %v1334, %v1330
    %v2319 = vpack.c.b16 %v1335, %v1331
    %v2320 = vpack.c.b16 %v1336, %v1332
    %v2321 = vpack.c.b16 %v1337, %v1333
    %v2322 = vpack.c.b16 %v1342, %v1338
    %v2323 = vpack.c.b16 %v1343, %v1339
    %v2324 = vpack.c.b16 %v1344, %v1340
    %v2325 = vpack.c.b16 %v1345, %v1341
    %v2326 = vpack.c.b16 %v1350, %v1346
    %v2327 = vpack.c.b16 %v1351, %v1347
    %v2328 = vpack.c.b16 %v1352, %v1348
    %v2329 = vpack.c.b16 %v1353, %v1349
    %v2330 = vpack.c.b16 %v1358, %v1354
    %v2331 = vpack.c.b16 %v1359, %v1355
    %v2332 = vpack.c.b16 %v1360, %v1356
    %v2333 = vpack.c.b16 %v1361, %v1357
    %v2334 = vpack.c.b16 %v1366, %v1362
    %v2335 = vpack.c.b16 %v1367, %v1363
    %v2336 = vpack.c.b16 %v1368, %v1364
    %v2337 = vpack.c.b16 %v1369, %v1365
    %v2338 = vpack.c.b16 %v1374, %v1370
    %v2339 = vpack.c.b16 %v1375, %v1371
    %v2340 = vpack.c.b16 %v1376, %v1372
    %v2341 = vpack.c.b16 %v1377, %v1373
    %v2342 = vpack.c.b16 %v1382, %v1378
    %v2343 = vpack.c.b16 %v1383, %v1379
    %v2344 = vpack.c.b16 %v1384, %v1380
    %v2345 = vpack.c.b16 %v1385, %v1381
    %v2346 = vpack.c.b16 %v1390, %v1386
    %v2347 = vpack.c.b16 %v1391, %v1387
    %v2348 = vpack.c.b16 %v1392, %v1388
    %v2349 = vpack.c.b16 %v1393, %v1389
    %v2350 = vpack.c.b16 %v1398, %v1394
    %v2351 = vpack.c.b16 %v1399, %v1395
    %v2352 = vpack.c.b16 %v1400, %v1396
    %v2353 = vpack.c.b16 %v1401, %v1397
    %v2354 = vpack.c.b16 %v1406, %v1402
    %v2355 = vpack.c.b16 %v1407, %v1403
    %v2356 = vpack.c.b16 %v1408, %v1404
    %v2357 = vpack.c.b16 %v1409, %v1405
    %v2358 = vpack.c.b16 %v1414, %v1410
    %v2359 = vpack.c.b16 %v1415, %v1411
    %v2360 = vpack.c.b16 %v1416, %v1412
    %v2361 = vpack.c.b16 %v1417, %v1413
    %v2362 = vpack.c.b16 %v1422, %v1418
    %v2363 = vpack.c.b16 %v1423, %v1419
    %v2364 = vpack.c.b16 %v1424, %v1420
    %v2365 = vpack.c.b16 %v1425, %v1421
    %v2366 = vpack.c.b16 %v1430, %v1426
    %v2367 = vpack.c.b16 %v1431, %v1427
    %v2368 = vpack.c.b16 %v1432, %v1428
    %v2369 = vpack.c.b16 %v1433, %v1429
    %v2370 = vpack.c.b16 %v1438, %v1434
    %v2371 = vpack.c.b16 %v1439, %v1435
    %v2372 = vpack.c.b16 %v1440, %v1436
    %v2373 = vpack.c.b16 %v1441, %v1437
    %v2374 = vpack.c.b16 %v1446, %v1442
    %v2375 = vpack.c.b16 %v1447, %v1443
    %v2376 = vpack.c.b16 %v1448, %v1444
    %v2377 = vpack.c.b16 %v1449, %v1445
    %v2378 = vpack.c.b16 %v1454, %v1450
    %v2379 = vpack.c.b16 %v1455, %v1451
    %v2380 = vpack.c.b16 %v1456, %v1452
    %v2381 = vpack.c.b16 %v1457, %v1453
    %v2382 = vpack.c.b16 %v1462, %v1458
    %v2383 = vpack.c.b16 %v1463, %v1459
    %v2384 = vpack.c.b16 %v1464, %v1460
    %v2385 = vpack.c.b16 %v1465, %v1461
    %v2386 = vpack.c.b16 %v1470, %v1466
    %v2387 = vpack.c.b16 %v1471, %v1467
    %v2388 = vpack.c.b16 %v1472, %v1468
    %v2389 = vpack.c.b16 %v1473, %v1469
    %v2390 = vpack.c.b16 %v1478, %v1474
    %v2391 = vpack.c.b16 %v1479, %v1475
    %v2392 = vpack.c.b16 %v1480, %v1476
    %v2393 = vpack.c.b16 %v1481, %v1477
    %v2394 = vpack.c.b16 %v1486, %v1482
    %v2395 = vpack.c.b16 %v1487, %v1483
    %v2396 = vpack.c.b16 %v1488, %v1484
    %v2397 = vpack.c.b16 %v1489, %v1485
    %v2398 = vpack.c.b16 %v1494, %v1490
    %v2399 = vpack.c.b16 %v1495, %v1491
    %v2400 = vpack.c.b16 %v1496, %v1492
    %v2401 = vpack.c.b16 %v1497, %v1493
    %v2402 = vpack.c.b16 %v1502, %v1498
    %v2403 = vpack.c.b16 %v1503, %v1499
    %v2404 = vpack.c.b16 %v1504, %v1500
    %v2405 = vpack.c.b16 %v1505, %v1501
    %v2406 = vpack.c.b16 %v1510, %v1506
    %v2407 = vpack.c.b16 %v1511, %v1507
    %v2408 = vpack.c.b16 %v1512, %v1508
    %v2409 = vpack.c.b16 %v1513, %v1509
    %v2410 = vpack.c.b16 %v1518, %v1514
    %v2411 = vpack.c.b16 %v1519, %v1515
    %v2412 = vpack.c.b16 %v1520, %v1516
    %v2413 = vpack.c.b16 %v1521, %v1517
    %v2414 = vpack.c.b16 %v1526, %v1522
    %v2415 = vpack.c.b16 %v1527, %v1523
    %v2416 = vpack.c.b16 %v1528, %v1524
    %v2417 = vpack.c.b16 %v1529, %v1525
    %v2418 = vpack.c.b16 %v1534, %v1530
    %v2419 = vpack.c.b16 %v1535, %v1531
    %v2420 = vpack.c.b16 %v1536, %v1532
    %v2421 = vpack.c.b16 %v1537, %v1533
    %v2422 = vpack.c.b16 %v1542, %v1538
    %v2423 = vpack.c.b16 %v1543, %v1539
    %v2424 = vpack.c.b16 %v1544, %v1540
    %v2425 = vpack.c.b16 %v1545, %v1541
    %v2426 = vpack.c.b16 %v1550, %v1546
    %v2427 = vpack.c.b16 %v1551, %v1547
    %v2428 = vpack.c.b16 %v1552, %v1548
    %v2429 = vpack.c.b16 %v1553, %v1549
    %v2430 = vpack.c.b16 %v1558, %v1554
    %v2431 = vpack.c.b16 %v1559, %v1555
    %v2432 = vpack.c.b16 %v1560, %v1556
    %v2433 = vpack.c.b16 %v1561, %v1557
    %v2434 = vpack.c.b16 %v1566, %v1562
    %v2435 = vpack.c.b16 %v1567, %v1563
    %v2436 = vpack.c.b16 %v1568, %v1564
    %v2437 = vpack.c.b16 %v1569, %v1565
    %v2438 = vpack.c.b16 %v1574, %v1570
    %v2439 = vpack.c.b16 %v1575, %v1571
    %v2440 = vpack.c.b16 %v1576, %v1572
    %v2441 = vpack.c.b16 %v1577, %v1573
    %v2442 = vpack.c.b16 %v1582, %v1578
    %v2443 = vpack.c.b16 %v1583, %v1579
    %v2444 = vpack.c.b16 %v1584, %v1580
    %v2445 = vpack.c.b16 %v1585, %v1581
    %v2446 = vpack.c.b16 %v1590, %v1586
    %v2447 = vpack.c.b16 %v1591, %v1587
    %v2448 = vpack.c.b16 %v1592, %v1588
    %v2449 = vpack.c.b16 %v1593, %v1589
    %v2450 = vpack.c.b16 %v1598, %v1594
    %v2451 = vpack.c.b16 %v1599, %v1595
    %v2452 = vpack.c.b16 %v1600, %v1596
    %v2453 = vpack.c.b16 %v1601, %v1597
    %v2454 = vpack.c.b16 %v1606, %v1602
    %v2455 = vpack.c.b16 %v1607, %v1603
    %v2456 = vpack.c.b16 %v1608, %v1604
    %v2457 = vpack.c.b16 %v1609, %v1605
    %v2458 = vpack.c.b16 %v1614, %v1610
    %v2459 = vpack.c.b16 %v1615, %v1611
    %v2460 = vpack.c.b16 %v1616, %v1612
    %v2461 = vpack.c.b16 %v1617, %v1613
    %v2462 = vpack.c.b16 %v1622, %v1618
    %v2463 = vpack.c.b16 %v1623, %v1619
    %v2464 = vpack.c.b16 %v1624, %v1620
    %v2465 = vpack.c.b16 %v1625, %v1621
    %v2466 = vpack.c.b16 %v1630, %v1626
    %v2467 = vpack.c.b16 %v1631, %v1627
    %v2468 = vpack.c.b16 %v1632, %v1628
    %v2469 = vpack.c.b16 %v1633, %v1629
    %v2470 = vpack.c.b16 %v1638, %v1634
    %v2471 = vpack.c.b16 %v1639, %v1635
    %v2472 = vpack.c.b16 %v1640, %v1636
    %v2473 = vpack.c.b16 %v1641, %v1637
    %v2474 = vpack.c.b16 %v1646, %v1642
    %v2475 = vpack.c.b16 %v1647, %v1643
    %v2476 = vpack.c.b16 %v1648, %v1644
    %v2477 = vpack.c.b16 %v1649, %v1645
    %v2478 = vpack.c.b16 %v1654, %v1650
    %v2479 = vpack.c.b16 %v1655, %v1651
    %v2480 = vpack.c.b16 %v1656, %v1652
    %v2481 = vpack.c.b16 %v1657, %v1653
    %v2482 = vpack.c.b16 %v1662, %v1658
    %v2483 = vpack.c.b16 %v1663, %v1659
    %v2484 = vpack.c.b16 %v1664, %v1660
    %v2485 = vpack.c.b16 %v1665, %v1661
    %v2486 = vpack.c.b16 %v1670, %v1666
    %v2487 = vpack.c.b16 %v1671, %v1667
    %v2488 = vpack.c.b16 %v1672, %v1668
    %v2489 = vpack.c.b16 %v1673, %v1669
    %v2490 = vpack.c.b16 %v1678, %v1674
    %v2491 = vpack.c.b16 %v1679, %v1675
    %v2492 = vpack.c.b16 %v1680, %v1676
    %v2493 = vpack.c.b16 %v1681, %v1677
    %v2494 = vpack.c.b16 %v1686, %v1682
    %v2495 = vpack.c.b16 %v1687, %v1683
    %v2496 = vpack.c.b16 %v1688, %v1684
    %v2497 = vpack.c.b16 %v1689, %v1685
    %v2498 = vpack.c.b16 %v1694, %v1690
    %v2499 = vpack.c.b16 %v1695, %v1691
    %v2500 = vpack.c.b16 %v1696, %v1692
    %v2501 = vpack.c.b16 %v1697, %v1693
    %v2502 = vpack.c.b16 %v1702, %v1698
    %v2503 = vpack.c.b16 %v1703, %v1699
    %v2504 = vpack.c.b16 %v1704, %v1700
    %v2505 = vpack.c.b16 %v1705, %v1701
    %v2506 = vpack.c.b16 %v1710, %v1706
    %v2507 = vpack.c.b16 %v1711, %v1707
    %v2508 = vpack.c.b16 %v1712, %v1708
    %v2509 = vpack.c.b16 %v1713, %v1709
    %v2510 = vpack.c.b16 %v1718, %v1714
    %v2511 = vpack.c.b16 %v1719, %v1715
    %v2512 = vpack.c.b16 %v1720, %v1716
    %v2513 = vpack.c.b16 %v1721, %v1717
    %v2514 = vpack.c.b16 %v1726, %v1722
    %v2515 = vpack.c.b16 %v1727, %v1723
    %v2516 = vpack.c.b16 %v1728, %v1724
    %v2517 = vpack.c.b16 %v1729, %v1725
    %v2518 = vpack.c.b16 %v1734, %v1730
    %v2519 = vpack.c.b16 %v1735, %v1731
    %v2520 = vpack.c.b16 %v1736, %v1732
    %v2521 = vpack.c.b16 %v1737, %v1733
    %v2522 = vpack.c.b16 %v1742, %v1738
    %v2523 = vpack.c.b16 %v1743, %v1739
    %v2524 = vpack.c.b16 %v1744, %v1740
    %v2525 = vpack.c.b16 %v1745, %v1741
    %v2526 = vpack.c.b16 %v1750, %v1746
    %v2527 = vpack.c.b16 %v1751, %v1747
    %v2528 = vpack.c.b16 %v1752, %v1748
    %v2529 = vpack.c.b16 %v1753, %v1749
    %v2530 = vpack.c.b16 %v1758, %v1754
    %v2531 = vpack.c.b16 %v1759, %v1755
    %v2532 = vpack.c.b16 %v1760, %v1756
    %v2533 = vpack.c.b16 %v1761, %v1757
    %v2534 = vpack.c.b16 %v1766, %v1762
    %v2535 = vpack.c.b16 %v1767, %v1763
    %v2536 = vpack.c.b16 %v1768, %v1764
    %v2537 = vpack.c.b16 %v1769, %v1765
    %v2538 = vpack.c.b16 %v1774, %v1770
    %v2539 = vpack.c.b16 %v1775, %v1771
    %v2540 = vpack.c.b16 %v1776, %v1772
    %v2541 = vpack.c.b16 %v1777, %v1773
    %v2542 = vpack.c.b16 %v1782, %v1778
    %v2543 = vpack.c.b16 %v1783, %v1779
    %v2544 = vpack.c.b16 %v1784, %v1780
    %v2545 = vpack.c.b16 %v1785, %v1781
    %v2546 = vpack.c.b16 %v1790, %v1786
    %v2547 = vpack.c.b16 %v1791, %v1787
    %v2548 = vpack.c.b16 %v1792, %v1788
    %v2549 = vpack.c.b16 %v1793, %v1789
    %v2550 = vpack.c.b16 %v1798, %v1794
    %v2551 = vpack.c.b16 %v1799, %v1795
    %v2552 = vpack.c.b16 %v1800, %v1796
    %v2553 = vpack.c.b16 %v1801, %v1797
    %v2554 = vpack.c.b16 %v1806, %v1802
    %v2555 = vpack.c.b16 %v1807, %v1803
    %v2556 = vpack.c.b16 %v1808, %v1804
    %v2557 = vpack.c.b16 %v1809, %v1805
    %v2558 = vpack.c.b16 %v1814, %v1810
    %v2559 = vpack.c.b16 %v1815, %v1811
    %v2560 = vpack.c.b16 %v1816, %v1812
    %v2561 = vpack.c.b16 %v1817, %v1813
    %v2562 = vpack.c.b16 %v1822, %v1818
    %v2563 = vpack.c.b16 %v1823, %v1819
    %v2564 = vpack.c.b16 %v1824, %v1820
    %v2565 = vpack.c.b16 %v1825, %v1821
    %v2566 = vpack.c.b16 %v1830, %v1826
    %v2567 = vpack.c.b16 %v1831, %v1827
    %v2568 = vpack.c.b16 %v1832, %v1828
    %v2569 = vpack.c.b16 %v1833, %v1829
    %v2570 = vpack.c.b16 %v1838, %v1834
    %v2571 = vpack.c.b16 %v1839, %v1835
    %v2572 = vpack.c.b16 %v1840, %v1836
    %v2573 = vpack.c.b16 %v1841, %v1837
    %v2574 = vpack.c.b16 %v1846, %v1842
    %v2575 = vpack.c.b16 %v1847, %v1843
    %v2576 = vpack.c.b16 %v1848, %v1844
    %v2577 = vpack.c.b16 %v1849, %v1845
    %v2578 = vpack.c.b16 %v1854, %v1850
    %v2579 = vpack.c.b16 %v1855, %v1851
    %v2580 = vpack.c.b16 %v1856, %v1852
    %v2581 = vpack.c.b16 %v1857, %v1853
    %v2582 = vpack.c.b16 %v1862, %v1858
    %v2583 = vpack.c.b16 %v1863, %v1859
    %v2584 = vpack.c.b16 %v1864, %v1860
    %v2585 = vpack.c.b16 %v1865, %v1861
    %v2586 = vpack.c.b16 %v1870, %v1866
    %v2587 = vpack.c.b16 %v1871, %v1867
    %v2588 = vpack.c.b16 %v1872, %v1868
    %v2589 = vpack.c.b16 %v1873, %v1869
    %v2590 = vpack.c.b16 %v1878, %v1874
    %v2591 = vpack.c.b16 %v1879, %v1875
    %v2592 = vpack.c.b16 %v1880, %v1876
    %v2593 = vpack.c.b16 %v1881, %v1877
    %v2594 = vpack.c.b16 %v1886, %v1882
    %v2595 = vpack.c.b16 %v1887, %v1883
    %v2596 = vpack.c.b16 %v1888, %v1884
    %v2597 = vpack.c.b16 %v1889, %v1885
    %v2598 = vpack.c.b16 %v1894, %v1890
    %v2599 = vpack.c.b16 %v1895, %v1891
    %v2600 = vpack.c.b16 %v1896, %v1892
    %v2601 = vpack.c.b16 %v1897, %v1893
    %v2602 = vpack.c.b16 %v1902, %v1898
    %v2603 = vpack.c.b16 %v1903, %v1899
    %v2604 = vpack.c.b16 %v1904, %v1900
    %v2605 = vpack.c.b16 %v1905, %v1901
    %v2606 = vpack.c.b16 %v1910, %v1906
    %v2607 = vpack.c.b16 %v1911, %v1907
    %v2608 = vpack.c.b16 %v1912, %v1908
    %v2609 = vpack.c.b16 %v1913, %v1909
    %v2610 = vpack.c.b16 %v1918, %v1914
    %v2611 = vpack.c.b16 %v1919, %v1915
    %v2612 = vpack.c.b16 %v1920, %v1916
    %v2613 = vpack.c.b16 %v1921, %v1917
    %v2614 = vpack.c.b16 %v1926, %v1922
    %v2615 = vpack.c.b16 %v1927, %v1923
    %v2616 = vpack.c.b16 %v1928, %v1924
    %v2617 = vpack.c.b16 %v1929, %v1925
    %v2618 = vpack.c.b16 %v1934, %v1930
    %v2619 = vpack.c.b16 %v1935, %v1931
    %v2620 = vpack.c.b16 %v1936, %v1932
    %v2621 = vpack.c.b16 %v1937, %v1933
    %v2622 = vpack.c.b16 %v1942, %v1938
    %v2623 = vpack.c.b16 %v1943, %v1939
    %v2624 = vpack.c.b16 %v1944, %v1940
    %v2625 = vpack.c.b16 %v1945, %v1941
    %v2626 = vpack.c.b16 %v1950, %v1946
    %v2627 = vpack.c.b16 %v1951, %v1947
    %v2628 = vpack.c.b16 %v1952, %v1948
    %v2629 = vpack.c.b16 %v1953, %v1949
    %v2630 = vpack.c.b16 %v1958, %v1954
    %v2631 = vpack.c.b16 %v1959, %v1955
    %v2632 = vpack.c.b16 %v1960, %v1956
    %v2633 = vpack.c.b16 %v1961, %v1957
    %v2634 = vpack.c.b16 %v1966, %v1962
    %v2635 = vpack.c.b16 %v1967, %v1963
    %v2636 = vpack.c.b16 %v1968, %v1964
    %v2637 = vpack.c.b16 %v1969, %v1965
    %v2638 = vpack.c.b16 %v1974, %v1970
    %v2639 = vpack.c.b16 %v1975, %v1971
    %v2640 = vpack.c.b16 %v1976, %v1972
    %v2641 = vpack.c.b16 %v1977, %v1973
    %v2642 = vpack.c.b16 %v1982, %v1978
    %v2643 = vpack.c.b16 %v1983, %v1979
    %v2644 = vpack.c.b16 %v1984, %v1980
    %v2645 = vpack.c.b16 %v1985, %v1981
    %v2646 = vpack.c.b16 %v1990, %v1986
    %v2647 = vpack.c.b16 %v1991, %v1987
    %v2648 = vpack.c.b16 %v1992, %v1988
    %v2649 = vpack.c.b16 %v1993, %v1989
    %v2650 = vpack.c.b16 %v1998, %v1994
    %v2651 = vpack.c.b16 %v1999, %v1995
    %v2652 = vpack.c.b16 %v2000, %v1996
    %v2653 = vpack.c.b16 %v2001, %v1997
    %v2654 = vpack.c.b16 %v2006, %v2002
    %v2655 = vpack.c.b16 %v2007, %v2003
    %v2656 = vpack.c.b16 %v2008, %v2004
    %v2657 = vpack.c.b16 %v2009, %v2005
    %v2658 = vpack.c.b16 %v2014, %v2010
    %v2659 = vpack.c.b16 %v2015, %v2011
    %v2660 = vpack.c.b16 %v2016, %v2012
    %v2661 = vpack.c.b16 %v2017, %v2013
    %v2662 = vpack.c.b16 %v2022, %v2018
    %v2663 = vpack.c.b16 %v2023, %v2019
    %v2664 = vpack.c.b16 %v2024, %v2020
    %v2665 = vpack.c.b16 %v2025, %v2021
    %v2666 = vpack.c.b16 %v2030, %v2026
    %v2667 = vpack.c.b16 %v2031, %v2027
    %v2668 = vpack.c.b16 %v2032, %v2028
    %v2669 = vpack.c.b16 %v2033, %v2029
    %v2670 = vpack.c.b16 %v2038, %v2034
    %v2671 = vpack.c.b16 %v2039, %v2035
    %v2672 = vpack.c.b16 %v2040, %v2036
    %v2673 = vpack.c.b16 %v2041, %v2037
    %v2674 = vpack.c.b16 %v2046, %v2042
    %v2675 = vpack.c.b16 %v2047, %v2043
    %v2676 = vpack.c.b16 %v2048, %v2044
    %v2677 = vpack.c.b16 %v2049, %v2045
    %v2678 = vpack.c.b16 %v2054, %v2050
    %v2679 = vpack.c.b16 %v2055, %v2051
    %v2680 = vpack.c.b16 %v2056, %v2052
    %v2681 = vpack.c.b16 %v2057, %v2053
    %v2682 = vpack.c.b16 %v2062, %v2058
    %v2683 = vpack.c.b16 %v2063, %v2059
    %v2684 = vpack.c.b16 %v2064, %v2060
    %v2685 = vpack.c.b16 %v2065, %v2061
    %v2686 = vpack.c.b16 %v2070, %v2066
    %v2687 = vpack.c.b16 %v2071, %v2067
    %v2688 = vpack.c.b16 %v2072, %v2068
    %v2689 = vpack.c.b16 %v2073, %v2069
    %v2690 = vpack.c.b16 %v2078, %v2074
    %v2691 = vpack.c.b16 %v2079, %v2075
    %v2692 = vpack.c.b16 %v2080, %v2076
    %v2693 = vpack.c.b16 %v2081, %v2077
    %v2694 = vpack.c.b16 %v2086, %v2082
    %v2695 = vpack.c.b16 %v2087, %v2083
    %v2696 = vpack.c.b16 %v2088, %v2084
    %v2697 = vpack.c.b16 %v2089, %v2085
    %v2698 = vpack.c.b16 %v2094, %v2090
    %v2699 = vpack.c.b16 %v2095, %v2091
    %v2700 = vpack.c.b16 %v2096, %v2092
    %v2701 = vpack.c.b16 %v2097, %v2093
    %v2702 = vpack.c.b16 %v2102, %v2098
    %v2703 = vpack.c.b16 %v2103, %v2099
    %v2704 = vpack.c.b16 %v2104, %v2100
    %v2705 = vpack.c.b16 %v2105, %v2101
    %v2706 = vpack.c.b16 %v2110, %v2106
    %v2707 = vpack.c.b16 %v2111, %v2107
    %v2708 = vpack.c.b16 %v2112, %v2108
    %v2709 = vpack.c.b16 %v2113, %v2109
    %v2710 = vpack.c.b16 %v2118, %v2114
    %v2711 = vpack.c.b16 %v2119, %v2115
    %v2712 = vpack.c.b16 %v2120, %v2116
    %v2713 = vpack.c.b16 %v2121, %v2117
    %v2714 = vpack.c.b16 %v2126, %v2122
    %v2715 = vpack.c.b16 %v2127, %v2123
    %v2716 = vpack.c.b16 %v2128, %v2124
    %v2717 = vpack.c.b16 %v2129, %v2125
    %v2718 = vpack.c.b16 %v2134, %v2130
    %v2719 = vpack.c.b16 %v2135, %v2131
    %v2720 = vpack.c.b16 %v2136, %v2132
    %v2721 = vpack.c.b16 %v2137, %v2133
    %v2722 = vpack.c.b16 %v2142, %v2138
    %v2723 = vpack.c.b16 %v2143, %v2139
    %v2724 = vpack.c.b16 %v2144, %v2140
    %v2725 = vpack.c.b16 %v2145, %v2141
    %v2726 = vpack.c.b16 %v2150, %v2146
    %v2727 = vpack.c.b16 %v2151, %v2147
    %v2728 = vpack.c.b16 %v2152, %v2148
    %v2729 = vpack.c.b16 %v2153, %v2149
    %v2730 = vpack.c.b16 %v2158, %v2154
    %v2731 = vpack.c.b16 %v2159, %v2155
    %v2732 = vpack.c.b16 %v2160, %v2156
    %v2733 = vpack.c.b16 %v2161, %v2157
    %v2734 = vpack.c.b16 %v2166, %v2162
    %v2735 = vpack.c.b16 %v2167, %v2163
    %v2736 = vpack.c.b16 %v2168, %v2164
    %v2737 = vpack.c.b16 %v2169, %v2165
    %v2738 = vpack.c.b16 %v2174, %v2170
    %v2739 = vpack.c.b16 %v2175, %v2171
    %v2740 = vpack.c.b16 %v2176, %v2172
    %v2741 = vpack.c.b16 %v2177, %v2173
    %v2742 = vpack.c.b16 %v2182, %v2178
    %v2743 = vpack.c.b16 %v2183, %v2179
    %v2744 = vpack.c.b16 %v2184, %v2180
    %v2745 = vpack.c.b16 %v2185, %v2181
    %v2746 = vpack.c.b16 %v2190, %v2186
    %v2747 = vpack.c.b16 %v2191, %v2187
    %v2748 = vpack.c.b16 %v2192, %v2188
    %v2749 = vpack.c.b16 %v2193, %v2189
    %v2750 = vpack.c.b16 %v2198, %v2194
    %v2751 = vpack.c.b16 %v2199, %v2195
    %v2752 = vpack.c.b16 %v2200, %v2196
    %v2753 = vpack.c.b16 %v2201, %v2197
    %v2754 = vpack.c.b16 %v2206, %v2202
    %v2755 = vpack.c.b16 %v2207, %v2203
    %v2756 = vpack.c.b16 %v2208, %v2204
    %v2757 = vpack.c.b16 %v2209, %v2205
    %v2758 = vpack.c.b16 %v2214, %v2210
    %v2759 = vpack.c.b16 %v2215, %v2211
    %v2760 = vpack.c.b16 %v2216, %v2212
    %v2761 = vpack.c.b16 %v2217, %v2213
    %v2762 = vpack.c.b16 %v2222, %v2218
    %v2763 = vpack.c.b16 %v2223, %v2219
    %v2764 = vpack.c.b16 %v2224, %v2220
    %v2765 = vpack.c.b16 %v2225, %v2221
    %v2766 = vpack.c.b16 %v2230, %v2226
    %v2767 = vpack.c.b16 %v2231, %v2227
    %v2768 = vpack.c.b16 %v2232, %v2228
    %v2769 = vpack.c.b16 %v2233, %v2229
    %v2770 = vpack.c.b16 %v2238, %v2234
    %v2771 = vpack.c.b16 %v2239, %v2235
    %v2772 = vpack.c.b16 %v2240, %v2236
    %v2773 = vpack.c.b16 %v2241, %v2237
    %v2774 = vpack.c.b16 %v2246, %v2242
    %v2775 = vpack.c.b16 %v2247, %v2243
    %v2776 = vpack.c.b16 %v2248, %v2244
    %v2777 = vpack.c.b16 %v2249, %v2245
    %v2778 = vpack.c.b16 %v2254, %v2250
    %v2779 = vpack.c.b16 %v2255, %v2251
    %v2780 = vpack.c.b16 %v2256, %v2252
    %v2781 = vpack.c.b16 %v2257, %v2253
    %v2782 = vpack.c.b16 %v2262, %v2258
    %v2783 = vpack.c.b16 %v2263, %v2259
    %v2784 = vpack.c.b16 %v2264, %v2260
    %v2785 = vpack.c.b16 %v2265, %v2261
    %v2786 = vpack.c.b16 %v2270, %v2266
    %v2787 = vpack.c.b16 %v2271, %v2267
    %v2788 = vpack.c.b16 %v2272, %v2268
    %v2789 = vpack.c.b16 %v2273, %v2269
    %v2790 = vpack.c.b16 %v2278, %v2274
    %v2791 = vpack.c.b16 %v2279, %v2275
    %v2792 = vpack.c.b16 %v2280, %v2276
    %v2793 = vpack.c.b16 %v2281, %v2277
    %3306 = vmatprep.subr.bf16.mxu0 %v2283
    %3307 = vmatpush1.bf16.msra.mxu0 %v2282
    %3308 = vmatprep.subr.bf16.mxu0 %v2287
    %3309 = vmatpush1.bf16.msra.mxu0 %v2286
    %3310 = vmatprep.subr.bf16.mxu0 %v2291
    %3311 = vmatpush1.bf16.msra.mxu0 %v2290
    %3312 = vmatprep.subr.bf16.mxu0 %v2295
    %3313 = vmatpush1.bf16.msra.mxu0 %v2294
    %3314 = vmatprep.subr.bf16.mxu0 %v2299
    %3315 = vmatpush1.bf16.msra.mxu0 %v2298
    %3316 = vmatprep.subr.bf16.mxu0 %v2303
    %3317 = vmatpush1.bf16.msra.mxu0 %v2302
    %3318 = vmatprep.subr.bf16.mxu0 %v2307
    %3319 = vmatpush1.bf16.msra.mxu0 %v2306
    %3320 = vmatprep.subr.bf16.mxu0 %v2311
    %3321 = vmatpush1.bf16.msra.mxu0 %v2310
    %3322 = vmatprep.subr.bf16.mxu0 %v2315
    %3323 = vmatpush1.bf16.msra.mxu0 %v2314
    %3324 = vmatprep.subr.bf16.mxu0 %v2319
    %3325 = vmatpush1.bf16.msra.mxu0 %v2318
    %3326 = vmatprep.subr.bf16.mxu0 %v2323
    %3327 = vmatpush1.bf16.msra.mxu0 %v2322
    %3328 = vmatprep.subr.bf16.mxu0 %v2327
    %3329 = vmatpush1.bf16.msra.mxu0 %v2326
    %3330 = vmatprep.subr.bf16.mxu0 %v2331
    %3331 = vmatpush1.bf16.msra.mxu0 %v2330
    %3332 = vmatprep.subr.bf16.mxu0 %v2335
    %3333 = vmatpush1.bf16.msra.mxu0 %v2334
    %3334 = vmatprep.subr.bf16.mxu0 %v2339
    %3335 = vmatpush1.bf16.msra.mxu0 %v2338
    %3336 = vmatprep.subr.bf16.mxu0 %v2343
    %3337 = vmatpush1.bf16.msra.mxu0 %v2342
    %3338 = vmatprep.mubr.bf16.mxu0 %v197
    %3339 = vmatmul.mubr.bf16.gmra.mrb[0].mxu0 %v196
    %v3340 = vpop.f32.mrb[0].mxu0
    %v3341 = vadd.f32 %v729, %v3340
    %v3342 = vpop.f32.mrb[0].mxu0
    %v3343 = vadd.f32 %v733, %v3342
    %v3344 = vpop.f32.mrb[0].mxu0
    %v3345 = vpop.f32.mrb[0].mxu0
    %3346 = vdwg.mxu0
    %3347 = vmatprep.subr.bf16.mxu0 %v2347
    %3348 = vmatpush1.bf16.msra.mxu0 %v2346
    %3349 = vmatprep.subr.bf16.mxu0 %v2351
    %3350 = vmatpush1.bf16.msra.mxu0 %v2350
    %3351 = vmatprep.subr.bf16.mxu0 %v2355
    %3352 = vmatpush1.bf16.msra.mxu0 %v2354
    %3353 = vmatprep.subr.bf16.mxu0 %v2359
    %3354 = vmatpush1.bf16.msra.mxu0 %v2358
    %3355 = vmatprep.subr.bf16.mxu0 %v2363
    %3356 = vmatpush1.bf16.msra.mxu0 %v2362
    %3357 = vmatprep.subr.bf16.mxu0 %v2367
    %3358 = vmatpush1.bf16.msra.mxu0 %v2366
    %3359 = vmatprep.subr.bf16.mxu0 %v2371
    %3360 = vmatpush1.bf16.msra.mxu0 %v2370
    %3361 = vmatprep.subr.bf16.mxu0 %v2375
    %3362 = vmatpush1.bf16.msra.mxu0 %v2374
    %3363 = vmatprep.subr.bf16.mxu0 %v2379
    %3364 = vmatpush1.bf16.msra.mxu0 %v2378
    %3365 = vmatprep.subr.bf16.mxu0 %v2383
    %3366 = vmatpush1.bf16.msra.mxu0 %v2382
    %3367 = vmatprep.subr.bf16.mxu0 %v2387
    %3368 = vmatpush1.bf16.msra.mxu0 %v2386
    %3369 = vmatprep.subr.bf16.mxu0 %v2391
    %3370 = vmatpush1.bf16.msra.mxu0 %v2390
    %3371 = vmatprep.subr.bf16.mxu0 %v2395
    %3372 = vmatpush1.bf16.msra.mxu0 %v2394
    %3373 = vmatprep.subr.bf16.mxu0 %v2399
    %3374 = vmatpush1.bf16.msra.mxu0 %v2398
    %3375 = vmatprep.subr.bf16.mxu0 %v2403
    %3376 = vmatpush1.bf16.msra.mxu0 %v2402
    %3377 = vmatprep.subr.bf16.mxu0 %v2407
    %3378 = vmatpush1.bf16.msra.mxu0 %v2406
    %3379 = vmatprep.mubr.bf16.mxu0 %v199
    %3380 = vmatmul.mubr.bf16.gmra.mrb[0].mxu0 %v198
    %v3381 = vpop.f32.mrb[0].mxu0
    %v3382 = vadd.f32 %v3341, %v3381
    %v3383 = vpop.f32.mrb[0].mxu0
    %v3384 = vadd.f32 %v3343, %v3383
    %v3385 = vpop.f32.mrb[0].mxu0
    %v3386 = vpop.f32.mrb[0].mxu0
    %3387 = vdwg.mxu0
    %3388 = vmatprep.subr.bf16.mxu0 %v2411
    %3389 = vmatpush1.bf16.msra.mxu0 %v2410
    %3390 = vmatprep.subr.bf16.mxu0 %v2415
    %3391 = vmatpush1.bf16.msra.mxu0 %v2414
    %3392 = vmatprep.subr.bf16.mxu0 %v2419
    %3393 = vmatpush1.bf16.msra.mxu0 %v2418
    %3394 = vmatprep.subr.bf16.mxu0 %v2423
    %3395 = vmatpush1.bf16.msra.mxu0 %v2422
    %3396 = vmatprep.subr.bf16.mxu0 %v2427
    %3397 = vmatpush1.bf16.msra.mxu0 %v2426
    %3398 = vmatprep.subr.bf16.mxu0 %v2431
    %3399 = vmatpush1.bf16.msra.mxu0 %v2430
    %3400 = vmatprep.subr.bf16.mxu0 %v2435
    %3401 = vmatpush1.bf16.msra.mxu0 %v2434
    %3402 = vmatprep.subr.bf16.mxu0 %v2439
    %3403 = vmatpush1.bf16.msra.mxu0 %v2438
    %3404 = vmatprep.subr.bf16.mxu0 %v2443
    %3405 = vmatpush1.bf16.msra.mxu0 %v2442
    %3406 = vmatprep.subr.bf16.mxu0 %v2447
    %3407 = vmatpush1.bf16.msra.mxu0 %v2446
    %3408 = vmatprep.subr.bf16.mxu0 %v2451
    %3409 = vmatpush1.bf16.msra.mxu0 %v2450
    %3410 = vmatprep.subr.bf16.mxu0 %v2455
    %3411 = vmatpush1.bf16.msra.mxu0 %v2454
    %3412 = vmatprep.subr.bf16.mxu0 %v2459
    %3413 = vmatpush1.bf16.msra.mxu0 %v2458
    %3414 = vmatprep.subr.bf16.mxu0 %v2463
    %3415 = vmatpush1.bf16.msra.mxu0 %v2462
    %3416 = vmatprep.subr.bf16.mxu0 %v2467
    %3417 = vmatpush1.bf16.msra.mxu0 %v2466
    %3418 = vmatprep.subr.bf16.mxu0 %v2471
    %3419 = vmatpush1.bf16.msra.mxu0 %v2470
    %3420 = vmatprep.mubr.bf16.mxu0 %v201
    %3421 = vmatmul.mubr.bf16.gmra.mrb[0].mxu0 %v200
    %v3422 = vpop.f32.mrb[0].mxu0
    %v3423 = vadd.f32 %v3382, %v3422
    %v3424 = vpop.f32.mrb[0].mxu0
    %v3425 = vadd.f32 %v3384, %v3424
    %v3426 = vpop.f32.mrb[0].mxu0
    %v3427 = vpop.f32.mrb[0].mxu0
    %3428 = vdwg.mxu0
    %3429 = vmatprep.subr.bf16.mxu0 %v2475
    %3430 = vmatpush1.bf16.msra.mxu0 %v2474
    %3431 = vmatprep.subr.bf16.mxu0 %v2479
    %3432 = vmatpush1.bf16.msra.mxu0 %v2478
    %3433 = vmatprep.subr.bf16.mxu0 %v2483
    %3434 = vmatpush1.bf16.msra.mxu0 %v2482
    %3435 = vmatprep.subr.bf16.mxu0 %v2487
    %3436 = vmatpush1.bf16.msra.mxu0 %v2486
    %3437 = vmatprep.subr.bf16.mxu0 %v2491
    %3438 = vmatpush1.bf16.msra.mxu0 %v2490
    %3439 = vmatprep.subr.bf16.mxu0 %v2495
    %3440 = vmatpush1.bf16.msra.mxu0 %v2494
    %3441 = vmatprep.subr.bf16.mxu0 %v2499
    %3442 = vmatpush1.bf16.msra.mxu0 %v2498
    %3443 = vmatprep.subr.bf16.mxu0 %v2503
    %3444 = vmatpush1.bf16.msra.mxu0 %v2502
    %3445 = vmatprep.subr.bf16.mxu0 %v2507
    %3446 = vmatpush1.bf16.msra.mxu0 %v2506
    %3447 = vmatprep.subr.bf16.mxu0 %v2511
    %3448 = vmatpush1.bf16.msra.mxu0 %v2510
    %3449 = vmatprep.subr.bf16.mxu0 %v2515
    %3450 = vmatpush1.bf16.msra.mxu0 %v2514
    %3451 = vmatprep.subr.bf16.mxu0 %v2519
    %3452 = vmatpush1.bf16.msra.mxu0 %v2518
    %3453 = vmatprep.subr.bf16.mxu0 %v2523
    %3454 = vmatpush1.bf16.msra.mxu0 %v2522
    %3455 = vmatprep.subr.bf16.mxu0 %v2527
    %3456 = vmatpush1.bf16.msra.mxu0 %v2526
    %3457 = vmatprep.subr.bf16.mxu0 %v2531
    %3458 = vmatpush1.bf16.msra.mxu0 %v2530
    %3459 = vmatprep.subr.bf16.mxu0 %v2535
    %3460 = vmatpush1.bf16.msra.mxu0 %v2534
    %3461 = vmatprep.mubr.bf16.mxu0 %v203
    %3462 = vmatmul.mubr.bf16.gmra.mrb[0].mxu0 %v202
    %v3463 = vpop.f32.mrb[0].mxu0
    %v3464 = vadd.f32 %v3423, %v3463
    %v3465 = vpop.f32.mrb[0].mxu0
    %v3466 = vadd.f32 %v3425, %v3465
    %v3467 = vpop.f32.mrb[0].mxu0
    %v3468 = vpop.f32.mrb[0].mxu0
    %3469 = vdwg.mxu0
    %3470 = vmatprep.subr.bf16.mxu0 %v2539
    %3471 = vmatpush1.bf16.msra.mxu0 %v2538
    %3472 = vmatprep.subr.bf16.mxu0 %v2543
    %3473 = vmatpush1.bf16.msra.mxu0 %v2542
    %3474 = vmatprep.subr.bf16.mxu0 %v2547
    %3475 = vmatpush1.bf16.msra.mxu0 %v2546
    %3476 = vmatprep.subr.bf16.mxu0 %v2551
    %3477 = vmatpush1.bf16.msra.mxu0 %v2550
    %3478 = vmatprep.subr.bf16.mxu0 %v2555
    %3479 = vmatpush1.bf16.msra.mxu0 %v2554
    %3480 = vmatprep.subr.bf16.mxu0 %v2559
    %3481 = vmatpush1.bf16.msra.mxu0 %v2558
    %3482 = vmatprep.subr.bf16.mxu0 %v2563
    %3483 = vmatpush1.bf16.msra.mxu0 %v2562
    %3484 = vmatprep.subr.bf16.mxu0 %v2567
    %3485 = vmatpush1.bf16.msra.mxu0 %v2566
    %3486 = vmatprep.subr.bf16.mxu0 %v2571
    %3487 = vmatpush1.bf16.msra.mxu0 %v2570
    %3488 = vmatprep.subr.bf16.mxu0 %v2575
    %3489 = vmatpush1.bf16.msra.mxu0 %v2574
    %3490 = vmatprep.subr.bf16.mxu0 %v2579
    %3491 = vmatpush1.bf16.msra.mxu0 %v2578
    %3492 = vmatprep.subr.bf16.mxu0 %v2583
    %3493 = vmatpush1.bf16.msra.mxu0 %v2582
    %3494 = vmatprep.subr.bf16.mxu0 %v2587
    %3495 = vmatpush1.bf16.msra.mxu0 %v2586
    %3496 = vmatprep.subr.bf16.mxu0 %v2591
    %3497 = vmatpush1.bf16.msra.mxu0 %v2590
    %3498 = vmatprep.subr.bf16.mxu0 %v2595
    %3499 = vmatpush1.bf16.msra.mxu0 %v2594
    %3500 = vmatprep.subr.bf16.mxu0 %v2599
    %3501 = vmatpush1.bf16.msra.mxu0 %v2598
    %3502 = vmatprep.mubr.bf16.mxu0 %v205
    %3503 = vmatmul.mubr.bf16.gmra.mrb[0].mxu0 %v204
    %v3504 = vpop.f32.mrb[0].mxu0
    %v3505 = vadd.f32 %v3464, %v3504
    %v3506 = vpop.f32.mrb[0].mxu0
    %v3507 = vadd.f32 %v3466, %v3506
    %v3508 = vpop.f32.mrb[0].mxu0
    %v3509 = vpop.f32.mrb[0].mxu0
    %3510 = vdwg.mxu0
    %3511 = vmatprep.subr.bf16.mxu0 %v2603
    %3512 = vmatpush1.bf16.msra.mxu0 %v2602
    %3513 = vmatprep.subr.bf16.mxu0 %v2607
    %3514 = vmatpush1.bf16.msra.mxu0 %v2606
    %3515 = vmatprep.subr.bf16.mxu0 %v2611
    %3516 = vmatpush1.bf16.msra.mxu0 %v2610
    %3517 = vmatprep.subr.bf16.mxu0 %v2615
    %3518 = vmatpush1.bf16.msra.mxu0 %v2614
    %3519 = vmatprep.subr.bf16.mxu0 %v2619
    %3520 = vmatpush1.bf16.msra.mxu0 %v2618
    %3521 = vmatprep.subr.bf16.mxu0 %v2623
    %3522 = vmatpush1.bf16.msra.mxu0 %v2622
    %3523 = vmatprep.subr.bf16.mxu0 %v2627
    %3524 = vmatpush1.bf16.msra.mxu0 %v2626
    %3525 = vmatprep.subr.bf16.mxu0 %v2631
    %3526 = vmatpush1.bf16.msra.mxu0 %v2630
    %3527 = vmatprep.subr.bf16.mxu0 %v2635
    %3528 = vmatpush1.bf16.msra.mxu0 %v2634
    %3529 = vmatprep.subr.bf16.mxu0 %v2639
    %3530 = vmatpush1.bf16.msra.mxu0 %v2638
    %3531 = vmatprep.subr.bf16.mxu0 %v2643
    %3532 = vmatpush1.bf16.msra.mxu0 %v2642
    %3533 = vmatprep.subr.bf16.mxu0 %v2647
    %3534 = vmatpush1.bf16.msra.mxu0 %v2646
    %3535 = vmatprep.subr.bf16.mxu0 %v2651
    %3536 = vmatpush1.bf16.msra.mxu0 %v2650
    %3537 = vmatprep.subr.bf16.mxu0 %v2655
    %3538 = vmatpush1.bf16.msra.mxu0 %v2654
    %3539 = vmatprep.subr.bf16.mxu0 %v2659
    %3540 = vmatpush1.bf16.msra.mxu0 %v2658
    %3541 = vmatprep.subr.bf16.mxu0 %v2663
    %3542 = vmatpush1.bf16.msra.mxu0 %v2662
    %3543 = vmatprep.mubr.bf16.mxu0 %v207
    %3544 = vmatmul.mubr.bf16.gmra.mrb[0].mxu0 %v206
    %v3545 = vpop.f32.mrb[0].mxu0
    %v3546 = vadd.f32 %v3505, %v3545
    %v3547 = vpop.f32.mrb[0].mxu0
    %v3548 = vadd.f32 %v3507, %v3547
    %v3549 = vpop.f32.mrb[0].mxu0
    %v3550 = vpop.f32.mrb[0].mxu0
    %3551 = vdwg.mxu0
    %3552 = vmatprep.subr.bf16.mxu0 %v2667
    %3553 = vmatpush1.bf16.msra.mxu0 %v2666
    %3554 = vmatprep.subr.bf16.mxu0 %v2671
    %3555 = vmatpush1.bf16.msra.mxu0 %v2670
    %3556 = vmatprep.subr.bf16.mxu0 %v2675
    %3557 = vmatpush1.bf16.msra.mxu0 %v2674
    %3558 = vmatprep.subr.bf16.mxu0 %v2679
    %3559 = vmatpush1.bf16.msra.mxu0 %v2678
    %3560 = vmatprep.subr.bf16.mxu0 %v2683
    %3561 = vmatpush1.bf16.msra.mxu0 %v2682
    %3562 = vmatprep.subr.bf16.mxu0 %v2687
    %3563 = vmatpush1.bf16.msra.mxu0 %v2686
    %3564 = vmatprep.subr.bf16.mxu0 %v2691
    %3565 = vmatpush1.bf16.msra.mxu0 %v2690
    %3566 = vmatprep.subr.bf16.mxu0 %v2695
    %3567 = vmatpush1.bf16.msra.mxu0 %v2694
    %3568 = vmatprep.subr.bf16.mxu0 %v2699
    %3569 = vmatpush1.bf16.msra.mxu0 %v2698
    %3570 = vmatprep.subr.bf16.mxu0 %v2703
    %3571 = vmatpush1.bf16.msra.mxu0 %v2702
    %3572 = vmatprep.subr.bf16.mxu0 %v2707
    %3573 = vmatpush1.bf16.msra.mxu0 %v2706
    %3574 = vmatprep.subr.bf16.mxu0 %v2711
    %3575 = vmatpush1.bf16.msra.mxu0 %v2710
    %3576 = vmatprep.subr.bf16.mxu0 %v2715
    %3577 = vmatpush1.bf16.msra.mxu0 %v2714
    %3578 = vmatprep.subr.bf16.mxu0 %v2719
    %3579 = vmatpush1.bf16.msra.mxu0 %v2718
    %3580 = vmatprep.subr.bf16.mxu0 %v2723
    %3581 = vmatpush1.bf16.msra.mxu0 %v2722
    %3582 = vmatprep.subr.bf16.mxu0 %v2727
    %3583 = vmatpush1.bf16.msra.mxu0 %v2726
    %3584 = vmatprep.mubr.bf16.mxu0 %v209
    %3585 = vmatmul.mubr.bf16.gmra.mrb[0].mxu0 %v208
    %v3586 = vpop.f32.mrb[0].mxu0
    %v3587 = vadd.f32 %v3546, %v3586
    %v3588 = vpop.f32.mrb[0].mxu0
    %v3589 = vadd.f32 %v3548, %v3588
    %v3590 = vpop.f32.mrb[0].mxu0
    %v3591 = vpop.f32.mrb[0].mxu0
    %3592 = vdwg.mxu0
    %3593 = vmatprep.subr.bf16.mxu0 %v2731
    %3594 = vmatpush1.bf16.msra.mxu0 %v2730
    %3595 = vmatprep.subr.bf16.mxu0 %v2735
    %3596 = vmatpush1.bf16.msra.mxu0 %v2734
    %3597 = vmatprep.subr.bf16.mxu0 %v2739
    %3598 = vmatpush1.bf16.msra.mxu0 %v2738
    %3599 = vmatprep.subr.bf16.mxu0 %v2743
    %3600 = vmatpush1.bf16.msra.mxu0 %v2742
    %3601 = vmatprep.subr.bf16.mxu0 %v2747
    %3602 = vmatpush1.bf16.msra.mxu0 %v2746
    %3603 = vmatprep.subr.bf16.mxu0 %v2751
    %3604 = vmatpush1.bf16.msra.mxu0 %v2750
    %3605 = vmatprep.subr.bf16.mxu0 %v2755
    %3606 = vmatpush1.bf16.msra.mxu0 %v2754
    %3607 = vmatprep.subr.bf16.mxu0 %v2759
    %3608 = vmatpush1.bf16.msra.mxu0 %v2758
    %3609 = vmatprep.subr.bf16.mxu0 %v2763
    %3610 = vmatpush1.bf16.msra.mxu0 %v2762
    %3611 = vmatprep.subr.bf16.mxu0 %v2767
    %3612 = vmatpush1.bf16.msra.mxu0 %v2766
    %3613 = vmatprep.subr.bf16.mxu0 %v2771
    %3614 = vmatpush1.bf16.msra.mxu0 %v2770
    %3615 = vmatprep.subr.bf16.mxu0 %v2775
    %3616 = vmatpush1.bf16.msra.mxu0 %v2774
    %3617 = vmatprep.subr.bf16.mxu0 %v2779
    %3618 = vmatpush1.bf16.msra.mxu0 %v2778
    %3619 = vmatprep.subr.bf16.mxu0 %v2783
    %3620 = vmatpush1.bf16.msra.mxu0 %v2782
    %3621 = vmatprep.subr.bf16.mxu0 %v2787
    %3622 = vmatpush1.bf16.msra.mxu0 %v2786
    %3623 = vmatprep.subr.bf16.mxu0 %v2791
    %3624 = vmatpush1.bf16.msra.mxu0 %v2790
    %3625 = vmatprep.mubr.bf16.mxu0 %v211
    %3626 = vmatmul.mubr.bf16.gmra.mrb[0].mxu0 %v210
    %v3627 = vpop.f32.mrb[0].mxu0
    %v3628 = vadd.f32 %v3587, %v3627
    %v3629 = vpop.f32.mrb[0].mxu0
    %v3630 = vadd.f32 %v3589, %v3629
    %v3631 = vpop.f32.mrb[0].mxu0
    %v3632 = vpop.f32.mrb[0].mxu0
    %3633 = vdwg.mxu0
    %3634 = vmatprep.subr.bf16.mxu0 %v2285
    %3635 = vmatpush1.bf16.msra.mxu0 %v2284
    %3636 = vmatprep.subr.bf16.mxu0 %v2289
    %3637 = vmatpush1.bf16.msra.mxu0 %v2288
    %3638 = vmatprep.subr.bf16.mxu0 %v2293
    %3639 = vmatpush1.bf16.msra.mxu0 %v2292
    %3640 = vmatprep.subr.bf16.mxu0 %v2297
    %3641 = vmatpush1.bf16.msra.mxu0 %v2296
    %3642 = vmatprep.subr.bf16.mxu0 %v2301
    %3643 = vmatpush1.bf16.msra.mxu0 %v2300
    %3644 = vmatprep.subr.bf16.mxu0 %v2305
    %3645 = vmatpush1.bf16.msra.mxu0 %v2304
    %3646 = vmatprep.subr.bf16.mxu0 %v2309
    %3647 = vmatpush1.bf16.msra.mxu0 %v2308
    %3648 = vmatprep.subr.bf16.mxu0 %v2313
    %3649 = vmatpush1.bf16.msra.mxu0 %v2312
    %3650 = vmatprep.subr.bf16.mxu0 %v2317
    %3651 = vmatpush1.bf16.msra.mxu0 %v2316
    %3652 = vmatprep.subr.bf16.mxu0 %v2321
    %3653 = vmatpush1.bf16.msra.mxu0 %v2320
    %3654 = vmatprep.subr.bf16.mxu0 %v2325
    %3655 = vmatpush1.bf16.msra.mxu0 %v2324
    %3656 = vmatprep.subr.bf16.mxu0 %v2329
    %3657 = vmatpush1.bf16.msra.mxu0 %v2328
    %3658 = vmatprep.subr.bf16.mxu0 %v2333
    %3659 = vmatpush1.bf16.msra.mxu0 %v2332
    %3660 = vmatprep.subr.bf16.mxu0 %v2337
    %3661 = vmatpush1.bf16.msra.mxu0 %v2336
    %3662 = vmatprep.subr.bf16.mxu0 %v2341
    %3663 = vmatpush1.bf16.msra.mxu0 %v2340
    %3664 = vmatprep.subr.bf16.mxu0 %v2345
    %3665 = vmatpush1.bf16.msra.mxu0 %v2344
    %3666 = vmatprep.mubr.bf16.mxu0 %v197
    %3667 = vmatmul.mubr.bf16.gmra.mrb[0].mxu0 %v196
    %v3668 = vpop.f32.mrb[0].mxu0
    %v3669 = vadd.f32 %v737, %v3668
    %v3670 = vpop.f32.mrb[0].mxu0
    %v3671 = vadd.f32 %v741, %v3670
    %v3672 = vpop.f32.mrb[0].mxu0
    %v3673 = vpop.f32.mrb[0].mxu0
    %3674 = vdwg.mxu0
    %3675 = vmatprep.subr.bf16.mxu0 %v2349
    %3676 = vmatpush1.bf16.msra.mxu0 %v2348
    %3677 = vmatprep.subr.bf16.mxu0 %v2353
    %3678 = vmatpush1.bf16.msra.mxu0 %v2352
    %3679 = vmatprep.subr.bf16.mxu0 %v2357
    %3680 = vmatpush1.bf16.msra.mxu0 %v2356
    %3681 = vmatprep.subr.bf16.mxu0 %v2361
    %3682 = vmatpush1.bf16.msra.mxu0 %v2360
    %3683 = vmatprep.subr.bf16.mxu0 %v2365
    %3684 = vmatpush1.bf16.msra.mxu0 %v2364
    %3685 = vmatprep.subr.bf16.mxu0 %v2369
    %3686 = vmatpush1.bf16.msra.mxu0 %v2368
    %3687 = vmatprep.subr.bf16.mxu0 %v2373
    %3688 = vmatpush1.bf16.msra.mxu0 %v2372
    %3689 = vmatprep.subr.bf16.mxu0 %v2377
    %3690 = vmatpush1.bf16.msra.mxu0 %v2376
    %3691 = vmatprep.subr.bf16.mxu0 %v2381
    %3692 = vmatpush1.bf16.msra.mxu0 %v2380
    %3693 = vmatprep.subr.bf16.mxu0 %v2385
    %3694 = vmatpush1.bf16.msra.mxu0 %v2384
    %3695 = vmatprep.subr.bf16.mxu0 %v2389
    %3696 = vmatpush1.bf16.msra.mxu0 %v2388
    %3697 = vmatprep.subr.bf16.mxu0 %v2393
    %3698 = vmatpush1.bf16.msra.mxu0 %v2392
    %3699 = vmatprep.subr.bf16.mxu0 %v2397
    %3700 = vmatpush1.bf16.msra.mxu0 %v2396
    %3701 = vmatprep.subr.bf16.mxu0 %v2401
    %3702 = vmatpush1.bf16.msra.mxu0 %v2400
    %3703 = vmatprep.subr.bf16.mxu0 %v2405
    %3704 = vmatpush1.bf16.msra.mxu0 %v2404
    %3705 = vmatprep.subr.bf16.mxu0 %v2409
    %3706 = vmatpush1.bf16.msra.mxu0 %v2408
    %3707 = vmatprep.mubr.bf16.mxu0 %v199
    %3708 = vmatmul.mubr.bf16.gmra.mrb[0].mxu0 %v198
    %v3709 = vpop.f32.mrb[0].mxu0
    %v3710 = vadd.f32 %v3669, %v3709
    %v3711 = vpop.f32.mrb[0].mxu0
    %v3712 = vadd.f32 %v3671, %v3711
    %v3713 = vpop.f32.mrb[0].mxu0
    %v3714 = vpop.f32.mrb[0].mxu0
    %3715 = vdwg.mxu0
    %3716 = vmatprep.subr.bf16.mxu0 %v2413
    %3717 = vmatpush1.bf16.msra.mxu0 %v2412
    %3718 = vmatprep.subr.bf16.mxu0 %v2417
    %3719 = vmatpush1.bf16.msra.mxu0 %v2416
    %3720 = vmatprep.subr.bf16.mxu0 %v2421
    %3721 = vmatpush1.bf16.msra.mxu0 %v2420
    %3722 = vmatprep.subr.bf16.mxu0 %v2425
    %3723 = vmatpush1.bf16.msra.mxu0 %v2424
    %3724 = vmatprep.subr.bf16.mxu0 %v2429
    %3725 = vmatpush1.bf16.msra.mxu0 %v2428
    %3726 = vmatprep.subr.bf16.mxu0 %v2433
    %3727 = vmatpush1.bf16.msra.mxu0 %v2432
    %3728 = vmatprep.subr.bf16.mxu0 %v2437
    %3729 = vmatpush1.bf16.msra.mxu0 %v2436
    %3730 = vmatprep.subr.bf16.mxu0 %v2441
    %3731 = vmatpush1.bf16.msra.mxu0 %v2440
    %3732 = vmatprep.subr.bf16.mxu0 %v2445
    %3733 = vmatpush1.bf16.msra.mxu0 %v2444
    %3734 = vmatprep.subr.bf16.mxu0 %v2449
    %3735 = vmatpush1.bf16.msra.mxu0 %v2448
    %3736 = vmatprep.subr.bf16.mxu0 %v2453
    %3737 = vmatpush1.bf16.msra.mxu0 %v2452
    %3738 = vmatprep.subr.bf16.mxu0 %v2457
    %3739 = vmatpush1.bf16.msra.mxu0 %v2456
    %3740 = vmatprep.subr.bf16.mxu0 %v2461
    %3741 = vmatpush1.bf16.msra.mxu0 %v2460
    %3742 = vmatprep.subr.bf16.mxu0 %v2465
    %3743 = vmatpush1.bf16.msra.mxu0 %v2464
    %3744 = vmatprep.subr.bf16.mxu0 %v2469
    %3745 = vmatpush1.bf16.msra.mxu0 %v2468
    %3746 = vmatprep.subr.bf16.mxu0 %v2473
    %3747 = vmatpush1.bf16.msra.mxu0 %v2472
    %3748 = vmatprep.mubr.bf16.mxu0 %v201
    %3749 = vmatmul.mubr.bf16.gmra.mrb[0].mxu0 %v200
    %v3750 = vpop.f32.mrb[0].mxu0
    %v3751 = vadd.f32 %v3710, %v3750
    %v3752 = vpop.f32.mrb[0].mxu0
    %v3753 = vadd.f32 %v3712, %v3752
    %v3754 = vpop.f32.mrb[0].mxu0
    %v3755 = vpop.f32.mrb[0].mxu0
    %3756 = vdwg.mxu0
    %3757 = vmatprep.subr.bf16.mxu0 %v2477
    %3758 = vmatpush1.bf16.msra.mxu0 %v2476
    %3759 = vmatprep.subr.bf16.mxu0 %v2481
    %3760 = vmatpush1.bf16.msra.mxu0 %v2480
    %3761 = vmatprep.subr.bf16.mxu0 %v2485
    %3762 = vmatpush1.bf16.msra.mxu0 %v2484
    %3763 = vmatprep.subr.bf16.mxu0 %v2489
    %3764 = vmatpush1.bf16.msra.mxu0 %v2488
    %3765 = vmatprep.subr.bf16.mxu0 %v2493
    %3766 = vmatpush1.bf16.msra.mxu0 %v2492
    %3767 = vmatprep.subr.bf16.mxu0 %v2497
    %3768 = vmatpush1.bf16.msra.mxu0 %v2496
    %3769 = vmatprep.subr.bf16.mxu0 %v2501
    %3770 = vmatpush1.bf16.msra.mxu0 %v2500
    %3771 = vmatprep.subr.bf16.mxu0 %v2505
    %3772 = vmatpush1.bf16.msra.mxu0 %v2504
    %3773 = vmatprep.subr.bf16.mxu0 %v2509
    %3774 = vmatpush1.bf16.msra.mxu0 %v2508
    %3775 = vmatprep.subr.bf16.mxu0 %v2513
    %3776 = vmatpush1.bf16.msra.mxu0 %v2512
    %3777 = vmatprep.subr.bf16.mxu0 %v2517
    %3778 = vmatpush1.bf16.msra.mxu0 %v2516
    %3779 = vmatprep.subr.bf16.mxu0 %v2521
    %3780 = vmatpush1.bf16.msra.mxu0 %v2520
    %3781 = vmatprep.subr.bf16.mxu0 %v2525
    %3782 = vmatpush1.bf16.msra.mxu0 %v2524
    %3783 = vmatprep.subr.bf16.mxu0 %v2529
    %3784 = vmatpush1.bf16.msra.mxu0 %v2528
    %3785 = vmatprep.subr.bf16.mxu0 %v2533
    %3786 = vmatpush1.bf16.msra.mxu0 %v2532
    %3787 = vmatprep.subr.bf16.mxu0 %v2537
    %3788 = vmatpush1.bf16.msra.mxu0 %v2536
    %3789 = vmatprep.mubr.bf16.mxu0 %v203
    %3790 = vmatmul.mubr.bf16.gmra.mrb[0].mxu0 %v202
    %v3791 = vpop.f32.mrb[0].mxu0
    %v3792 = vadd.f32 %v3751, %v3791
    %v3793 = vpop.f32.mrb[0].mxu0
    %v3794 = vadd.f32 %v3753, %v3793
    %v3795 = vpop.f32.mrb[0].mxu0
    %v3796 = vpop.f32.mrb[0].mxu0
    %3797 = vdwg.mxu0
    %3798 = vmatprep.subr.bf16.mxu0 %v2541
    %3799 = vmatpush1.bf16.msra.mxu0 %v2540
    %3800 = vmatprep.subr.bf16.mxu0 %v2545
    %3801 = vmatpush1.bf16.msra.mxu0 %v2544
    %3802 = vmatprep.subr.bf16.mxu0 %v2549
    %3803 = vmatpush1.bf16.msra.mxu0 %v2548
    %3804 = vmatprep.subr.bf16.mxu0 %v2553
    %3805 = vmatpush1.bf16.msra.mxu0 %v2552
    %3806 = vmatprep.subr.bf16.mxu0 %v2557
    %3807 = vmatpush1.bf16.msra.mxu0 %v2556
    %3808 = vmatprep.subr.bf16.mxu0 %v2561
    %3809 = vmatpush1.bf16.msra.mxu0 %v2560
    %3810 = vmatprep.subr.bf16.mxu0 %v2565
    %3811 = vmatpush1.bf16.msra.mxu0 %v2564
    %3812 = vmatprep.subr.bf16.mxu0 %v2569
    %3813 = vmatpush1.bf16.msra.mxu0 %v2568
    %3814 = vmatprep.subr.bf16.mxu0 %v2573
    %3815 = vmatpush1.bf16.msra.mxu0 %v2572
    %3816 = vmatprep.subr.bf16.mxu0 %v2577
    %3817 = vmatpush1.bf16.msra.mxu0 %v2576
    %3818 = vmatprep.subr.bf16.mxu0 %v2581
    %3819 = vmatpush1.bf16.msra.mxu0 %v2580
    %3820 = vmatprep.subr.bf16.mxu0 %v2585
    %3821 = vmatpush1.bf16.msra.mxu0 %v2584
    %3822 = vmatprep.subr.bf16.mxu0 %v2589
    %3823 = vmatpush1.bf16.msra.mxu0 %v2588
    %3824 = vmatprep.subr.bf16.mxu0 %v2593
    %3825 = vmatpush1.bf16.msra.mxu0 %v2592
    %3826 = vmatprep.subr.bf16.mxu0 %v2597
    %3827 = vmatpush1.bf16.msra.mxu0 %v2596
    %3828 = vmatprep.subr.bf16.mxu0 %v2601
    %3829 = vmatpush1.bf16.msra.mxu0 %v2600
    %3830 = vmatprep.mubr.bf16.mxu0 %v205
    %3831 = vmatmul.mubr.bf16.gmra.mrb[0].mxu0 %v204
    %v3832 = vpop.f32.mrb[0].mxu0
    %v3833 = vadd.f32 %v3792, %v3832
    %v3834 = vpop.f32.mrb[0].mxu0
    %v3835 = vadd.f32 %v3794, %v3834
    %v3836 = vpop.f32.mrb[0].mxu0
    %v3837 = vpop.f32.mrb[0].mxu0
    %3838 = vdwg.mxu0
    %3839 = vmatprep.subr.bf16.mxu0 %v2605
    %3840 = vmatpush1.bf16.msra.mxu0 %v2604
    %3841 = vmatprep.subr.bf16.mxu0 %v2609
    %3842 = vmatpush1.bf16.msra.mxu0 %v2608
    %3843 = vmatprep.subr.bf16.mxu0 %v2613
    %3844 = vmatpush1.bf16.msra.mxu0 %v2612
    %3845 = vmatprep.subr.bf16.mxu0 %v2617
    %3846 = vmatpush1.bf16.msra.mxu0 %v2616
    %3847 = vmatprep.subr.bf16.mxu0 %v2621
    %3848 = vmatpush1.bf16.msra.mxu0 %v2620
    %3849 = vmatprep.subr.bf16.mxu0 %v2625
    %3850 = vmatpush1.bf16.msra.mxu0 %v2624
    %3851 = vmatprep.subr.bf16.mxu0 %v2629
    %3852 = vmatpush1.bf16.msra.mxu0 %v2628
    %3853 = vmatprep.subr.bf16.mxu0 %v2633
    %3854 = vmatpush1.bf16.msra.mxu0 %v2632
    %3855 = vmatprep.subr.bf16.mxu0 %v2637
    %3856 = vmatpush1.bf16.msra.mxu0 %v2636
    %3857 = vmatprep.subr.bf16.mxu0 %v2641
    %3858 = vmatpush1.bf16.msra.mxu0 %v2640
    %3859 = vmatprep.subr.bf16.mxu0 %v2645
    %3860 = vmatpush1.bf16.msra.mxu0 %v2644
    %3861 = vmatprep.subr.bf16.mxu0 %v2649
    %3862 = vmatpush1.bf16.msra.mxu0 %v2648
    %3863 = vmatprep.subr.bf16.mxu0 %v2653
    %3864 = vmatpush1.bf16.msra.mxu0 %v2652
    %3865 = vmatprep.subr.bf16.mxu0 %v2657
    %3866 = vmatpush1.bf16.msra.mxu0 %v2656
    %3867 = vmatprep.subr.bf16.mxu0 %v2661
    %3868 = vmatpush1.bf16.msra.mxu0 %v2660
    %3869 = vmatprep.subr.bf16.mxu0 %v2665
    %3870 = vmatpush1.bf16.msra.mxu0 %v2664
    %3871 = vmatprep.mubr.bf16.mxu0 %v207
    %3872 = vmatmul.mubr.bf16.gmra.mrb[0].mxu0 %v206
    %v3873 = vpop.f32.mrb[0].mxu0
    %v3874 = vadd.f32 %v3833, %v3873
    %v3875 = vpop.f32.mrb[0].mxu0
    %v3876 = vadd.f32 %v3835, %v3875
    %v3877 = vpop.f32.mrb[0].mxu0
    %v3878 = vpop.f32.mrb[0].mxu0
    %3879 = vdwg.mxu0
    %3880 = vmatprep.subr.bf16.mxu0 %v2669
    %3881 = vmatpush1.bf16.msra.mxu0 %v2668
    %3882 = vmatprep.subr.bf16.mxu0 %v2673
    %3883 = vmatpush1.bf16.msra.mxu0 %v2672
    %3884 = vmatprep.subr.bf16.mxu0 %v2677
    %3885 = vmatpush1.bf16.msra.mxu0 %v2676
    %3886 = vmatprep.subr.bf16.mxu0 %v2681
    %3887 = vmatpush1.bf16.msra.mxu0 %v2680
    %3888 = vmatprep.subr.bf16.mxu0 %v2685
    %3889 = vmatpush1.bf16.msra.mxu0 %v2684
    %3890 = vmatprep.subr.bf16.mxu0 %v2689
    %3891 = vmatpush1.bf16.msra.mxu0 %v2688
    %3892 = vmatprep.subr.bf16.mxu0 %v2693
    %3893 = vmatpush1.bf16.msra.mxu0 %v2692
    %3894 = vmatprep.subr.bf16.mxu0 %v2697
    %3895 = vmatpush1.bf16.msra.mxu0 %v2696
    %3896 = vmatprep.subr.bf16.mxu0 %v2701
    %3897 = vmatpush1.bf16.msra.mxu0 %v2700
    %3898 = vmatprep.subr.bf16.mxu0 %v2705
    %3899 = vmatpush1.bf16.msra.mxu0 %v2704
    %3900 = vmatprep.subr.bf16.mxu0 %v2709
    %3901 = vmatpush1.bf16.msra.mxu0 %v2708
    %3902 = vmatprep.subr.bf16.mxu0 %v2713
    %3903 = vmatpush1.bf16.msra.mxu0 %v2712
    %3904 = vmatprep.subr.bf16.mxu0 %v2717
    %3905 = vmatpush1.bf16.msra.mxu0 %v2716
    %3906 = vmatprep.subr.bf16.mxu0 %v2721
    %3907 = vmatpush1.bf16.msra.mxu0 %v2720
    %3908 = vmatprep.subr.bf16.mxu0 %v2725
    %3909 = vmatpush1.bf16.msra.mxu0 %v2724
    %3910 = vmatprep.subr.bf16.mxu0 %v2729
    %3911 = vmatpush1.bf16.msra.mxu0 %v2728
    %3912 = vmatprep.mubr.bf16.mxu0 %v209
    %3913 = vmatmul.mubr.bf16.gmra.mrb[0].mxu0 %v208
    %v3914 = vpop.f32.mrb[0].mxu0
    %v3915 = vadd.f32 %v3874, %v3914
    %v3916 = vpop.f32.mrb[0].mxu0
    %v3917 = vadd.f32 %v3876, %v3916
    %v3918 = vpop.f32.mrb[0].mxu0
    %v3919 = vpop.f32.mrb[0].mxu0
    %3920 = vdwg.mxu0
    %3921 = vmatprep.subr.bf16.mxu0 %v2733
    %3922 = vmatpush1.bf16.msra.mxu0 %v2732
    %3923 = vmatprep.subr.bf16.mxu0 %v2737
    %3924 = vmatpush1.bf16.msra.mxu0 %v2736
    %3925 = vmatprep.subr.bf16.mxu0 %v2741
    %3926 = vmatpush1.bf16.msra.mxu0 %v2740
    %3927 = vmatprep.subr.bf16.mxu0 %v2745
    %3928 = vmatpush1.bf16.msra.mxu0 %v2744
    %3929 = vmatprep.subr.bf16.mxu0 %v2749
    %3930 = vmatpush1.bf16.msra.mxu0 %v2748
    %3931 = vmatprep.subr.bf16.mxu0 %v2753
    %3932 = vmatpush1.bf16.msra.mxu0 %v2752
    %3933 = vmatprep.subr.bf16.mxu0 %v2757
    %3934 = vmatpush1.bf16.msra.mxu0 %v2756
    %3935 = vmatprep.subr.bf16.mxu0 %v2761
    %3936 = vmatpush1.bf16.msra.mxu0 %v2760
    %3937 = vmatprep.subr.bf16.mxu0 %v2765
    %3938 = vmatpush1.bf16.msra.mxu0 %v2764
    %3939 = vmatprep.subr.bf16.mxu0 %v2769
    %3940 = vmatpush1.bf16.msra.mxu0 %v2768
    %3941 = vmatprep.subr.bf16.mxu0 %v2773
    %3942 = vmatpush1.bf16.msra.mxu0 %v2772
    %3943 = vmatprep.subr.bf16.mxu0 %v2777
    %3944 = vmatpush1.bf16.msra.mxu0 %v2776
    %3945 = vmatprep.subr.bf16.mxu0 %v2781
    %3946 = vmatpush1.bf16.msra.mxu0 %v2780
    %3947 = vmatprep.subr.bf16.mxu0 %v2785
    %3948 = vmatpush1.bf16.msra.mxu0 %v2784
    %3949 = vmatprep.subr.bf16.mxu0 %v2789
    %3950 = vmatpush1.bf16.msra.mxu0 %v2788
    %3951 = vmatprep.subr.bf16.mxu0 %v2793
    %3952 = vmatpush1.bf16.msra.mxu0 %v2792
    %3953 = vmatprep.mubr.bf16.mxu0 %v211
    %3954 = vmatmul.mubr.bf16.gmra.mrb[0].mxu0 %v210
    %v3955 = vpop.f32.mrb[0].mxu0
    %v3956 = vadd.f32 %v3915, %v3955
    %v3957 = vpop.f32.mrb[0].mxu0
    %v3958 = vadd.f32 %v3917, %v3957
    %v3959 = vpop.f32.mrb[0].mxu0
    %v3960 = vpop.f32.mrb[0].mxu0
    %3961 = vdwg.mxu0
    %v3962 = vmax.f32 %v3628, 0.0
    %v3963 = vmax.f32 %v3630, 0.0
    %v3964 = vmax.f32 %v3956, 0.0
    %v3965 = vmax.f32 %v3958, 0.0
    %v3966 = vpack.c.bf16 %v3962, %v3962
    %v3967 = vpack.c.bf16 %v3963, %v3963
    %v3968 = vpack.c.bf16 %v3964, %v3964
    %v3969 = vpack.c.bf16 %v3965, %v3965
    %v3970 = vld [vmem:[#allocation9] sm:$0xf]
    %v3971 = vld [vmem:[#allocation9 + $0x4] sm:$0xf]
    %v3972 = vld [vmem:[#allocation9 + $0x8] sm:$0xf]
    %v3973 = vld [vmem:[#allocation9 + $0xc] sm:$0xf]
    %v3974 = vld [vmem:[#allocation9 + $0x10] sm:$0xf]
    %v3975 = vld [vmem:[#allocation9 + $0x14] sm:$0xf]
    %v3976 = vld [vmem:[#allocation9 + $0x18] sm:$0xf]
    %v3977 = vld [vmem:[#allocation9 + $0x1c] sm:$0xf]
    %v3978 = vld [vmem:[#allocation9 + $0x20] sm:$0xf]
    %v3979 = vld [vmem:[#allocation9 + $0x24] sm:$0xf]
    %v3980 = vld [vmem:[#allocation9 + $0x28] sm:$0xf]
    %v3981 = vld [vmem:[#allocation9 + $0x2c] sm:$0xf]
    %v3982 = vld [vmem:[#allocation9 + $0x30] sm:$0xf]
    %v3983 = vld [vmem:[#allocation9 + $0x34] sm:$0xf]
    %v3984 = vld [vmem:[#allocation9 + $0x38] sm:$0xf]
    %v3985 = vld [vmem:[#allocation9 + $0x3c] sm:$0xf]
    %v3986 = vld [vmem:[#allocation9 + $0x40] sm:$0xf]
    %v3987 = vld [vmem:[#allocation9 + $0x44] sm:$0xf]
    %v3988 = vld [vmem:[#allocation9 + $0x48] sm:$0xf]
    %v3989 = vld [vmem:[#allocation9 + $0x4c] sm:$0xf]
    %v3990 = vld [vmem:[#allocation9 + $0x50] sm:$0xf]
    %v3991 = vld [vmem:[#allocation9 + $0x54] sm:$0xf]
    %v3992 = vld [vmem:[#allocation9 + $0x58] sm:$0xf]
    %v3993 = vld [vmem:[#allocation9 + $0x5c] sm:$0xf]
    %v3994 = vld [vmem:[#allocation9 + $0x60] sm:$0xf]
    %v3995 = vld [vmem:[#allocation9 + $0x64] sm:$0xf]
    %v3996 = vld [vmem:[#allocation9 + $0x68] sm:$0xf]
    %v3997 = vld [vmem:[#allocation9 + $0x6c] sm:$0xf]
    %v3998 = vld [vmem:[#allocation9 + $0x70] sm:$0xf]
    %v3999 = vld [vmem:[#allocation9 + $0x74] sm:$0xf]
    %v4000 = vld [vmem:[#allocation9 + $0x78] sm:$0xf]
    %v4001 = vld [vmem:[#allocation9 + $0x7c] sm:$0xf]
    %v4002 = vld [vmem:[#allocation9 + $0x80] sm:$0xf]
    %v4003 = vld [vmem:[#allocation9 + $0x84] sm:$0xf]
    %v4004 = vld [vmem:[#allocation9 + $0x88] sm:$0xf]
    %v4005 = vld [vmem:[#allocation9 + $0x8c] sm:$0xf]
    %v4006 = vld [vmem:[#allocation9 + $0x90] sm:$0xf]
    %v4007 = vld [vmem:[#allocation9 + $0x94] sm:$0xf]
    %v4008 = vld [vmem:[#allocation9 + $0x98] sm:$0xf]
    %v4009 = vld [vmem:[#allocation9 + $0x9c] sm:$0xf]
    %v4010 = vld [vmem:[#allocation9 + $0xa0] sm:$0xf]
    %v4011 = vld [vmem:[#allocation9 + $0xa4] sm:$0xf]
    %v4012 = vld [vmem:[#allocation9 + $0xa8] sm:$0xf]
    %v4013 = vld [vmem:[#allocation9 + $0xac] sm:$0xf]
    %v4014 = vld [vmem:[#allocation9 + $0xb0] sm:$0xf]
    %v4015 = vld [vmem:[#allocation9 + $0xb4] sm:$0xf]
    %v4016 = vld [vmem:[#allocation9 + $0xb8] sm:$0xf]
    %v4017 = vld [vmem:[#allocation9 + $0xbc] sm:$0xf]
    %v4018 = vld [vmem:[#allocation9 + $0xc0] sm:$0xf]
    %v4019 = vld [vmem:[#allocation9 + $0xc4] sm:$0xf]
    %v4020 = vld [vmem:[#allocation9 + $0xc8] sm:$0xf]
    %v4021 = vld [vmem:[#allocation9 + $0xcc] sm:$0xf]
    %v4022 = vld [vmem:[#allocation9 + $0xd0] sm:$0xf]
    %v4023 = vld [vmem:[#allocation9 + $0xd4] sm:$0xf]
    %v4024 = vld [vmem:[#allocation9 + $0xd8] sm:$0xf]
    %v4025 = vld [vmem:[#allocation9 + $0xdc] sm:$0xf]
    %v4026 = vld [vmem:[#allocation9 + $0xe0] sm:$0xf]
    %v4027 = vld [vmem:[#allocation9 + $0xe4] sm:$0xf]
    %v4028 = vld [vmem:[#allocation9 + $0xe8] sm:$0xf]
    %v4029 = vld [vmem:[#allocation9 + $0xec] sm:$0xf]
    %v4030 = vld [vmem:[#allocation9 + $0xf0] sm:$0xf]
    %v4031 = vld [vmem:[#allocation9 + $0xf4] sm:$0xf]
    %v4032 = vld [vmem:[#allocation9 + $0xf8] sm:$0xf]
    %v4033 = vld [vmem:[#allocation9 + $0xfc] sm:$0xf]
    %v4034 = vld [vmem:[#allocation11] sm:$0x1]
    %v4036 = vlaneseq
    %v4037 = vshrl.u32 %v4036, 7
    %v4038 = vsub.s32 0, %v4037
    %v4039 = vrot.slane %v4034, %v4038
    %v4105 = vunpack.c.l.b16 %v3970
    %v4106 = vunpack.c.l.b16 %v3971
    %v4107 = vunpack.c.l.b16 %v3972
    %v4108 = vunpack.c.l.b16 %v3973
    %v4109 = vunpack.c.l.b16 %v3974
    %v4110 = vunpack.c.l.b16 %v3975
    %v4111 = vunpack.c.l.b16 %v3976
    %v4112 = vunpack.c.l.b16 %v3977
    %v4113 = vunpack.c.l.b16 %v3978
    %v4114 = vunpack.c.l.b16 %v3979
    %v4115 = vunpack.c.l.b16 %v3980
    %v4116 = vunpack.c.l.b16 %v3981
    %v4117 = vunpack.c.l.b16 %v3982
    %v4118 = vunpack.c.l.b16 %v3983
    %v4119 = vunpack.c.l.b16 %v3984
    %v4120 = vunpack.c.l.b16 %v3985
    %v4121 = vunpack.c.l.b16 %v3986
    %v4122 = vunpack.c.l.b16 %v3987
    %v4123 = vunpack.c.l.b16 %v3988
    %v4124 = vunpack.c.l.b16 %v3989
    %v4125 = vunpack.c.l.b16 %v3990
    %v4126 = vunpack.c.l.b16 %v3991
    %v4127 = vunpack.c.l.b16 %v3992
    %v4128 = vunpack.c.l.b16 %v3993
    %v4129 = vunpack.c.l.b16 %v3994
    %v4130 = vunpack.c.l.b16 %v3995
    %v4131 = vunpack.c.l.b16 %v3996
    %v4132 = vunpack.c.l.b16 %v3997
    %v4133 = vunpack.c.l.b16 %v3998
    %v4134 = vunpack.c.l.b16 %v3999
    %v4135 = vunpack.c.l.b16 %v4000
    %v4136 = vunpack.c.l.b16 %v4001
    %v4137 = vunpack.c.l.b16 %v4002
    %v4138 = vunpack.c.l.b16 %v4003
    %v4139 = vunpack.c.l.b16 %v4004
    %v4140 = vunpack.c.l.b16 %v4005
    %v4141 = vunpack.c.l.b16 %v4006
    %v4142 = vunpack.c.l.b16 %v4007
    %v4143 = vunpack.c.l.b16 %v4008
    %v4144 = vunpack.c.l.b16 %v4009
    %v4145 = vunpack.c.l.b16 %v4010
    %v4146 = vunpack.c.l.b16 %v4011
    %v4147 = vunpack.c.l.b16 %v4012
    %v4148 = vunpack.c.l.b16 %v4013
    %v4149 = vunpack.c.l.b16 %v4014
    %v4150 = vunpack.c.l.b16 %v4015
    %v4151 = vunpack.c.l.b16 %v4016
    %v4152 = vunpack.c.l.b16 %v4017
    %v4153 = vunpack.c.l.b16 %v4018
    %v4154 = vunpack.c.l.b16 %v4019
    %v4155 = vunpack.c.l.b16 %v4020
    %v4156 = vunpack.c.l.b16 %v4021
    %v4157 = vunpack.c.l.b16 %v4022
    %v4158 = vunpack.c.l.b16 %v4023
    %v4159 = vunpack.c.l.b16 %v4024
    %v4160 = vunpack.c.l.b16 %v4025
    %v4161 = vunpack.c.l.b16 %v4026
    %v4162 = vunpack.c.l.b16 %v4027
    %v4163 = vunpack.c.l.b16 %v4028
    %v4164 = vunpack.c.l.b16 %v4029
    %v4165 = vunpack.c.l.b16 %v4030
    %v4166 = vunpack.c.l.b16 %v4031
    %v4167 = vunpack.c.l.b16 %v4032
    %v4168 = vunpack.c.l.b16 %v4033
    %v4169 = vpack.c.b16 %v4106, %v4105
    %v4170 = vpack.c.b16 %v4108, %v4107
    %v4171 = vpack.c.b16 %v4110, %v4109
    %v4172 = vpack.c.b16 %v4112, %v4111
    %v4173 = vpack.c.b16 %v4114, %v4113
    %v4174 = vpack.c.b16 %v4116, %v4115
    %v4175 = vpack.c.b16 %v4118, %v4117
    %v4176 = vpack.c.b16 %v4120, %v4119
    %v4177 = vpack.c.b16 %v4122, %v4121
    %v4178 = vpack.c.b16 %v4124, %v4123
    %v4179 = vpack.c.b16 %v4126, %v4125
    %v4180 = vpack.c.b16 %v4128, %v4127
    %v4181 = vpack.c.b16 %v4130, %v4129
    %v4182 = vpack.c.b16 %v4132, %v4131
    %v4183 = vpack.c.b16 %v4134, %v4133
    %v4184 = vpack.c.b16 %v4136, %v4135
    %v4185 = vpack.c.b16 %v4138, %v4137
    %v4186 = vpack.c.b16 %v4140, %v4139
    %v4187 = vpack.c.b16 %v4142, %v4141
    %v4188 = vpack.c.b16 %v4144, %v4143
    %v4189 = vpack.c.b16 %v4146, %v4145
    %v4190 = vpack.c.b16 %v4148, %v4147
    %v4191 = vpack.c.b16 %v4150, %v4149
    %v4192 = vpack.c.b16 %v4152, %v4151
    %v4193 = vpack.c.b16 %v4154, %v4153
    %v4194 = vpack.c.b16 %v4156, %v4155
    %v4195 = vpack.c.b16 %v4158, %v4157
    %v4196 = vpack.c.b16 %v4160, %v4159
    %v4197 = vpack.c.b16 %v4162, %v4161
    %v4198 = vpack.c.b16 %v4164, %v4163
    %v4199 = vpack.c.b16 %v4166, %v4165
    %v4200 = vpack.c.b16 %v4168, %v4167
    %4233 = vmatprep.subr.bf16.mxu0 0
    %4234 = vmatpush1.bf16.msra.mxu0 %v4169
    %4235 = vmatprep.subr.bf16.mxu0 0
    %4236 = vmatpush1.bf16.msra.mxu0 %v4170
    %4237 = vmatprep.subr.bf16.mxu0 0
    %4238 = vmatpush1.bf16.msra.mxu0 %v4171
    %4239 = vmatprep.subr.bf16.mxu0 0
    %4240 = vmatpush1.bf16.msra.mxu0 %v4172
    %4241 = vmatprep.subr.bf16.mxu0 0
    %4242 = vmatpush1.bf16.msra.mxu0 %v4173
    %4243 = vmatprep.subr.bf16.mxu0 0
    %4244 = vmatpush1.bf16.msra.mxu0 %v4174
    %4245 = vmatprep.subr.bf16.mxu0 0
    %4246 = vmatpush1.bf16.msra.mxu0 %v4175
    %4247 = vmatprep.subr.bf16.mxu0 0
    %4248 = vmatpush1.bf16.msra.mxu0 %v4176
    %4249 = vmatprep.subr.bf16.mxu0 0
    %4250 = vmatpush1.bf16.msra.mxu0 %v4177
    %4251 = vmatprep.subr.bf16.mxu0 0
    %4252 = vmatpush1.bf16.msra.mxu0 %v4178
    %4253 = vmatprep.subr.bf16.mxu0 0
    %4254 = vmatpush1.bf16.msra.mxu0 %v4179
    %4255 = vmatprep.subr.bf16.mxu0 0
    %4256 = vmatpush1.bf16.msra.mxu0 %v4180
    %4257 = vmatprep.subr.bf16.mxu0 0
    %4258 = vmatpush1.bf16.msra.mxu0 %v4181
    %4259 = vmatprep.subr.bf16.mxu0 0
    %4260 = vmatpush1.bf16.msra.mxu0 %v4182
    %4261 = vmatprep.subr.bf16.mxu0 0
    %4262 = vmatpush1.bf16.msra.mxu0 %v4183
    %4263 = vmatprep.subr.bf16.mxu0 0
    %4264 = vmatpush1.bf16.msra.mxu0 %v4184
    %4265 = vmatprep.mubr.bf16.mxu0 %v3967
    %4266 = vmatmul.mubr.bf16.gmra.mrb[0].mxu0 %v3966
    %v4267 = vpop.f32.mrb[0].mxu0
    %v4268 = vadd.f32 %v4039, %v4267
    %v4269 = vpop.f32.mrb[0].mxu0
    %v4270 = vpop.f32.mrb[0].mxu0
    %v4271 = vpop.f32.mrb[0].mxu0
    %4272 = vdwg.mxu0
    %4273 = vmatprep.subr.bf16.mxu0 0
    %4274 = vmatpush1.bf16.msra.mxu0 %v4185
    %4275 = vmatprep.subr.bf16.mxu0 0
    %4276 = vmatpush1.bf16.msra.mxu0 %v4186
    %4277 = vmatprep.subr.bf16.mxu0 0
    %4278 = vmatpush1.bf16.msra.mxu0 %v4187
    %4279 = vmatprep.subr.bf16.mxu0 0
    %4280 = vmatpush1.bf16.msra.mxu0 %v4188
    %4281 = vmatprep.subr.bf16.mxu0 0
    %4282 = vmatpush1.bf16.msra.mxu0 %v4189
    %4283 = vmatprep.subr.bf16.mxu0 0
    %4284 = vmatpush1.bf16.msra.mxu0 %v4190
    %4285 = vmatprep.subr.bf16.mxu0 0
    %4286 = vmatpush1.bf16.msra.mxu0 %v4191
    %4287 = vmatprep.subr.bf16.mxu0 0
    %4288 = vmatpush1.bf16.msra.mxu0 %v4192
    %4289 = vmatprep.subr.bf16.mxu0 0
    %4290 = vmatpush1.bf16.msra.mxu0 %v4193
    %4291 = vmatprep.subr.bf16.mxu0 0
    %4292 = vmatpush1.bf16.msra.mxu0 %v4194
    %4293 = vmatprep.subr.bf16.mxu0 0
    %4294 = vmatpush1.bf16.msra.mxu0 %v4195
    %4295 = vmatprep.subr.bf16.mxu0 0
    %4296 = vmatpush1.bf16.msra.mxu0 %v4196
    %4297 = vmatprep.subr.bf16.mxu0 0
    %4298 = vmatpush1.bf16.msra.mxu0 %v4197
    %4299 = vmatprep.subr.bf16.mxu0 0
    %4300 = vmatpush1.bf16.msra.mxu0 %v4198
    %4301 = vmatprep.subr.bf16.mxu0 0
    %4302 = vmatpush1.bf16.msra.mxu0 %v4199
    %4303 = vmatprep.subr.bf16.mxu0 0
    %4304 = vmatpush1.bf16.msra.mxu0 %v4200
    %4305 = vmatprep.mubr.bf16.mxu0 %v3969
    %4306 = vmatmul.mubr.bf16.gmra.mrb[0].mxu0 %v3968
    %v4307 = vpop.f32.mrb[0].mxu0
    %v4308 = vadd.f32 %v4268, %v4307
    %v4309 = vpop.f32.mrb[0].mxu0
    %v4310 = vpop.f32.mrb[0].mxu0
    %v4311 = vpop.f32.mrb[0].mxu0
    %4312 = vdwg.mxu0
    %v4313 = vmax.f32 %v4308, 0.0
    %v4314 = vld [vmem:[#allocation12] sm:$0x1]
    %v4316 = vlaneseq
    %v4317 = vshrl.u32 %v4316, 7
    %v4318 = vsub.s32 0, %v4317
    %v4319 = vrot.slane %v4314, %v4318
    %v4321 = vmul.f32 %v4313, %v4319
    %vm4322 = vcmask 1041408
    %v4323 = vsel %vm4322, %v4321, 0.0
    %4324 = vadd.xlane.f32.xlu0 %v4323
    %v4325 = vpop.xlane.xlu0 %4324
    %v4326 = vld [vmem:[#allocation2] sm:$0x1]
    %v4328 = vlaneseq
    %v4329 = vshrl.u32 %v4328, 7
    %v4330 = vsub.s32 0, %v4329
    %v4331 = vrot.slane %v4326, %v4330
    %v4333 = vadd.f32 %v4325, %v4331
    %v4334 = vand.u32 2147483647, %v4333
    %v4335 = vsub.f32 0.0, %v4334
    %v4336 = vmul.f32 %v4335, 1.442695
    %v4337 = vpow.pop %v4336
    %vm4338 = vcmp.ge.f32.partialorder %v4333, 0.0
    %v4339 = vadd.f32 %v4337, 1.0
    %v4340 = vrcp.pop %v4339
    %v4341 = vmul.f32 1.0, %v4340
    %v4342 = vmul.f32 %v4337, %v4340
    %v4343 = vsel %vm4338, %v4341, %v4342
    %vm4344 = vcmp.gt.f32.partialorder %v4343, 0.5
    %v4345 = vsel %vm4344, 1.0, 0.0
    %v4346 = vlaneseq
    %v4347 = vand.u32 %v4346, 127
    %vm4348 = vcmp.eq.s32.totalorder %v4347, 0
    %vm4349 = vcmp.eq.s32.totalorder %v4347, 1
    %vm4350 = vcmp.eq.s32.totalorder %v4347, 2
    %4352 = vset.pattern.permute.xlu0 0
    %4353 = vperm.xlu0 %4352, %v4345
    %v4354 = vpop.permute.xlu0 %4353
    %v4356 = vsel %vm4350, %v4354, 0.0
    %4358 = vset.pattern.permute.xlu0 0
    %4359 = vperm.xlu0 %4358, %v4343
    %v4360 = vpop.permute.xlu0 %4359
    %v4362 = vsel %vm4349, %v4360, %v4356
    %4364 = vset.pattern.permute.xlu0 0
    %4365 = vperm.xlu0 %4364, %v4333
    %v4366 = vpop.permute.xlu0 %4365
    %v4368 = vsel %vm4348, %v4366, %v4362
    %4369 = vst [vmem:[#allocation14] sm:$0x3] %v4368
    // Predicated region
    $region54: #{tpu_custom_call.1} parent=1 // pred_check
      _
    $region55: #{tpu_custom_call.1} parent=1 // pred_check_branch
      %4371 = sbr.rel (0) target = $region57
    $region56: #{tpu_custom_call.1} parent=1 // pred_region
      %s4373 = ssub.s32 32, 32
      %4374 = vsyncadd [#allocation5], %s4373
      %s4376 = sshll.u32 [#allocation14], 4
      %s4377 = int_to_ptr.vmem [resolvable:$true] %s4376
      %4379 = dma.vmem_to_hbm [thread:$0]  %s4377, 32, %s7, [#allocation5]
    $region57: #{tpu_custom_call.1} parent=1 // pred_fallthru
      _
    // Predicated region
    $region58: #{tpu_custom_call.1} parent=1 // pred_check
      _
    $region59: #{tpu_custom_call.1} parent=1 // pred_check_branch
      %4381 = sbr.rel (0) target = $region61
    $region60: #{tpu_custom_call.1} parent=1 // pred_region
      %4382 = dma.done [#allocation5], 32
    $region61: #{tpu_custom_call.1} parent=1 // pred_fallthru
      _
    %4383 = vsyncpa [#allocation4], 1
    %4384 = vsyncpa [#allocation7], 1
    %4385 = vsyncpa [#allocation10], 1
    %4386 = vsyncpa [#allocation13], 1
    %4387 = vsyncpa [#allocation5], 1

</llo_original>
